<compile_context>
chip_gen: v7x
topology: tpu7x:2x2x1
jax: 0.10.0
libtpu: 0.0.40
codegen_flags: <defaults>
</compile_context>

<pallas_src>
import jax
import jax.numpy as jnp
from jax.experimental import pallas as pl
from jax.experimental.pallas import tpu as pltpu


# ----------------------------------------------------------------------------
# Parameters: unetConv2(c1 + c2, out_ch, is_batchnorm=False) -> two 3x3 conv+ReLU
# ----------------------------------------------------------------------------
def init_unet_up_params(key, c1, c2, out_ch):
    cin = c1 + c2
    k = jax.random.split(key, 4)
    w1 = 0.2 * jax.random.normal(k[0], (3, 3, cin, out_ch), jnp.float32)   # HWIO
    b1 = 0.1 * jax.random.normal(k[1], (out_ch,), jnp.float32)
    w2 = 0.2 * jax.random.normal(k[2], (3, 3, out_ch, out_ch), jnp.float32)
    b2 = 0.1 * jax.random.normal(k[3], (out_ch,), jnp.float32)
    # Repack to channels-first matmul form: (tap, Cout, Cin), tap = dy*3 + dx.
    w1m = jnp.transpose(w1.reshape(9, cin, out_ch), (0, 2, 1))
    w2m = jnp.transpose(w2.reshape(9, out_ch, out_ch), (0, 2, 1))
    return dict(w1=w1m, b1=b1.reshape(out_ch, 1), w2=w2m, b2=b2.reshape(out_ch, 1))


def _upsample_matrix(n_in, n_out):
    """(n_out, n_in) interp weights of nn.UpsamplingBilinear2d (align_corners=True)."""
    i = jnp.arange(n_out, dtype=jnp.float32)
    src = i * (n_in - 1) / (n_out - 1)
    i0 = jnp.clip(jnp.floor(src).astype(jnp.int32), 0, n_in - 1)
    i1 = jnp.clip(i0 + 1, 0, n_in - 1)
    frac = src - i0.astype(jnp.float32)
    r = jnp.zeros((n_out, n_in), jnp.float32)
    r = r.at[jnp.arange(n_out), i0].add(1.0 - frac)
    r = r.at[jnp.arange(n_out), i1].add(frac)
    return r


# ----------------------------------------------------------------------------
# Fused unetUp forward (bilinear branch)
# ----------------------------------------------------------------------------
def unet_up_forward(inputs1, inputs2, params):
    n, c1, h_skip, w_skip = inputs1.shape
    _, c2, h_in, w_in = inputs2.shape
    ho, wo = 2 * h_in, 2 * w_in
    nsp = ho * wo                         # flattened spatial size (lane dim)
    cout = params["b1"].shape[0]
    cin = c1 + c2
    pad = wo + 1                          # flat-index halo covering any 3x3 tap shift
    npad = nsp + 2 * pad

    # F.pad(inputs1, 2*[offset//2, offset//2]) so the skip matches the upsampled size.
    off = ho - h_skip
    assert off == wo - w_skip and off >= 0 and off % 2 == 0, "incompatible shapes"
    if off:
        p = off // 2
        inputs1 = jnp.pad(inputs1, ((0, 0), (0, 0), (p, p), (p, p)))

    # Free (contiguous) reshapes into the channels-first layouts the kernel consumes.
    x1 = inputs1.reshape(n, c1, nsp)            # (N, C1, Ho*Wo)
    x2 = inputs2.reshape(n, c2 * h_in, w_in)    # (N, C2*h, w)

    # Separable align_corners=True bilinear-x2 interpolation matrices (tiny).
    rwt = _upsample_matrix(w_in, wo).T          # (w, Wo)
    rh = _upsample_matrix(h_in, ho)             # (Ho, h)

    # Column-validity masks for flat-index 3x3 taps (dx = 0, 1, 2): kill row-wrap reads.
    col = jnp.arange(nsp, dtype=jnp.int32) % wo
    cmask = jnp.stack([
        (col != 0).astype(jnp.float32),         # dx = 0 reads column j-1
        jnp.ones((nsp,), jnp.float32),          # dx = 1
        (col != wo - 1).astype(jnp.float32),    # dx = 2 reads column j+1
    ], axis=0)                                  # (3, Ho*Wo)

    def kernel(x1_ref, x2_ref, rwt_ref, rh_ref, cm_ref,
               w1_ref, b1_ref, w2_ref, b2_ref, o_ref, xcat, xmid):
        f32 = jnp.float32

        # --- bilinear x2 upsample of inputs2: separable, align_corners=True ---
        yw = jnp.dot(x2_ref[0].astype(f32), rwt_ref[...],
                     preferred_element_type=f32)                     # (C2*h, Wo)
        yw = yw.reshape(c2, h_in, wo)
        rhb = jnp.broadcast_to(rh_ref[...], (c2, ho, h_in))
        up = jnp.einsum("cik,ckj->cij", rhb, yw,
                        preferred_element_type=f32)                  # (C2, Ho, Wo)

        # --- concat([padded skip, upsampled]) into a zero-haloed flat VMEM buffer ---
        xcat[...] = jnp.zeros_like(xcat)
        xcat[0:c1, pad:pad + nsp] = x1_ref[0].astype(f32)
        for i in range(ho):                      # flatten rows of `up` into lane space
            xcat[c1:cin, pad + i * wo:pad + (i + 1) * wo] = up[:, i, :]

        cmask_v = cm_ref[...]                                        # (3, Ho*Wo)

        def conv3x3_relu(src_ref, w_ref, b_ref):
            # 3x3 / pad 1 conv as 9 offset lane-window matmuls over the haloed buffer.
            acc = jnp.zeros((cout, nsp), f32)
            for t in range(9):
                dy, dx = t // 3, t % 3
                shift = (dy - 1) * wo + (dx - 1)
                win = src_ref[:, pad + shift:pad + shift + nsp]       # (Cin, Ho*Wo)
                contrib = jnp.dot(w_ref[t], win, preferred_element_type=f32)
                if dx != 1:                                           # mask row-wrap columns
                    contrib = contrib * cmask_v[dx:dx + 1, :]
                acc = acc + contrib
            return jnp.maximum(acc + b_ref[...], 0.0)                 # (Cout, Ho*Wo)

        # --- conv1 + ReLU (reads the VMEM concat; nothing goes back to HBM) ---
        h1v = conv3x3_relu(xcat, w1_ref, b1_ref)

        # --- conv2 + ReLU (h1 stays in VMEM scratch) ---
        xmid[...] = jnp.zeros_like(xmid)
        xmid[:, pad:pad + nsp] = h1v
        o_ref[0] = conv3x3_relu(xmid, w2_ref, b2_ref).astype(o_ref.dtype)

    out = pl.pallas_call(
        kernel,
        out_shape=jax.ShapeDtypeStruct((n, cout, nsp), inputs1.dtype),
        grid=(n,),
        in_specs=[
            pl.BlockSpec((1, c1, nsp), lambda b: (b, 0, 0)),
            pl.BlockSpec((1, c2 * h_in, w_in), lambda b: (b, 0, 0)),
            pl.BlockSpec((w_in, wo), lambda b: (0, 0)),
            pl.BlockSpec((ho, h_in), lambda b: (0, 0)),
            pl.BlockSpec((3, nsp), lambda b: (0, 0)),
            pl.BlockSpec((9, cout, cin), lambda b: (0, 0, 0)),
            pl.BlockSpec((cout, 1), lambda b: (0, 0)),
            pl.BlockSpec((9, cout, cout), lambda b: (0, 0, 0)),
            pl.BlockSpec((cout, 1), lambda b: (0, 0)),
        ],
        out_specs=pl.BlockSpec((1, cout, nsp), lambda b: (b, 0, 0)),
        scratch_shapes=[
            pltpu.VMEM((cin, npad), jnp.float32),    # haloed concat (conv1 input)
            pltpu.VMEM((cout, npad), jnp.float32),   # haloed h1 (conv2 input)
        ],
        compiler_params=pltpu.CompilerParams(dimension_semantics=("parallel",)),
    )(x1, x2, rwt, rh, cmask, params["w1"], params["b1"], params["w2"], params["b2"])

    return out.reshape(n, cout, ho, wo)              # already NCHW; reshape is free


if __name__ == "__main__":
    c1, c2, out_ch = 8, 8, 8        # unetConv2 in_size = c1 + c2 = 16, out_size = 8
    n, h, w = 2, 16, 16             # skip-connection (inputs1) resolution

    key = jax.random.PRNGKey(0)
    k1, k2, kp = jax.random.split(key, 3)
    inputs1 = jax.random.normal(k1, (n, c1, h, w), jnp.float32)            # skip feature map
    inputs2 = jax.random.normal(k2, (n, c2, h // 2, w // 2), jnp.float32)  # coarse feature map
    params = init_unet_up_params(kp, c1, c2, out_ch)

    out = jax.jit(unet_up_forward)(inputs1, inputs2, params)
    jax.block_until_ready(out)
    assert out.shape == (n, out_ch, h, w), out.shape
    assert bool(jnp.all(jnp.isfinite(out)))
    print("KERNEL_OK")
</pallas_src>

<mosaic_0001>
module attributes {stable_mosaic.version = 11 : i64} {
  func.func private @main(%arg0: i32) attributes {dimension_semantics = [#tpu.dimension_semantics<core_parallel>], iteration_bounds = array<i64: 2>, tpu.core_type = #tpu.core_type<sc_scalar_subcore>, window_params = []} {
    return
  }
}

module attributes {stable_mosaic.version = 11 : i64} {
  func.func private @main(%arg0: i32) attributes {dimension_semantics = [#tpu.dimension_semantics<core_parallel>], iteration_bounds = array<i64: 2>, tpu.core_type = #tpu.core_type<sc_scalar_subcore>, window_params = []} {
    return
  }
}

module attributes {stable_mosaic.version = 11 : i64} {
  func.func @kernel(%arg0: i32, %arg1: memref<1x8x256xf32, #tpu.memory_space<vmem>>, %arg2: memref<1x64x8xf32, #tpu.memory_space<vmem>>, %arg3: memref<8x16xf32, #tpu.memory_space<vmem>>, %arg4: memref<16x8xf32, #tpu.memory_space<vmem>>, %arg5: memref<3x256xf32, #tpu.memory_space<vmem>>, %arg6: memref<9x8x16xf32, #tpu.memory_space<vmem>>, %arg7: memref<8x1xf32, #tpu.memory_space<vmem>>, %arg8: memref<9x8x8xf32, #tpu.memory_space<vmem>>, %arg9: memref<8x1xf32, #tpu.memory_space<vmem>>, %arg10: memref<1x8x256xf32, #tpu.memory_space<vmem>>, %arg11: memref<16x290xf32, #tpu.memory_space<vmem>>, %arg12: memref<8x290xf32, #tpu.memory_space<vmem>>) attributes {dimension_semantics = [#tpu.dimension_semantics<parallel>], iteration_bounds = array<i64: 2>, scalar_prefetch = 0 : i64, scratch_operands = 2 : i64, tpu.core_type = #tpu.core_type<tc>, window_params = [{transform_indices = @transform_0, window_bounds = array<i64: 1, 8, 256>}, {transform_indices = @transform_1, window_bounds = array<i64: 1, 64, 8>}, {pipeline_mode = #tpu.pipeline_mode<synchronous>, transform_indices = @transform_2, window_bounds = array<i64: 8, 16>}, {pipeline_mode = #tpu.pipeline_mode<synchronous>, transform_indices = @transform_3, window_bounds = array<i64: 16, 8>}, {pipeline_mode = #tpu.pipeline_mode<synchronous>, transform_indices = @transform_4, window_bounds = array<i64: 3, 256>}, {pipeline_mode = #tpu.pipeline_mode<synchronous>, transform_indices = @transform_5, window_bounds = array<i64: 9, 8, 16>}, {pipeline_mode = #tpu.pipeline_mode<synchronous>, transform_indices = @transform_6, window_bounds = array<i64: 8, 1>}, {pipeline_mode = #tpu.pipeline_mode<synchronous>, transform_indices = @transform_7, window_bounds = array<i64: 9, 8, 8>}, {pipeline_mode = #tpu.pipeline_mode<synchronous>, transform_indices = @transform_8, window_bounds = array<i64: 8, 1>}, {transform_indices = @transform_9, window_bounds = array<i64: 1, 8, 256>}]} {
    %c0 = arith.constant 0 : index
    %c0_0 = arith.constant 0 : index
    %c0_1 = arith.constant 0 : index
    %0 = vector.load %arg2[%c0, %c0_0, %c0_1] : memref<1x64x8xf32, #tpu.memory_space<vmem>>, vector<1x64x8xf32>
    %1 = vector.shape_cast %0 : vector<1x64x8xf32> to vector<64x8xf32>
    %c0_2 = arith.constant 0 : index
    %c0_3 = arith.constant 0 : index
    %2 = vector.load %arg3[%c0_2, %c0_3] : memref<8x16xf32, #tpu.memory_space<vmem>>, vector<8x16xf32>
    %cst = arith.constant dense<0.000000e+00> : vector<64x16xf32>
    %3 = tpu.matmul %1, %2, %cst {dimension_numbers = #tpu.dot_dimension_numbers<[1], [0], [0], [1], [0, 0, 1, 1], [], []>} : vector<64x8xf32>, vector<8x16xf32>, vector<64x16xf32> -> vector<64x16xf32>
    %4 = vector.shape_cast %3 : vector<64x16xf32> to vector<8x8x16xf32>
    %c0_4 = arith.constant 0 : index
    %c0_5 = arith.constant 0 : index
    %5 = vector.load %arg4[%c0_4, %c0_5] : memref<16x8xf32, #tpu.memory_space<vmem>>, vector<16x8xf32>
    %6 = vector.shape_cast %5 : vector<16x8xf32> to vector<1x16x8xf32>
    %7 = vector.broadcast %6 : vector<1x16x8xf32> to vector<8x16x8xf32>
    "tpu.trace_start"() <{level = 10 : i32, message = "cik,ckj->cij"}> : () -> ()
    %cst_6 = arith.constant dense<0.000000e+00> : vector<8x16x16xf32>
    %8 = tpu.matmul %7, %4, %cst_6 {dimension_numbers = #tpu.dot_dimension_numbers<[2], [1], [1], [2], [0, 0, 0, 1, 1, 2], [0], [0]>} : vector<8x16x8xf32>, vector<8x8x16xf32>, vector<8x16x16xf32> -> vector<8x16x16xf32>
    %cst_7 = arith.constant 0.000000e+00 : f32
    "tpu.trace_stop"() : () -> ()
    %9 = vector.broadcast %cst_7 : f32 to vector<16x290xf32>
    %c0_8 = arith.constant 0 : index
    %c0_9 = arith.constant 0 : index
    %10 = vector.load %arg11[%c0_8, %c0_9] : memref<16x290xf32, #tpu.memory_space<vmem>>, vector<16x290xf32>
    tpu.vector_store %arg11[%c0_8, %c0_9], %9 {strides = array<i32>} : memref<16x290xf32, #tpu.memory_space<vmem>>, vector<16x290xf32>,
    %c0_10 = arith.constant 0 : index
    %c0_11 = arith.constant 0 : index
    %c0_12 = arith.constant 0 : index
    %11 = vector.load %arg1[%c0_10, %c0_11, %c0_12] : memref<1x8x256xf32, #tpu.memory_space<vmem>>, vector<1x8x256xf32>
    %12 = vector.shape_cast %11 : vector<1x8x256xf32> to vector<8x256xf32>
    %c0_13 = arith.constant 0 : index
    %c17 = arith.constant 17 : index
    %13 = vector.load %arg11[%c0_13, %c17] : memref<16x290xf32, #tpu.memory_space<vmem>>, vector<8x256xf32>
    tpu.vector_store %arg11[%c0_13, %c17], %12 {strides = array<i32>} : memref<16x290xf32, #tpu.memory_space<vmem>>, vector<8x256xf32>,
    %14 = vector.extract_strided_slice %8 {offsets = [0, 0, 0], sizes = [8, 1, 16], strides = [1, 1, 1]} : vector<8x16x16xf32> to vector<8x1x16xf32>
    %15 = vector.shape_cast %14 : vector<8x1x16xf32> to vector<8x16xf32>
    %c8 = arith.constant 8 : index
    %c17_14 = arith.constant 17 : index
    %16 = vector.load %arg11[%c8, %c17_14] : memref<16x290xf32, #tpu.memory_space<vmem>>, vector<8x16xf32>
    tpu.vector_store %arg11[%c8, %c17_14], %15 {strides = array<i32>} : memref<16x290xf32, #tpu.memory_space<vmem>>, vector<8x16xf32>,
    %17 = vector.extract_strided_slice %8 {offsets = [0, 1, 0], sizes = [8, 1, 16], strides = [1, 1, 1]} : vector<8x16x16xf32> to vector<8x1x16xf32>
    %18 = vector.shape_cast %17 : vector<8x1x16xf32> to vector<8x16xf32>
    %c8_15 = arith.constant 8 : index
    %c33 = arith.constant 33 : index
    %19 = vector.load %arg11[%c8_15, %c33] : memref<16x290xf32, #tpu.memory_space<vmem>>, vector<8x16xf32>
    tpu.vector_store %arg11[%c8_15, %c33], %18 {strides = array<i32>} : memref<16x290xf32, #tpu.memory_space<vmem>>, vector<8x16xf32>,
    %20 = vector.extract_strided_slice %8 {offsets = [0, 2, 0], sizes = [8, 1, 16], strides = [1, 1, 1]} : vector<8x16x16xf32> to vector<8x1x16xf32>
    %21 = vector.shape_cast %20 : vector<8x1x16xf32> to vector<8x16xf32>
    %c8_16 = arith.constant 8 : index
    %c49 = arith.constant 49 : index
    %22 = vector.load %arg11[%c8_16, %c49] : memref<16x290xf32, #tpu.memory_space<vmem>>, vector<8x16xf32>
    tpu.vector_store %arg11[%c8_16, %c49], %21 {strides = array<i32>} : memref<16x290xf32, #tpu.memory_space<vmem>>, vector<8x16xf32>,
    %23 = vector.extract_strided_slice %8 {offsets = [0, 3, 0], sizes = [8, 1, 16], strides = [1, 1, 1]} : vector<8x16x16xf32> to vector<8x1x16xf32>
    %24 = vector.shape_cast %23 : vector<8x1x16xf32> to vector<8x16xf32>
    %c8_17 = arith.constant 8 : index
    %c65 = arith.constant 65 : index
    %25 = vector.load %arg11[%c8_17, %c65] : memref<16x290xf32, #tpu.memory_space<vmem>>, vector<8x16xf32>
    tpu.vector_store %arg11[%c8_17, %c65], %24 {strides = array<i32>} : memref<16x290xf32, #tpu.memory_space<vmem>>, vector<8x16xf32>,
    %26 = vector.extract_strided_slice %8 {offsets = [0, 4, 0], sizes = [8, 1, 16], strides = [1, 1, 1]} : vector<8x16x16xf32> to vector<8x1x16xf32>
    %27 = vector.shape_cast %26 : vector<8x1x16xf32> to vector<8x16xf32>
    %c8_18 = arith.constant 8 : index
    %c81 = arith.constant 81 : index
    %28 = vector.load %arg11[%c8_18, %c81] : memref<16x290xf32, #tpu.memory_space<vmem>>, vector<8x16xf32>
    tpu.vector_store %arg11[%c8_18, %c81], %27 {strides = array<i32>} : memref<16x290xf32, #tpu.memory_space<vmem>>, vector<8x16xf32>,
    %29 = vector.extract_strided_slice %8 {offsets = [0, 5, 0], sizes = [8, 1, 16], strides = [1, 1, 1]} : vector<8x16x16xf32> to vector<8x1x16xf32>
    %30 = vector.shape_cast %29 : vector<8x1x16xf32> to vector<8x16xf32>
    %c8_19 = arith.constant 8 : index
    %c97 = arith.constant 97 : index
    %31 = vector.load %arg11[%c8_19, %c97] : memref<16x290xf32, #tpu.memory_space<vmem>>, vector<8x16xf32>
    tpu.vector_store %arg11[%c8_19, %c97], %30 {strides = array<i32>} : memref<16x290xf32, #tpu.memory_space<vmem>>, vector<8x16xf32>,
    %32 = vector.extract_strided_slice %8 {offsets = [0, 6, 0], sizes = [8, 1, 16], strides = [1, 1, 1]} : vector<8x16x16xf32> to vector<8x1x16xf32>
    %33 = vector.shape_cast %32 : vector<8x1x16xf32> to vector<8x16xf32>
    %c8_20 = arith.constant 8 : index
    %c113 = arith.constant 113 : index
    %34 = vector.load %arg11[%c8_20, %c113] : memref<16x290xf32, #tpu.memory_space<vmem>>, vector<8x16xf32>
    tpu.vector_store %arg11[%c8_20, %c113], %33 {strides = array<i32>} : memref<16x290xf32, #tpu.memory_space<vmem>>, vector<8x16xf32>,
    %35 = vector.extract_strided_slice %8 {offsets = [0, 7, 0], sizes = [8, 1, 16], strides = [1, 1, 1]} : vector<8x16x16xf32> to vector<8x1x16xf32>
    %36 = vector.shape_cast %35 : vector<8x1x16xf32> to vector<8x16xf32>
    %c8_21 = arith.constant 8 : index
    %c129 = arith.constant 129 : index
    %37 = vector.load %arg11[%c8_21, %c129] : memref<16x290xf32, #tpu.memory_space<vmem>>, vector<8x16xf32>
    tpu.vector_store %arg11[%c8_21, %c129], %36 {strides = array<i32>} : memref<16x290xf32, #tpu.memory_space<vmem>>, vector<8x16xf32>,
    %38 = vector.extract_strided_slice %8 {offsets = [0, 8, 0], sizes = [8, 1, 16], strides = [1, 1, 1]} : vector<8x16x16xf32> to vector<8x1x16xf32>
    %39 = vector.shape_cast %38 : vector<8x1x16xf32> to vector<8x16xf32>
    %c8_22 = arith.constant 8 : index
    %c145 = arith.constant 145 : index
    %40 = vector.load %arg11[%c8_22, %c145] : memref<16x290xf32, #tpu.memory_space<vmem>>, vector<8x16xf32>
    tpu.vector_store %arg11[%c8_22, %c145], %39 {strides = array<i32>} : memref<16x290xf32, #tpu.memory_space<vmem>>, vector<8x16xf32>,
    %41 = vector.extract_strided_slice %8 {offsets = [0, 9, 0], sizes = [8, 1, 16], strides = [1, 1, 1]} : vector<8x16x16xf32> to vector<8x1x16xf32>
    %42 = vector.shape_cast %41 : vector<8x1x16xf32> to vector<8x16xf32>
    %c8_23 = arith.constant 8 : index
    %c161 = arith.constant 161 : index
    %43 = vector.load %arg11[%c8_23, %c161] : memref<16x290xf32, #tpu.memory_space<vmem>>, vector<8x16xf32>
    tpu.vector_store %arg11[%c8_23, %c161], %42 {strides = array<i32>} : memref<16x290xf32, #tpu.memory_space<vmem>>, vector<8x16xf32>,
    %44 = vector.extract_strided_slice %8 {offsets = [0, 10, 0], sizes = [8, 1, 16], strides = [1, 1, 1]} : vector<8x16x16xf32> to vector<8x1x16xf32>
    %45 = vector.shape_cast %44 : vector<8x1x16xf32> to vector<8x16xf32>
    %c8_24 = arith.constant 8 : index
    %c177 = arith.constant 177 : index
    %46 = vector.load %arg11[%c8_24, %c177] : memref<16x290xf32, #tpu.memory_space<vmem>>, vector<8x16xf32>
    tpu.vector_store %arg11[%c8_24, %c177], %45 {strides = array<i32>} : memref<16x290xf32, #tpu.memory_space<vmem>>, vector<8x16xf32>,
    %47 = vector.extract_strided_slice %8 {offsets = [0, 11, 0], sizes = [8, 1, 16], strides = [1, 1, 1]} : vector<8x16x16xf32> to vector<8x1x16xf32>
    %48 = vector.shape_cast %47 : vector<8x1x16xf32> to vector<8x16xf32>
    %c8_25 = arith.constant 8 : index
    %c193 = arith.constant 193 : index
    %49 = vector.load %arg11[%c8_25, %c193] : memref<16x290xf32, #tpu.memory_space<vmem>>, vector<8x16xf32>
    tpu.vector_store %arg11[%c8_25, %c193], %48 {strides = array<i32>} : memref<16x290xf32, #tpu.memory_space<vmem>>, vector<8x16xf32>,
    %50 = vector.extract_strided_slice %8 {offsets = [0, 12, 0], sizes = [8, 1, 16], strides = [1, 1, 1]} : vector<8x16x16xf32> to vector<8x1x16xf32>
    %51 = vector.shape_cast %50 : vector<8x1x16xf32> to vector<8x16xf32>
    %c8_26 = arith.constant 8 : index
    %c209 = arith.constant 209 : index
    %52 = vector.load %arg11[%c8_26, %c209] : memref<16x290xf32, #tpu.memory_space<vmem>>, vector<8x16xf32>
    tpu.vector_store %arg11[%c8_26, %c209], %51 {strides = array<i32>} : memref<16x290xf32, #tpu.memory_space<vmem>>, vector<8x16xf32>,
    %53 = vector.extract_strided_slice %8 {offsets = [0, 13, 0], sizes = [8, 1, 16], strides = [1, 1, 1]} : vector<8x16x16xf32> to vector<8x1x16xf32>
    %54 = vector.shape_cast %53 : vector<8x1x16xf32> to vector<8x16xf32>
    %c8_27 = arith.constant 8 : index
    %c225 = arith.constant 225 : index
    %55 = vector.load %arg11[%c8_27, %c225] : memref<16x290xf32, #tpu.memory_space<vmem>>, vector<8x16xf32>
    tpu.vector_store %arg11[%c8_27, %c225], %54 {strides = array<i32>} : memref<16x290xf32, #tpu.memory_space<vmem>>, vector<8x16xf32>,
    %56 = vector.extract_strided_slice %8 {offsets = [0, 14, 0], sizes = [8, 1, 16], strides = [1, 1, 1]} : vector<8x16x16xf32> to vector<8x1x16xf32>
    %57 = vector.shape_cast %56 : vector<8x1x16xf32> to vector<8x16xf32>
    %c8_28 = arith.constant 8 : index
    %c241 = arith.constant 241 : index
    %58 = vector.load %arg11[%c8_28, %c241] : memref<16x290xf32, #tpu.memory_space<vmem>>, vector<8x16xf32>
    tpu.vector_store %arg11[%c8_28, %c241], %57 {strides = array<i32>} : memref<16x290xf32, #tpu.memory_space<vmem>>, vector<8x16xf32>,
    %59 = vector.extract_strided_slice %8 {offsets = [0, 15, 0], sizes = [8, 1, 16], strides = [1, 1, 1]} : vector<8x16x16xf32> to vector<8x1x16xf32>
    %60 = vector.shape_cast %59 : vector<8x1x16xf32> to vector<8x16xf32>
    %c8_29 = arith.constant 8 : index
    %c257 = arith.constant 257 : index
    %61 = vector.load %arg11[%c8_29, %c257] : memref<16x290xf32, #tpu.memory_space<vmem>>, vector<8x16xf32>
    tpu.vector_store %arg11[%c8_29, %c257], %60 {strides = array<i32>} : memref<16x290xf32, #tpu.memory_space<vmem>>, vector<8x16xf32>,
    %c0_30 = arith.constant 0 : index
    %c0_31 = arith.constant 0 : index
    %62 = vector.load %arg5[%c0_30, %c0_31] : memref<3x256xf32, #tpu.memory_space<vmem>>, vector<3x256xf32>
    %cst_32 = arith.constant 0.000000e+00 : f32
    %63 = vector.broadcast %cst_32 : f32 to vector<8x256xf32>
    %c0_33 = arith.constant 0 : index
    %c0_34 = arith.constant 0 : index
    %64 = vector.load %arg11[%c0_33, %c0_34] : memref<16x290xf32, #tpu.memory_space<vmem>>, vector<16x256xf32>
    %c0_35 = arith.constant 0 : index
    %c0_36 = arith.constant 0 : index
    %c0_37 = arith.constant 0 : index
    %65 = vector.load %arg6[%c0_35, %c0_36, %c0_37] : memref<9x8x16xf32, #tpu.memory_space<vmem>>, vector<1x8x16xf32>
    %66 = vector.shape_cast %65 : vector<1x8x16xf32> to vector<8x16xf32>
    %cst_38 = arith.constant dense<0.000000e+00> : vector<8x256xf32>
    %67 = tpu.matmul %66, %64, %cst_38 {dimension_numbers = #tpu.dot_dimension_numbers<[1], [0], [0], [1], [0, 0, 1, 1], [], []>} : vector<8x16xf32>, vector<16x256xf32>, vector<8x256xf32> -> vector<8x256xf32>
    %68 = vector.extract_strided_slice %62 {offsets = [0, 0], sizes = [1, 256], strides = [1, 1]} : vector<3x256xf32> to vector<1x256xf32>
    %69 = vector.broadcast %68 : vector<1x256xf32> to vector<8x256xf32>
    %70 = arith.mulf %67, %69 : vector<8x256xf32>
    %71 = arith.addf %63, %70 : vector<8x256xf32>
    %c0_39 = arith.constant 0 : index
    %c1 = arith.constant 1 : index
    %72 = vector.load %arg11[%c0_39, %c1] : memref<16x290xf32, #tpu.memory_space<vmem>>, vector<16x256xf32>
    %c1_40 = arith.constant 1 : index
    %c0_41 = arith.constant 0 : index
    %c0_42 = arith.constant 0 : index
    %73 = vector.load %arg6[%c1_40, %c0_41, %c0_42] : memref<9x8x16xf32, #tpu.memory_space<vmem>>, vector<1x8x16xf32>
    %74 = vector.shape_cast %73 : vector<1x8x16xf32> to vector<8x16xf32>
    %cst_43 = arith.constant dense<0.000000e+00> : vector<8x256xf32>
    %75 = tpu.matmul %74, %72, %cst_43 {dimension_numbers = #tpu.dot_dimension_numbers<[1], [0], [0], [1], [0, 0, 1, 1], [], []>} : vector<8x16xf32>, vector<16x256xf32>, vector<8x256xf32> -> vector<8x256xf32>
    %76 = arith.addf %71, %75 : vector<8x256xf32>
    %c0_44 = arith.constant 0 : index
    %c2 = arith.constant 2 : index
    %77 = vector.load %arg11[%c0_44, %c2] : memref<16x290xf32, #tpu.memory_space<vmem>>, vector<16x256xf32>
    %c2_45 = arith.constant 2 : index
    %c0_46 = arith.constant 0 : index
    %c0_47 = arith.constant 0 : index
    %78 = vector.load %arg6[%c2_45, %c0_46, %c0_47] : memref<9x8x16xf32, #tpu.memory_space<vmem>>, vector<1x8x16xf32>
    %79 = vector.shape_cast %78 : vector<1x8x16xf32> to vector<8x16xf32>
    %cst_48 = arith.constant dense<0.000000e+00> : vector<8x256xf32>
    %80 = tpu.matmul %79, %77, %cst_48 {dimension_numbers = #tpu.dot_dimension_numbers<[1], [0], [0], [1], [0, 0, 1, 1], [], []>} : vector<8x16xf32>, vector<16x256xf32>, vector<8x256xf32> -> vector<8x256xf32>
    %81 = vector.extract_strided_slice %62 {offsets = [2, 0], sizes = [1, 256], strides = [1, 1]} : vector<3x256xf32> to vector<1x256xf32>
    %82 = vector.broadcast %81 : vector<1x256xf32> to vector<8x256xf32>
    %83 = arith.mulf %80, %82 : vector<8x256xf32>
    %84 = arith.addf %76, %83 : vector<8x256xf32>
    %c0_49 = arith.constant 0 : index
    %c16 = arith.constant 16 : index
    %85 = vector.load %arg11[%c0_49, %c16] : memref<16x290xf32, #tpu.memory_space<vmem>>, vector<16x256xf32>
    %c3 = arith.constant 3 : index
    %c0_50 = arith.constant 0 : index
    %c0_51 = arith.constant 0 : index
    %86 = vector.load %arg6[%c3, %c0_50, %c0_51] : memref<9x8x16xf32, #tpu.memory_space<vmem>>, vector<1x8x16xf32>
    %87 = vector.shape_cast %86 : vector<1x8x16xf32> to vector<8x16xf32>
    %cst_52 = arith.constant dense<0.000000e+00> : vector<8x256xf32>
    %88 = tpu.matmul %87, %85, %cst_52 {dimension_numbers = #tpu.dot_dimension_numbers<[1], [0], [0], [1], [0, 0, 1, 1], [], []>} : vector<8x16xf32>, vector<16x256xf32>, vector<8x256xf32> -> vector<8x256xf32>
    %89 = vector.extract_strided_slice %62 {offsets = [0, 0], sizes = [1, 256], strides = [1, 1]} : vector<3x256xf32> to vector<1x256xf32>
    %90 = vector.broadcast %89 : vector<1x256xf32> to vector<8x256xf32>
    %91 = arith.mulf %88, %90 : vector<8x256xf32>
    %92 = arith.addf %84, %91 : vector<8x256xf32>
    %c0_53 = arith.constant 0 : index
    %c17_54 = arith.constant 17 : index
    %93 = vector.load %arg11[%c0_53, %c17_54] : memref<16x290xf32, #tpu.memory_space<vmem>>, vector<16x256xf32>
    %c4 = arith.constant 4 : index
    %c0_55 = arith.constant 0 : index
    %c0_56 = arith.constant 0 : index
    %94 = vector.load %arg6[%c4, %c0_55, %c0_56] : memref<9x8x16xf32, #tpu.memory_space<vmem>>, vector<1x8x16xf32>
    %95 = vector.shape_cast %94 : vector<1x8x16xf32> to vector<8x16xf32>
    %cst_57 = arith.constant dense<0.000000e+00> : vector<8x256xf32>
    %96 = tpu.matmul %95, %93, %cst_57 {dimension_numbers = #tpu.dot_dimension_numbers<[1], [0], [0], [1], [0, 0, 1, 1], [], []>} : vector<8x16xf32>, vector<16x256xf32>, vector<8x256xf32> -> vector<8x256xf32>
    %97 = arith.addf %92, %96 : vector<8x256xf32>
    %c0_58 = arith.constant 0 : index
    %c18 = arith.constant 18 : index
    %98 = vector.load %arg11[%c0_58, %c18] : memref<16x290xf32, #tpu.memory_space<vmem>>, vector<16x256xf32>
    %c5 = arith.constant 5 : index
    %c0_59 = arith.constant 0 : index
    %c0_60 = arith.constant 0 : index
    %99 = vector.load %arg6[%c5, %c0_59, %c0_60] : memref<9x8x16xf32, #tpu.memory_space<vmem>>, vector<1x8x16xf32>
    %100 = vector.shape_cast %99 : vector<1x8x16xf32> to vector<8x16xf32>
    %cst_61 = arith.constant dense<0.000000e+00> : vector<8x256xf32>
    %101 = tpu.matmul %100, %98, %cst_61 {dimension_numbers = #tpu.dot_dimension_numbers<[1], [0], [0], [1], [0, 0, 1, 1], [], []>} : vector<8x16xf32>, vector<16x256xf32>, vector<8x256xf32> -> vector<8x256xf32>
    %102 = vector.extract_strided_slice %62 {offsets = [2, 0], sizes = [1, 256], strides = [1, 1]} : vector<3x256xf32> to vector<1x256xf32>
    %103 = vector.broadcast %102 : vector<1x256xf32> to vector<8x256xf32>
    %104 = arith.mulf %101, %103 : vector<8x256xf32>
    %105 = arith.addf %97, %104 : vector<8x256xf32>
    %c0_62 = arith.constant 0 : index
    %c32 = arith.constant 32 : index
    %106 = vector.load %arg11[%c0_62, %c32] : memref<16x290xf32, #tpu.memory_space<vmem>>, vector<16x256xf32>
    %c6 = arith.constant 6 : index
    %c0_63 = arith.constant 0 : index
    %c0_64 = arith.constant 0 : index
    %107 = vector.load %arg6[%c6, %c0_63, %c0_64] : memref<9x8x16xf32, #tpu.memory_space<vmem>>, vector<1x8x16xf32>
    %108 = vector.shape_cast %107 : vector<1x8x16xf32> to vector<8x16xf32>
    %cst_65 = arith.constant dense<0.000000e+00> : vector<8x256xf32>
    %109 = tpu.matmul %108, %106, %cst_65 {dimension_numbers = #tpu.dot_dimension_numbers<[1], [0], [0], [1], [0, 0, 1, 1], [], []>} : vector<8x16xf32>, vector<16x256xf32>, vector<8x256xf32> -> vector<8x256xf32>
    %110 = vector.extract_strided_slice %62 {offsets = [0, 0], sizes = [1, 256], strides = [1, 1]} : vector<3x256xf32> to vector<1x256xf32>
    %111 = vector.broadcast %110 : vector<1x256xf32> to vector<8x256xf32>
    %112 = arith.mulf %109, %111 : vector<8x256xf32>
    %113 = arith.addf %105, %112 : vector<8x256xf32>
    %c0_66 = arith.constant 0 : index
    %c33_67 = arith.constant 33 : index
    %114 = vector.load %arg11[%c0_66, %c33_67] : memref<16x290xf32, #tpu.memory_space<vmem>>, vector<16x256xf32>
    %c7 = arith.constant 7 : index
    %c0_68 = arith.constant 0 : index
    %c0_69 = arith.constant 0 : index
    %115 = vector.load %arg6[%c7, %c0_68, %c0_69] : memref<9x8x16xf32, #tpu.memory_space<vmem>>, vector<1x8x16xf32>
    %116 = vector.shape_cast %115 : vector<1x8x16xf32> to vector<8x16xf32>
    %cst_70 = arith.constant dense<0.000000e+00> : vector<8x256xf32>
    %117 = tpu.matmul %116, %114, %cst_70 {dimension_numbers = #tpu.dot_dimension_numbers<[1], [0], [0], [1], [0, 0, 1, 1], [], []>} : vector<8x16xf32>, vector<16x256xf32>, vector<8x256xf32> -> vector<8x256xf32>
    %118 = arith.addf %113, %117 : vector<8x256xf32>
    %c0_71 = arith.constant 0 : index
    %c34 = arith.constant 34 : index
    %119 = vector.load %arg11[%c0_71, %c34] : memref<16x290xf32, #tpu.memory_space<vmem>>, vector<16x256xf32>
    %c8_72 = arith.constant 8 : index
    %c0_73 = arith.constant 0 : index
    %c0_74 = arith.constant 0 : index
    %120 = vector.load %arg6[%c8_72, %c0_73, %c0_74] : memref<9x8x16xf32, #tpu.memory_space<vmem>>, vector<1x8x16xf32>
    %121 = vector.shape_cast %120 : vector<1x8x16xf32> to vector<8x16xf32>
    %cst_75 = arith.constant dense<0.000000e+00> : vector<8x256xf32>
    %122 = tpu.matmul %121, %119, %cst_75 {dimension_numbers = #tpu.dot_dimension_numbers<[1], [0], [0], [1], [0, 0, 1, 1], [], []>} : vector<8x16xf32>, vector<16x256xf32>, vector<8x256xf32> -> vector<8x256xf32>
    %123 = vector.extract_strided_slice %62 {offsets = [2, 0], sizes = [1, 256], strides = [1, 1]} : vector<3x256xf32> to vector<1x256xf32>
    %124 = vector.broadcast %123 : vector<1x256xf32> to vector<8x256xf32>
    %125 = arith.mulf %122, %124 : vector<8x256xf32>
    %126 = arith.addf %118, %125 : vector<8x256xf32>
    %c0_76 = arith.constant 0 : index
    %c0_77 = arith.constant 0 : index
    %127 = vector.load %arg7[%c0_76, %c0_77] : memref<8x1xf32, #tpu.memory_space<vmem>>, vector<8x1xf32>
    %128 = vector.broadcast %127 : vector<8x1xf32> to vector<8x256xf32>
    %129 = arith.addf %126, %128 : vector<8x256xf32>
    %cst_78 = arith.constant 0.000000e+00 : f32
    %130 = vector.broadcast %cst_78 : f32 to vector<8x256xf32>
    %131 = arith.maximumf %129, %130 : vector<8x256xf32>
    %cst_79 = arith.constant 0.000000e+00 : f32
    %132 = vector.broadcast %cst_79 : f32 to vector<8x290xf32>
    %c0_80 = arith.constant 0 : index
    %c0_81 = arith.constant 0 : index
    %133 = vector.load %arg12[%c0_80, %c0_81] : memref<8x290xf32, #tpu.memory_space<vmem>>, vector<8x290xf32>
    tpu.vector_store %arg12[%c0_80, %c0_81], %132 {strides = array<i32>} : memref<8x290xf32, #tpu.memory_space<vmem>>, vector<8x290xf32>,
    %c0_82 = arith.constant 0 : index
    %c17_83 = arith.constant 17 : index
    %134 = vector.load %arg12[%c0_82, %c17_83] : memref<8x290xf32, #tpu.memory_space<vmem>>, vector<8x256xf32>
    tpu.vector_store %arg12[%c0_82, %c17_83], %131 {strides = array<i32>} : memref<8x290xf32, #tpu.memory_space<vmem>>, vector<8x256xf32>,
    %cst_84 = arith.constant 0.000000e+00 : f32
    %135 = vector.broadcast %cst_84 : f32 to vector<8x256xf32>
    %c0_85 = arith.constant 0 : index
    %c0_86 = arith.constant 0 : index
    %136 = vector.load %arg12[%c0_85, %c0_86] : memref<8x290xf32, #tpu.memory_space<vmem>>, vector<8x256xf32>
    %c0_87 = arith.constant 0 : index
    %c0_88 = arith.constant 0 : index
    %c0_89 = arith.constant 0 : index
    %137 = vector.load %arg8[%c0_87, %c0_88, %c0_89] : memref<9x8x8xf32, #tpu.memory_space<vmem>>, vector<1x8x8xf32>
    %138 = vector.shape_cast %137 : vector<1x8x8xf32> to vector<8x8xf32>
    %cst_90 = arith.constant dense<0.000000e+00> : vector<8x256xf32>
    %139 = tpu.matmul %138, %136, %cst_90 {dimension_numbers = #tpu.dot_dimension_numbers<[1], [0], [0], [1], [0, 0, 1, 1], [], []>} : vector<8x8xf32>, vector<8x256xf32>, vector<8x256xf32> -> vector<8x256xf32>
    %140 = vector.extract_strided_slice %62 {offsets = [0, 0], sizes = [1, 256], strides = [1, 1]} : vector<3x256xf32> to vector<1x256xf32>
    %141 = vector.broadcast %140 : vector<1x256xf32> to vector<8x256xf32>
    %142 = arith.mulf %139, %141 : vector<8x256xf32>
    %143 = arith.addf %135, %142 : vector<8x256xf32>
    %c0_91 = arith.constant 0 : index
    %c1_92 = arith.constant 1 : index
    %144 = vector.load %arg12[%c0_91, %c1_92] : memref<8x290xf32, #tpu.memory_space<vmem>>, vector<8x256xf32>
    %c1_93 = arith.constant 1 : index
    %c0_94 = arith.constant 0 : index
    %c0_95 = arith.constant 0 : index
    %145 = vector.load %arg8[%c1_93, %c0_94, %c0_95] : memref<9x8x8xf32, #tpu.memory_space<vmem>>, vector<1x8x8xf32>
    %146 = vector.shape_cast %145 : vector<1x8x8xf32> to vector<8x8xf32>
    %cst_96 = arith.constant dense<0.000000e+00> : vector<8x256xf32>
    %147 = tpu.matmul %146, %144, %cst_96 {dimension_numbers = #tpu.dot_dimension_numbers<[1], [0], [0], [1], [0, 0, 1, 1], [], []>} : vector<8x8xf32>, vector<8x256xf32>, vector<8x256xf32> -> vector<8x256xf32>
    %148 = arith.addf %143, %147 : vector<8x256xf32>
    %c0_97 = arith.constant 0 : index
    %c2_98 = arith.constant 2 : index
    %149 = vector.load %arg12[%c0_97, %c2_98] : memref<8x290xf32, #tpu.memory_space<vmem>>, vector<8x256xf32>
    %c2_99 = arith.constant 2 : index
    %c0_100 = arith.constant 0 : index
    %c0_101 = arith.constant 0 : index
    %150 = vector.load %arg8[%c2_99, %c0_100, %c0_101] : memref<9x8x8xf32, #tpu.memory_space<vmem>>, vector<1x8x8xf32>
    %151 = vector.shape_cast %150 : vector<1x8x8xf32> to vector<8x8xf32>
    %cst_102 = arith.constant dense<0.000000e+00> : vector<8x256xf32>
    %152 = tpu.matmul %151, %149, %cst_102 {dimension_numbers = #tpu.dot_dimension_numbers<[1], [0], [0], [1], [0, 0, 1, 1], [], []>} : vector<8x8xf32>, vector<8x256xf32>, vector<8x256xf32> -> vector<8x256xf32>
    %153 = vector.extract_strided_slice %62 {offsets = [2, 0], sizes = [1, 256], strides = [1, 1]} : vector<3x256xf32> to vector<1x256xf32>
    %154 = vector.broadcast %153 : vector<1x256xf32> to vector<8x256xf32>
    %155 = arith.mulf %152, %154 : vector<8x256xf32>
    %156 = arith.addf %148, %155 : vector<8x256xf32>
    %c0_103 = arith.constant 0 : index
    %c16_104 = arith.constant 16 : index
    %157 = vector.load %arg12[%c0_103, %c16_104] : memref<8x290xf32, #tpu.memory_space<vmem>>, vector<8x256xf32>
    %c3_105 = arith.constant 3 : index
    %c0_106 = arith.constant 0 : index
    %c0_107 = arith.constant 0 : index
    %158 = vector.load %arg8[%c3_105, %c0_106, %c0_107] : memref<9x8x8xf32, #tpu.memory_space<vmem>>, vector<1x8x8xf32>
    %159 = vector.shape_cast %158 : vector<1x8x8xf32> to vector<8x8xf32>
    %cst_108 = arith.constant dense<0.000000e+00> : vector<8x256xf32>
    %160 = tpu.matmul %159, %157, %cst_108 {dimension_numbers = #tpu.dot_dimension_numbers<[1], [0], [0], [1], [0, 0, 1, 1], [], []>} : vector<8x8xf32>, vector<8x256xf32>, vector<8x256xf32> -> vector<8x256xf32>
    %161 = vector.extract_strided_slice %62 {offsets = [0, 0], sizes = [1, 256], strides = [1, 1]} : vector<3x256xf32> to vector<1x256xf32>
    %162 = vector.broadcast %161 : vector<1x256xf32> to vector<8x256xf32>
    %163 = arith.mulf %160, %162 : vector<8x256xf32>
    %164 = arith.addf %156, %163 : vector<8x256xf32>
    %c0_109 = arith.constant 0 : index
    %c17_110 = arith.constant 17 : index
    %165 = vector.load %arg12[%c0_109, %c17_110] : memref<8x290xf32, #tpu.memory_space<vmem>>, vector<8x256xf32>
    %c4_111 = arith.constant 4 : index
    %c0_112 = arith.constant 0 : index
    %c0_113 = arith.constant 0 : index
    %166 = vector.load %arg8[%c4_111, %c0_112, %c0_113] : memref<9x8x8xf32, #tpu.memory_space<vmem>>, vector<1x8x8xf32>
    %167 = vector.shape_cast %166 : vector<1x8x8xf32> to vector<8x8xf32>
    %cst_114 = arith.constant dense<0.000000e+00> : vector<8x256xf32>
    %168 = tpu.matmul %167, %165, %cst_114 {dimension_numbers = #tpu.dot_dimension_numbers<[1], [0], [0], [1], [0, 0, 1, 1], [], []>} : vector<8x8xf32>, vector<8x256xf32>, vector<8x256xf32> -> vector<8x256xf32>
    %169 = arith.addf %164, %168 : vector<8x256xf32>
    %c0_115 = arith.constant 0 : index
    %c18_116 = arith.constant 18 : index
    %170 = vector.load %arg12[%c0_115, %c18_116] : memref<8x290xf32, #tpu.memory_space<vmem>>, vector<8x256xf32>
    %c5_117 = arith.constant 5 : index
    %c0_118 = arith.constant 0 : index
    %c0_119 = arith.constant 0 : index
    %171 = vector.load %arg8[%c5_117, %c0_118, %c0_119] : memref<9x8x8xf32, #tpu.memory_space<vmem>>, vector<1x8x8xf32>
    %172 = vector.shape_cast %171 : vector<1x8x8xf32> to vector<8x8xf32>
    %cst_120 = arith.constant dense<0.000000e+00> : vector<8x256xf32>
    %173 = tpu.matmul %172, %170, %cst_120 {dimension_numbers = #tpu.dot_dimension_numbers<[1], [0], [0], [1], [0, 0, 1, 1], [], []>} : vector<8x8xf32>, vector<8x256xf32>, vector<8x256xf32> -> vector<8x256xf32>
    %174 = vector.extract_strided_slice %62 {offsets = [2, 0], sizes = [1, 256], strides = [1, 1]} : vector<3x256xf32> to vector<1x256xf32>
    %175 = vector.broadcast %174 : vector<1x256xf32> to vector<8x256xf32>
    %176 = arith.mulf %173, %175 : vector<8x256xf32>
    %177 = arith.addf %169, %176 : vector<8x256xf32>
    %c0_121 = arith.constant 0 : index
    %c32_122 = arith.constant 32 : index
    %178 = vector.load %arg12[%c0_121, %c32_122] : memref<8x290xf32, #tpu.memory_space<vmem>>, vector<8x256xf32>
    %c6_123 = arith.constant 6 : index
    %c0_124 = arith.constant 0 : index
    %c0_125 = arith.constant 0 : index
    %179 = vector.load %arg8[%c6_123, %c0_124, %c0_125] : memref<9x8x8xf32, #tpu.memory_space<vmem>>, vector<1x8x8xf32>
    %180 = vector.shape_cast %179 : vector<1x8x8xf32> to vector<8x8xf32>
    %cst_126 = arith.constant dense<0.000000e+00> : vector<8x256xf32>
    %181 = tpu.matmul %180, %178, %cst_126 {dimension_numbers = #tpu.dot_dimension_numbers<[1], [0], [0], [1], [0, 0, 1, 1], [], []>} : vector<8x8xf32>, vector<8x256xf32>, vector<8x256xf32> -> vector<8x256xf32>
    %182 = vector.extract_strided_slice %62 {offsets = [0, 0], sizes = [1, 256], strides = [1, 1]} : vector<3x256xf32> to vector<1x256xf32>
    %183 = vector.broadcast %182 : vector<1x256xf32> to vector<8x256xf32>
    %184 = arith.mulf %181, %183 : vector<8x256xf32>
    %185 = arith.addf %177, %184 : vector<8x256xf32>
    %c0_127 = arith.constant 0 : index
    %c33_128 = arith.constant 33 : index
    %186 = vector.load %arg12[%c0_127, %c33_128] : memref<8x290xf32, #tpu.memory_space<vmem>>, vector<8x256xf32>
    %c7_129 = arith.constant 7 : index
    %c0_130 = arith.constant 0 : index
    %c0_131 = arith.constant 0 : index
    %187 = vector.load %arg8[%c7_129, %c0_130, %c0_131] : memref<9x8x8xf32, #tpu.memory_space<vmem>>, vector<1x8x8xf32>
    %188 = vector.shape_cast %187 : vector<1x8x8xf32> to vector<8x8xf32>
    %cst_132 = arith.constant dense<0.000000e+00> : vector<8x256xf32>
    %189 = tpu.matmul %188, %186, %cst_132 {dimension_numbers = #tpu.dot_dimension_numbers<[1], [0], [0], [1], [0, 0, 1, 1], [], []>} : vector<8x8xf32>, vector<8x256xf32>, vector<8x256xf32> -> vector<8x256xf32>
    %190 = arith.addf %185, %189 : vector<8x256xf32>
    %c0_133 = arith.constant 0 : index
    %c34_134 = arith.constant 34 : index
    %191 = vector.load %arg12[%c0_133, %c34_134] : memref<8x290xf32, #tpu.memory_space<vmem>>, vector<8x256xf32>
    %c8_135 = arith.constant 8 : index
    %c0_136 = arith.constant 0 : index
    %c0_137 = arith.constant 0 : index
    %192 = vector.load %arg8[%c8_135, %c0_136, %c0_137] : memref<9x8x8xf32, #tpu.memory_space<vmem>>, vector<1x8x8xf32>
    %193 = vector.shape_cast %192 : vector<1x8x8xf32> to vector<8x8xf32>
    %cst_138 = arith.constant dense<0.000000e+00> : vector<8x256xf32>
    %194 = tpu.matmul %193, %191, %cst_138 {dimension_numbers = #tpu.dot_dimension_numbers<[1], [0], [0], [1], [0, 0, 1, 1], [], []>} : vector<8x8xf32>, vector<8x256xf32>, vector<8x256xf32> -> vector<8x256xf32>
    %195 = vector.extract_strided_slice %62 {offsets = [2, 0], sizes = [1, 256], strides = [1, 1]} : vector<3x256xf32> to vector<1x256xf32>
    %196 = vector.broadcast %195 : vector<1x256xf32> to vector<8x256xf32>
    %197 = arith.mulf %194, %196 : vector<8x256xf32>
    %198 = arith.addf %190, %197 : vector<8x256xf32>
    %c0_139 = arith.constant 0 : index
    %c0_140 = arith.constant 0 : index
    %199 = vector.load %arg9[%c0_139, %c0_140] : memref<8x1xf32, #tpu.memory_space<vmem>>, vector<8x1xf32>
    %200 = vector.broadcast %199 : vector<8x1xf32> to vector<8x256xf32>
    %201 = arith.addf %198, %200 : vector<8x256xf32>
    %cst_141 = arith.constant 0.000000e+00 : f32
    %202 = vector.broadcast %cst_141 : f32 to vector<8x256xf32>
    %203 = arith.maximumf %201, %202 : vector<8x256xf32>
    %c0_142 = arith.constant 0 : index
    %c0_143 = arith.constant 0 : index
    %c0_144 = arith.constant 0 : index
    %204 = vector.load %arg10[%c0_142, %c0_143, %c0_144] : memref<1x8x256xf32, #tpu.memory_space<vmem>>, vector<1x8x256xf32>
    %205 = vector.shape_cast %204 : vector<1x8x256xf32> to vector<8x256xf32>
    %206 = vector.shape_cast %203 : vector<8x256xf32> to vector<1x8x256xf32>
    tpu.vector_store %arg10[%c0_142, %c0_143, %c0_144], %206 {strides = array<i32>} : memref<1x8x256xf32, #tpu.memory_space<vmem>>, vector<1x8x256xf32>,
    return
  }
  func.func @transform_0(%arg0: i32) -> (i32, i32, i32) {
    %c0_i32 = arith.constant 0 : i32
    %c0_i32_0 = arith.constant 0 : i32
    %c0_i32_1 = arith.constant 0 : i32
    return %arg0, %c0_i32, %c0_i32_0 : i32, i32, i32
  }
  func.func @transform_1(%arg0: i32) -> (i32, i32, i32) {
    %c0_i32 = arith.constant 0 : i32
    %c0_i32_0 = arith.constant 0 : i32
    %c0_i32_1 = arith.constant 0 : i32
    return %arg0, %c0_i32, %c0_i32_0 : i32, i32, i32
  }
  func.func @transform_2(%arg0: i32) -> (i32, i32) {
    %c0_i32 = arith.constant 0 : i32
    %c0_i32_0 = arith.constant 0 : i32
    %c0_i32_1 = arith.constant 0 : i32
    return %c0_i32, %c0_i32_0 : i32, i32
  }
  func.func @transform_3(%arg0: i32) -> (i32, i32) {
    %c0_i32 = arith.constant 0 : i32
    %c0_i32_0 = arith.constant 0 : i32
    %c0_i32_1 = arith.constant 0 : i32
    return %c0_i32, %c0_i32_0 : i32, i32
  }
  func.func @transform_4(%arg0: i32) -> (i32, i32) {
    %c0_i32 = arith.constant 0 : i32
    %c0_i32_0 = arith.constant 0 : i32
    %c0_i32_1 = arith.constant 0 : i32
    return %c0_i32, %c0_i32_0 : i32, i32
  }
  func.func @transform_5(%arg0: i32) -> (i32, i32, i32) {
    %c0_i32 = arith.constant 0 : i32
    %c0_i32_0 = arith.constant 0 : i32
    %c0_i32_1 = arith.constant 0 : i32
    %c0_i32_2 = arith.constant 0 : i32
    return %c0_i32, %c0_i32_0, %c0_i32_1 : i32, i32, i32
  }
  func.func @transform_6(%arg0: i32) -> (i32, i32) {
    %c0_i32 = arith.constant 0 : i32
    %c0_i32_0 = arith.constant 0 : i32
    %c0_i32_1 = arith.constant 0 : i32
    return %c0_i32, %c0_i32_0 : i32, i32
  }
  func.func @transform_7(%arg0: i32) -> (i32, i32, i32) {
    %c0_i32 = arith.constant 0 : i32
    %c0_i32_0 = arith.constant 0 : i32
    %c0_i32_1 = arith.constant 0 : i32
    %c0_i32_2 = arith.constant 0 : i32
    return %c0_i32, %c0_i32_0, %c0_i32_1 : i32, i32, i32
  }
  func.func @transform_8(%arg0: i32) -> (i32, i32) {
    %c0_i32 = arith.constant 0 : i32
    %c0_i32_0 = arith.constant 0 : i32
    %c0_i32_1 = arith.constant 0 : i32
    return %c0_i32, %c0_i32_0 : i32, i32
  }
  func.func @transform_9(%arg0: i32) -> (i32, i32, i32) {
    %c0_i32 = arith.constant 0 : i32
    %c0_i32_0 = arith.constant 0 : i32
    %c0_i32_1 = arith.constant 0 : i32
    return %arg0, %c0_i32, %c0_i32_0 : i32, i32, i32
  }
}

</mosaic_0001>

<llo_original>
// kernel: unet_up_forward.1
$region0: #{unet_up_forward.1}
  #allocation0 [shape = 'u32[]', space=smem, size = 0x4, offset = 0x4, fixed_abs, tag = 'smem constant byte address 0x4 - core index']
  #allocation1 [shape = 'u32[144,128]{1,0:T(1,128)}', space=vmem, size = 0x12000, scoped, tag = 'internal scratch']
  #allocation2 [shape = 'f32[16,290]{1,0:T(8,128)}', space=vmem, size = 0x6000, scoped, tag = 'scratch operand']
  #allocation3 [shape = 'f32[8,290]{1,0:T(8,128)}', space=vmem, size = 0x3000, scoped, tag = 'scratch operand']
  %s0 = inlined_call_operand.vmem [shape: f32[2,8,256], index: 0, kind: input, shape index: {}]
  %s1 = inlined_call_operand.vmem [shape: f32[2,64,8], index: 1, kind: input, shape index: {}]
  %s2 = inlined_call_operand.vmem [shape: f32[8,16], index: 2, kind: input, shape index: {}]
  %s3 = inlined_call_operand.vmem [shape: f32[16,8], index: 3, kind: input, shape index: {}]
  %s4 = inlined_call_operand.vmem [shape: f32[3,256], index: 4, kind: input, shape index: {}]
  %s5 = inlined_call_operand.vmem [shape: f32[9,8,16], index: 5, kind: input, shape index: {}]
  %s6 = inlined_call_operand.vmem [shape: f32[8,1], index: 6, kind: input, shape index: {}]
  %s7 = inlined_call_operand.vmem [shape: f32[9,8,8], index: 7, kind: input, shape index: {}]
  %s8 = inlined_call_operand.vmem [shape: f32[8,1], index: 8, kind: input, shape index: {}]
  %s9 = inlined_call_operand.vmem [shape: f32[2,8,256], index: 9, kind: output, shape index: {}]
  %s10 = sld [smem:[#allocation0]]
  $region69: #{unet_up_forward.1} parent=0
    _
  %s12 = ssub.s32 1, %s10
  %s13 = scalar_select 0, %s12, %s10
  loop: start=0, step=1, limit=4
  $region2: #{unet_up_forward.1} parent=0 // loop_pre_header
    _
  $region3: #{unet_up_forward.1} parent=0 // loop_header
    %s15 = sphi 0, %s19
    %p16 = scmp.ge.s32.totalorder %s15, 4
    %s25 = sphi 0, %s27
    %s28 = sphi 0, %s25
    %s29 = sphi 0, %s28
    %s45 = sphi 0, %s29
    %s51 = sphi 0, %s53
    %s54 = sphi 0, %s51
    %s55 = sphi 0, %s54
    %s71 = sphi 0, %s55
    %s75 = sphi 0, %s75
    %s77 = sphi 0, %s75
    %s78 = sphi 0, %s77
    %s92 = sphi 0, %s78
    %s96 = sphi 0, %s96
    %s98 = sphi 0, %s96
    %s99 = sphi 0, %s98
    %s113 = sphi 0, %s99
    %s117 = sphi 0, %s117
    %s119 = sphi 0, %s117
    %s120 = sphi 0, %s119
    %s134 = sphi 0, %s120
    %s138 = sphi 0, %s138
    %s140 = sphi 0, %s138
    %s141 = sphi 0, %s140
    %s155 = sphi 0, %s141
    %s159 = sphi 0, %s159
    %s161 = sphi 0, %s159
    %s162 = sphi 0, %s161
    %s176 = sphi 0, %s162
    %s180 = sphi 0, %s180
    %s182 = sphi 0, %s180
    %s183 = sphi 0, %s182
    %s197 = sphi 0, %s183
    %s201 = sphi 0, %s201
    %s203 = sphi 0, %s201
    %s204 = sphi 0, %s203
    %s218 = sphi 0, %s204
    %s224 = sphi 0, %s226
    %s227 = sphi 0, %s224
    %s228 = sphi 0, %s227
    %s244 = sphi 0, %s228
  $region4: #{unet_up_forward.1} parent=0 // loop_header_branch
    %18 = sbr.rel (%p16) target = $region8
  $region5: #{unet_up_forward.1} parent=0 // loop_body
    %s20 = ssub.s32 %s15, 1
    %s21 = ssub.s32 %s15, 2
    %s22 = sadd.s32 %s15, 1
    %s23 = ssub.s32 %s15, %s22
    %p24 = scmp.eq.s32.totalorder %s23, 0
    %s26 = sadd.s32 %s25, 1
    %s27 = scalar_select %p24, %s25, %s26
    %p30 = pneg %p24
    %p31 = scmp.eq.s32.totalorder %s15, 1
    %p32 = por %p30, %p31
    %p33 = scmp.ne.s32.totalorder %s25, %s28
    %p34 = scmp.eq.s32.totalorder %s15, 0
    %p35 = por %p33, %p34
    %p36 = scmp.ne.s32.totalorder %s25, %s28
    %p37 = scmp.eq.s32.totalorder %s20, 1
    %p38 = por %p36, %p37
    %p39 = scmp.ne.s32.totalorder %s28, %s29
    %p40 = scmp.eq.s32.totalorder %s20, 0
    %p41 = por %p39, %p40
    %p42 = scmp.ne.s32.totalorder %s28, %s29
    %p43 = scmp.eq.s32.totalorder %s21, 1
    %p44 = por %p42, %p43
    %p46 = scmp.ne.s32.totalorder %s29, %s45
    %p47 = scmp.eq.s32.totalorder %s21, 0
    %p48 = por %p46, %p47
    %s49 = ssub.s32 %s15, %s22
    %p50 = scmp.eq.s32.totalorder %s49, 0
    %s52 = sadd.s32 %s51, 1
    %s53 = scalar_select %p50, %s51, %s52
    %p56 = pneg %p50
    %p57 = scmp.eq.s32.totalorder %s15, 1
    %p58 = por %p56, %p57
    %p59 = scmp.ne.s32.totalorder %s51, %s54
    %p60 = scmp.eq.s32.totalorder %s15, 0
    %p61 = por %p59, %p60
    %p62 = scmp.ne.s32.totalorder %s51, %s54
    %p63 = scmp.eq.s32.totalorder %s20, 1
    %p64 = por %p62, %p63
    %p65 = scmp.ne.s32.totalorder %s54, %s55
    %p66 = scmp.eq.s32.totalorder %s20, 0
    %p67 = por %p65, %p66
    %p68 = scmp.ne.s32.totalorder %s54, %s55
    %p69 = scmp.eq.s32.totalorder %s21, 1
    %p70 = por %p68, %p69
    %p72 = scmp.ne.s32.totalorder %s55, %s71
    %p73 = scmp.eq.s32.totalorder %s21, 0
    %p74 = por %p72, %p73
    %s76 = sadd.s32 %s75, 1
    %p79 = scmp.eq.s32.totalorder %s15, 1
    %p80 = scmp.ne.s32.totalorder %s75, %s77
    %p81 = scmp.eq.s32.totalorder %s15, 0
    %p82 = por %p80, %p81
    %p83 = scmp.ne.s32.totalorder %s75, %s77
    %p84 = scmp.eq.s32.totalorder %s20, 1
    %p85 = por %p83, %p84
    %p86 = scmp.ne.s32.totalorder %s77, %s78
    %p87 = scmp.eq.s32.totalorder %s20, 0
    %p88 = por %p86, %p87
    %p89 = scmp.ne.s32.totalorder %s77, %s78
    %p90 = scmp.eq.s32.totalorder %s21, 1
    %p91 = por %p89, %p90
    %p93 = scmp.ne.s32.totalorder %s78, %s92
    %p94 = scmp.eq.s32.totalorder %s21, 0
    %p95 = por %p93, %p94
    %s97 = sadd.s32 %s96, 1
    %p100 = scmp.eq.s32.totalorder %s15, 1
    %p101 = scmp.ne.s32.totalorder %s96, %s98
    %p102 = scmp.eq.s32.totalorder %s15, 0
    %p103 = por %p101, %p102
    %p104 = scmp.ne.s32.totalorder %s96, %s98
    %p105 = scmp.eq.s32.totalorder %s20, 1
    %p106 = por %p104, %p105
    %p107 = scmp.ne.s32.totalorder %s98, %s99
    %p108 = scmp.eq.s32.totalorder %s20, 0
    %p109 = por %p107, %p108
    %p110 = scmp.ne.s32.totalorder %s98, %s99
    %p111 = scmp.eq.s32.totalorder %s21, 1
    %p112 = por %p110, %p111
    %p114 = scmp.ne.s32.totalorder %s99, %s113
    %p115 = scmp.eq.s32.totalorder %s21, 0
    %p116 = por %p114, %p115
    %s118 = sadd.s32 %s117, 1
    %p121 = scmp.eq.s32.totalorder %s15, 1
    %p122 = scmp.ne.s32.totalorder %s117, %s119
    %p123 = scmp.eq.s32.totalorder %s15, 0
    %p124 = por %p122, %p123
    %p125 = scmp.ne.s32.totalorder %s117, %s119
    %p126 = scmp.eq.s32.totalorder %s20, 1
    %p127 = por %p125, %p126
    %p128 = scmp.ne.s32.totalorder %s119, %s120
    %p129 = scmp.eq.s32.totalorder %s20, 0
    %p130 = por %p128, %p129
    %p131 = scmp.ne.s32.totalorder %s119, %s120
    %p132 = scmp.eq.s32.totalorder %s21, 1
    %p133 = por %p131, %p132
    %p135 = scmp.ne.s32.totalorder %s120, %s134
    %p136 = scmp.eq.s32.totalorder %s21, 0
    %p137 = por %p135, %p136
    %s139 = sadd.s32 %s138, 1
    %p142 = scmp.eq.s32.totalorder %s15, 1
    %p143 = scmp.ne.s32.totalorder %s138, %s140
    %p144 = scmp.eq.s32.totalorder %s15, 0
    %p145 = por %p143, %p144
    %p146 = scmp.ne.s32.totalorder %s138, %s140
    %p147 = scmp.eq.s32.totalorder %s20, 1
    %p148 = por %p146, %p147
    %p149 = scmp.ne.s32.totalorder %s140, %s141
    %p150 = scmp.eq.s32.totalorder %s20, 0
    %p151 = por %p149, %p150
    %p152 = scmp.ne.s32.totalorder %s140, %s141
    %p153 = scmp.eq.s32.totalorder %s21, 1
    %p154 = por %p152, %p153
    %p156 = scmp.ne.s32.totalorder %s141, %s155
    %p157 = scmp.eq.s32.totalorder %s21, 0
    %p158 = por %p156, %p157
    %s160 = sadd.s32 %s159, 1
    %p163 = scmp.eq.s32.totalorder %s15, 1
    %p164 = scmp.ne.s32.totalorder %s159, %s161
    %p165 = scmp.eq.s32.totalorder %s15, 0
    %p166 = por %p164, %p165
    %p167 = scmp.ne.s32.totalorder %s159, %s161
    %p168 = scmp.eq.s32.totalorder %s20, 1
    %p169 = por %p167, %p168
    %p170 = scmp.ne.s32.totalorder %s161, %s162
    %p171 = scmp.eq.s32.totalorder %s20, 0
    %p172 = por %p170, %p171
    %p173 = scmp.ne.s32.totalorder %s161, %s162
    %p174 = scmp.eq.s32.totalorder %s21, 1
    %p175 = por %p173, %p174
    %p177 = scmp.ne.s32.totalorder %s162, %s176
    %p178 = scmp.eq.s32.totalorder %s21, 0
    %p179 = por %p177, %p178
    %s181 = sadd.s32 %s180, 1
    %p184 = scmp.eq.s32.totalorder %s15, 1
    %p185 = scmp.ne.s32.totalorder %s180, %s182
    %p186 = scmp.eq.s32.totalorder %s15, 0
    %p187 = por %p185, %p186
    %p188 = scmp.ne.s32.totalorder %s180, %s182
    %p189 = scmp.eq.s32.totalorder %s20, 1
    %p190 = por %p188, %p189
    %p191 = scmp.ne.s32.totalorder %s182, %s183
    %p192 = scmp.eq.s32.totalorder %s20, 0
    %p193 = por %p191, %p192
    %p194 = scmp.ne.s32.totalorder %s182, %s183
    %p195 = scmp.eq.s32.totalorder %s21, 1
    %p196 = por %p194, %p195
    %p198 = scmp.ne.s32.totalorder %s183, %s197
    %p199 = scmp.eq.s32.totalorder %s21, 0
    %p200 = por %p198, %p199
    %s202 = sadd.s32 %s201, 1
    %p205 = scmp.eq.s32.totalorder %s15, 1
    %p206 = scmp.ne.s32.totalorder %s201, %s203
    %p207 = scmp.eq.s32.totalorder %s15, 0
    %p208 = por %p206, %p207
    %p209 = scmp.ne.s32.totalorder %s201, %s203
    %p210 = scmp.eq.s32.totalorder %s20, 1
    %p211 = por %p209, %p210
    %p212 = scmp.ne.s32.totalorder %s203, %s204
    %p213 = scmp.eq.s32.totalorder %s20, 0
    %p214 = por %p212, %p213
    %p215 = scmp.ne.s32.totalorder %s203, %s204
    %p216 = scmp.eq.s32.totalorder %s21, 1
    %p217 = por %p215, %p216
    %p219 = scmp.ne.s32.totalorder %s204, %s218
    %p220 = scmp.eq.s32.totalorder %s21, 0
    %p221 = por %p219, %p220
    %s222 = ssub.s32 %s15, %s22
    %p223 = scmp.eq.s32.totalorder %s222, 0
    %s225 = sadd.s32 %s224, 1
    %s226 = scalar_select %p223, %s224, %s225
    %p229 = pneg %p223
    %p230 = scmp.eq.s32.totalorder %s15, 1
    %p231 = por %p229, %p230
    %p232 = scmp.ne.s32.totalorder %s224, %s227
    %p233 = scmp.eq.s32.totalorder %s15, 0
    %p234 = por %p232, %p233
    %p235 = scmp.ne.s32.totalorder %s224, %s227
    %p236 = scmp.eq.s32.totalorder %s20, 1
    %p237 = por %p235, %p236
    %p238 = scmp.ne.s32.totalorder %s227, %s228
    %p239 = scmp.eq.s32.totalorder %s20, 0
    %p240 = por %p238, %p239
    %p241 = scmp.ne.s32.totalorder %s227, %s228
    %p242 = scmp.eq.s32.totalorder %s21, 1
    %p243 = por %p241, %p242
    %p245 = scmp.ne.s32.totalorder %s228, %s244
    %p246 = scmp.eq.s32.totalorder %s21, 0
    %p247 = por %p245, %p246
    %p248 = scmp.le.s32.totalorder 1, %s15
    %p249 = scmp.lt.s32.totalorder %s15, 3
    %p250 = pnand %p248, %p249
    %p251 = pneg %p250
    // Predicated region
    $region9: #{unet_up_forward.1} parent=5 // pred_check
      _
    $region10: #{unet_up_forward.1} parent=5 // pred_check_branch
      %253 = sbr.rel (%p250) target = $region12
    $region11: #{unet_up_forward.1} parent=5 // pred_region
      %s254 = ssub.s32 %s15, 1
      // Predicated region
      $region13: #{unet_up_forward.1} parent=11 // pred_check
        %p255 = pneg %p88
      $region14: #{unet_up_forward.1} parent=11 // pred_check_branch
        %257 = sbr.rel (%p255) target = $region16
      $region15: #{unet_up_forward.1} parent=11 // pred_region
        _
      $region16: #{unet_up_forward.1} parent=11 // pred_fallthru
        _
      // Predicated region
      $region17: #{unet_up_forward.1} parent=11 // pred_check
        %p258 = pneg %p109
      $region18: #{unet_up_forward.1} parent=11 // pred_check_branch
        %260 = sbr.rel (%p258) target = $region20
      $region19: #{unet_up_forward.1} parent=11 // pred_region
        _
      $region20: #{unet_up_forward.1} parent=11 // pred_fallthru
        _
      // Predicated region
      $region21: #{unet_up_forward.1} parent=11 // pred_check
        %p261 = pneg %p130
      $region22: #{unet_up_forward.1} parent=11 // pred_check_branch
        %263 = sbr.rel (%p261) target = $region24
      $region23: #{unet_up_forward.1} parent=11 // pred_region
        _
      $region24: #{unet_up_forward.1} parent=11 // pred_fallthru
        _
      // Predicated region
      $region25: #{unet_up_forward.1} parent=11 // pred_check
        %p264 = pneg %p151
      $region26: #{unet_up_forward.1} parent=11 // pred_check_branch
        %266 = sbr.rel (%p264) target = $region28
      $region27: #{unet_up_forward.1} parent=11 // pred_region
        _
      $region28: #{unet_up_forward.1} parent=11 // pred_fallthru
        _
      // Predicated region
      $region29: #{unet_up_forward.1} parent=11 // pred_check
        %p267 = pneg %p172
      $region30: #{unet_up_forward.1} parent=11 // pred_check_branch
        %269 = sbr.rel (%p267) target = $region32
      $region31: #{unet_up_forward.1} parent=11 // pred_region
        _
      $region32: #{unet_up_forward.1} parent=11 // pred_fallthru
        _
      // Predicated region
      $region33: #{unet_up_forward.1} parent=11 // pred_check
        %p270 = pneg %p193
      $region34: #{unet_up_forward.1} parent=11 // pred_check_branch
        %272 = sbr.rel (%p270) target = $region36
      $region35: #{unet_up_forward.1} parent=11 // pred_region
        _
      $region36: #{unet_up_forward.1} parent=11 // pred_fallthru
        _
      // Predicated region
      $region37: #{unet_up_forward.1} parent=11 // pred_check
        %p273 = pneg %p214
      $region38: #{unet_up_forward.1} parent=11 // pred_check_branch
        %275 = sbr.rel (%p273) target = $region40
      $region39: #{unet_up_forward.1} parent=11 // pred_region
        _
      $region40: #{unet_up_forward.1} parent=11 // pred_fallthru
        _
    $region12: #{unet_up_forward.1} parent=5 // pred_fallthru
      _
    %p276 = scmp.lt.s32.totalorder %s15, 2
    // Predicated region
    $region41: #{unet_up_forward.1} parent=5 // pred_check
      %p277 = pneg %p276
    $region42: #{unet_up_forward.1} parent=5 // pred_check_branch
      %279 = sbr.rel (%p277) target = $region44
    $region43: #{unet_up_forward.1} parent=5 // pred_region
      // Predicated region
      $region45: #{unet_up_forward.1} parent=43 // pred_check
        %p280 = pneg %p35
      $region46: #{unet_up_forward.1} parent=43 // pred_check_branch
        %282 = sbr.rel (%p280) target = $region48
      $region47: #{unet_up_forward.1} parent=43 // pred_region
        %p283 = scmp.lt.s32.totalorder %s15, 1
        %s284 = scalar_select %p283, %s15, 1
        %s285 = smul.addr %s284, 2
        %s286 = smul.addr %s285, 8
        %s287 = scalar_lea.vmem %s0, %s286
      $region48: #{unet_up_forward.1} parent=43 // pred_fallthru
        _
      // Predicated region
      $region49: #{unet_up_forward.1} parent=43 // pred_check
        %p288 = pneg %p61
      $region50: #{unet_up_forward.1} parent=43 // pred_check_branch
        %290 = sbr.rel (%p288) target = $region52
      $region51: #{unet_up_forward.1} parent=43 // pred_region
        %p291 = scmp.lt.s32.totalorder %s15, 1
        %s292 = scalar_select %p291, %s15, 1
        %s293 = smul.addr %s292, 8
        %s294 = smul.addr %s293, 8
        %s295 = scalar_lea.vmem %s1, %s294
      $region52: #{unet_up_forward.1} parent=43 // pred_fallthru
        _
    $region44: #{unet_up_forward.1} parent=5 // pred_fallthru
      _
    %p296 = scmp.le.s32.totalorder 1, %s15
    %p297 = scmp.lt.s32.totalorder %s15, 3
    %p298 = pnand %p296, %p297
    %p299 = pneg %p298
    // Predicated region
    $region53: #{unet_up_forward.1} parent=5 // pred_check
      _
    $region54: #{unet_up_forward.1} parent=5 // pred_check_branch
      %301 = sbr.rel (%p298) target = $region56
    $region55: #{unet_up_forward.1} parent=5 // pred_region
      %s302 = ssub.s32 %s15, 1
      %p303 = scmp.lt.s32.totalorder %s20, 1
      %s304 = scalar_select %p303, %s20, 1
      %s305 = smul.addr %s304, 2
      %s306 = smul.addr %s305, 8
      %s307 = scalar_lea.vmem %s0, %s306
      %p308 = pneg %p41
      %p309 = pneg %p38
      %p310 = scmp.lt.s32.totalorder %s20, 1
      %s311 = scalar_select %p310, %s20, 1
      %s312 = smul.addr %s311, 8
      %s313 = smul.addr %s312, 8
      %s314 = scalar_lea.vmem %s1, %s313
      %p315 = pneg %p67
      %p316 = pneg %p64
      %p317 = pneg %p88
      %p318 = pneg %p85
      %p319 = pneg %p109
      %p320 = pneg %p106
      %p321 = pneg %p130
      %p322 = pneg %p127
      %p323 = pneg %p151
      %p324 = pneg %p148
      %p325 = pneg %p172
      %p326 = pneg %p169
      %p327 = pneg %p193
      %p328 = pneg %p190
      %p329 = pneg %p214
      %p330 = pneg %p211
      %p331 = pneg %p240
      %p332 = pneg %p237
      %p333 = scmp.lt.s32.totalorder %s20, 1
      %s334 = scalar_select %p333, %s20, 1
      %s335 = smul.addr %s334, 2
      %s336 = smul.addr %s335, 8
      %s337 = scalar_lea.vmem %s9, %s336
      %p338 = scmp.lt.s32.totalorder %s20, 1
      %s339 = scalar_select %p338, %s20, 1
      %s340 = smul.addr %s339, 2
      %s341 = smul.addr %s340, 8
      %s342 = scalar_lea.vmem %s0, %s341
      %p343 = scmp.lt.s32.totalorder %s20, 1
      %s344 = scalar_select %p343, %s20, 1
      %s345 = smul.addr %s344, 8
      %s346 = smul.addr %s345, 8
      %s347 = scalar_lea.vmem %s1, %s346
      %p348 = scmp.lt.s32.totalorder %s20, 1
      %s349 = scalar_select %p348, %s20, 1
      %s350 = smul.addr %s349, 2
      %s351 = smul.addr %s350, 8
      %s352 = scalar_lea.vmem %s9, %s351
      %v353 = vld [vmem:[%s347] sm:$0xff]
      %v354 = vld [vmem:[%s347 + $0x8] sm:$0xff]
      %v355 = vld [vmem:[%s347 + $0x10] sm:$0xff]
      %v356 = vld [vmem:[%s347 + $0x18] sm:$0xff]
      %v357 = vld [vmem:[%s347 + $0x20] sm:$0xff]
      %v358 = vld [vmem:[%s347 + $0x28] sm:$0xff]
      %v359 = vld [vmem:[%s347 + $0x30] sm:$0xff]
      %v360 = vld [vmem:[%s347 + $0x38] sm:$0xff]
      %v361 = vld [vmem:[%s2] sm:$0xff]
      %vm362 = vcmask 64512
      %v364 = vsel %vm362, %v353, 0
      %v367 = vsel %vm362, %v354, 0
      %v370 = vsel %vm362, %v355, 0
      %v373 = vsel %vm362, %v356, 0
      %v376 = vsel %vm362, %v357, 0
      %v379 = vsel %vm362, %v358, 0
      %v382 = vsel %vm362, %v359, 0
      %v385 = vsel %vm362, %v360, 0
      %387 = vmatprep.subr.mxu0 0.0
      %388 = vmatpush1.msra.mxu0 %v361
      %389 = vmatprep.subr.mxu0 0.0
      %390 = vmatpush1.msra.mxu0 0.0
      %391 = vmatprep.subr.mxu0 0.0
      %392 = vmatpush1.msra.mxu0 0.0
      %393 = vmatprep.subr.mxu0 0.0
      %394 = vmatpush1.msra.mxu0 0.0
      %395 = vmatprep.subr.mxu0 0.0
      %396 = vmatpush1.msra.mxu0 0.0
      %397 = vmatprep.subr.mxu0 0.0
      %398 = vmatpush1.msra.mxu0 0.0
      %399 = vmatprep.subr.mxu0 0.0
      %400 = vmatpush1.msra.mxu0 0.0
      %401 = vmatprep.subr.mxu0 0.0
      %402 = vmatpush1.msra.mxu0 0.0
      %403 = vmatprep.subr.mxu0 0.0
      %404 = vmatpush1.msra.mxu0 0.0
      %405 = vmatprep.subr.mxu0 0.0
      %406 = vmatpush1.msra.mxu0 0.0
      %407 = vmatprep.subr.mxu0 0.0
      %408 = vmatpush1.msra.mxu0 0.0
      %409 = vmatprep.subr.mxu0 0.0
      %410 = vmatpush1.msra.mxu0 0.0
      %411 = vmatprep.subr.mxu0 0.0
      %412 = vmatpush1.msra.mxu0 0.0
      %413 = vmatprep.subr.mxu0 0.0
      %414 = vmatpush1.msra.mxu0 0.0
      %415 = vmatprep.subr.mxu0 0.0
      %416 = vmatpush1.msra.mxu0 0.0
      %417 = vmatprep.subr.mxu0 0.0
      %418 = vmatpush1.msra.mxu0 0.0
      %419 = vmatprep.subr.mxu0 0.0
      %420 = vmatpush1.msra.mxu0 0.0
      %421 = vmatprep.subr.mxu0 0.0
      %422 = vmatpush1.msra.mxu0 0.0
      %423 = vmatprep.subr.mxu0 0.0
      %424 = vmatpush1.msra.mxu0 0.0
      %425 = vmatprep.subr.mxu0 0.0
      %426 = vmatpush1.msra.mxu0 0.0
      %427 = vmatprep.subr.mxu0 0.0
      %428 = vmatpush1.msra.mxu0 0.0
      %429 = vmatprep.subr.mxu0 0.0
      %430 = vmatpush1.msra.mxu0 0.0
      %431 = vmatprep.subr.mxu0 0.0
      %432 = vmatpush1.msra.mxu0 0.0
      %433 = vmatprep.subr.mxu0 0.0
      %434 = vmatpush1.msra.mxu0 0.0
      %435 = vmatprep.subr.mxu0 0.0
      %436 = vmatpush1.msra.mxu0 0.0
      %437 = vmatprep.subr.mxu0 0.0
      %438 = vmatpush1.msra.mxu0 0.0
      %439 = vmatprep.subr.mxu0 0.0
      %440 = vmatpush1.msra.mxu0 0.0
      %441 = vmatprep.subr.mxu0 0.0
      %442 = vmatpush1.msra.mxu0 0.0
      %443 = vmatprep.subr.mxu0 0.0
      %444 = vmatpush1.msra.mxu0 0.0
      %445 = vmatprep.subr.mxu0 0.0
      %446 = vmatpush1.msra.mxu0 0.0
      %447 = vmatprep.subr.mxu0 0.0
      %448 = vmatpush1.msra.mxu0 0.0
      %449 = vmatprep.subr.mxu0 0.0
      %450 = vmatpush1.msra.mxu0 0.0
      %451 = vmatprep.mubr.f32.mxu0 0.0
      %452 = vmatmul.mubr.f32.gmra.mrb[0].mxu0 %v364
      %v453 = vpop.f32.mrb[0].mxu0
      %v454 = vadd.f32 0.0, %v453
      %v455 = vpop.f32.mrb[0].mxu0
      %456 = vmatprep.mubr.f32.mxu0 0.0
      %457 = vmatmul.mubr.f32.gmra.mrb[0].mxu0 %v367
      %v458 = vpop.f32.mrb[0].mxu0
      %v459 = vadd.f32 0.0, %v458
      %v460 = vpop.f32.mrb[0].mxu0
      %461 = vmatprep.mubr.f32.mxu0 0.0
      %462 = vmatmul.mubr.f32.gmra.mrb[0].mxu0 %v370
      %v463 = vpop.f32.mrb[0].mxu0
      %v464 = vadd.f32 0.0, %v463
      %v465 = vpop.f32.mrb[0].mxu0
      %466 = vmatprep.mubr.f32.mxu0 0.0
      %467 = vmatmul.mubr.f32.gmra.mrb[0].mxu0 %v373
      %v468 = vpop.f32.mrb[0].mxu0
      %v469 = vadd.f32 0.0, %v468
      %v470 = vpop.f32.mrb[0].mxu0
      %471 = vmatprep.mubr.f32.mxu0 0.0
      %472 = vmatmul.mubr.f32.gmra.mrb[0].mxu0 %v376
      %v473 = vpop.f32.mrb[0].mxu0
      %v474 = vadd.f32 0.0, %v473
      %v475 = vpop.f32.mrb[0].mxu0
      %476 = vmatprep.mubr.f32.mxu0 0.0
      %477 = vmatmul.mubr.f32.gmra.mrb[0].mxu0 %v379
      %v478 = vpop.f32.mrb[0].mxu0
      %v479 = vadd.f32 0.0, %v478
      %v480 = vpop.f32.mrb[0].mxu0
      %481 = vmatprep.mubr.f32.mxu0 0.0
      %482 = vmatmul.mubr.f32.gmra.mrb[0].mxu0 %v382
      %v483 = vpop.f32.mrb[0].mxu0
      %v484 = vadd.f32 0.0, %v483
      %v485 = vpop.f32.mrb[0].mxu0
      %486 = vmatprep.mubr.f32.mxu0 0.0
      %487 = vmatmul.mubr.f32.gmra.mrb[0].mxu0 %v385
      %v488 = vpop.f32.mrb[0].mxu0
      %v489 = vadd.f32 0.0, %v488
      %v490 = vpop.f32.mrb[0].mxu0
      %491 = vdwg.mxu0
      %v492 = vld [vmem:[%s3] sm:$0xff]
      %v493 = vld [vmem:[%s3 + $0x8] sm:$0xff]
      %v495 = vsel %vm362, %v492, 0
      %v498 = vsel %vm362, %v493, 0
      %500 = vmatprep.subr.mxu0 0.0
      %501 = vmatpush1.msra.mxu0 %v454
      %502 = vmatprep.subr.mxu0 0.0
      %503 = vmatpush1.msra.mxu0 0.0
      %504 = vmatprep.subr.mxu0 0.0
      %505 = vmatpush1.msra.mxu0 0.0
      %506 = vmatprep.subr.mxu0 0.0
      %507 = vmatpush1.msra.mxu0 0.0
      %508 = vmatprep.subr.mxu0 0.0
      %509 = vmatpush1.msra.mxu0 0.0
      %510 = vmatprep.subr.mxu0 0.0
      %511 = vmatpush1.msra.mxu0 0.0
      %512 = vmatprep.subr.mxu0 0.0
      %513 = vmatpush1.msra.mxu0 0.0
      %514 = vmatprep.subr.mxu0 0.0
      %515 = vmatpush1.msra.mxu0 0.0
      %516 = vmatprep.subr.mxu0 0.0
      %517 = vmatpush1.msra.mxu0 0.0
      %518 = vmatprep.subr.mxu0 0.0
      %519 = vmatpush1.msra.mxu0 0.0
      %520 = vmatprep.subr.mxu0 0.0
      %521 = vmatpush1.msra.mxu0 0.0
      %522 = vmatprep.subr.mxu0 0.0
      %523 = vmatpush1.msra.mxu0 0.0
      %524 = vmatprep.subr.mxu0 0.0
      %525 = vmatpush1.msra.mxu0 0.0
      %526 = vmatprep.subr.mxu0 0.0
      %527 = vmatpush1.msra.mxu0 0.0
      %528 = vmatprep.subr.mxu0 0.0
      %529 = vmatpush1.msra.mxu0 0.0
      %530 = vmatprep.subr.mxu0 0.0
      %531 = vmatpush1.msra.mxu0 0.0
      %532 = vmatprep.subr.mxu0 0.0
      %533 = vmatpush1.msra.mxu0 0.0
      %534 = vmatprep.subr.mxu0 0.0
      %535 = vmatpush1.msra.mxu0 0.0
      %536 = vmatprep.subr.mxu0 0.0
      %537 = vmatpush1.msra.mxu0 0.0
      %538 = vmatprep.subr.mxu0 0.0
      %539 = vmatpush1.msra.mxu0 0.0
      %540 = vmatprep.subr.mxu0 0.0
      %541 = vmatpush1.msra.mxu0 0.0
      %542 = vmatprep.subr.mxu0 0.0
      %543 = vmatpush1.msra.mxu0 0.0
      %544 = vmatprep.subr.mxu0 0.0
      %545 = vmatpush1.msra.mxu0 0.0
      %546 = vmatprep.subr.mxu0 0.0
      %547 = vmatpush1.msra.mxu0 0.0
      %548 = vmatprep.subr.mxu0 0.0
      %549 = vmatpush1.msra.mxu0 0.0
      %550 = vmatprep.subr.mxu0 0.0
      %551 = vmatpush1.msra.mxu0 0.0
      %552 = vmatprep.subr.mxu0 0.0
      %553 = vmatpush1.msra.mxu0 0.0
      %554 = vmatprep.subr.mxu0 0.0
      %555 = vmatpush1.msra.mxu0 0.0
      %556 = vmatprep.subr.mxu0 0.0
      %557 = vmatpush1.msra.mxu0 0.0
      %558 = vmatprep.subr.mxu0 0.0
      %559 = vmatpush1.msra.mxu0 0.0
      %560 = vmatprep.subr.mxu0 0.0
      %561 = vmatpush1.msra.mxu0 0.0
      %562 = vmatprep.subr.mxu0 0.0
      %563 = vmatpush1.msra.mxu0 0.0
      %564 = vmatprep.mubr.f32.mxu0 0.0
      %565 = vmatmul.mubr.f32.gmra.mrb[0].mxu0 %v495
      %v566 = vpop.f32.mrb[0].mxu0
      %v567 = vadd.f32 0.0, %v566
      %v568 = vpop.f32.mrb[0].mxu0
      %569 = vmatprep.mubr.f32.mxu0 0.0
      %570 = vmatmul.mubr.f32.gmra.mrb[0].mxu0 %v498
      %v571 = vpop.f32.mrb[0].mxu0
      %v572 = vadd.f32 0.0, %v571
      %v573 = vpop.f32.mrb[0].mxu0
      %574 = vdwg.mxu0
      %575 = vmatprep.subr.mxu0 0.0
      %576 = vmatpush1.msra.mxu0 %v459
      %577 = vmatprep.subr.mxu0 0.0
      %578 = vmatpush1.msra.mxu0 0.0
      %579 = vmatprep.subr.mxu0 0.0
      %580 = vmatpush1.msra.mxu0 0.0
      %581 = vmatprep.subr.mxu0 0.0
      %582 = vmatpush1.msra.mxu0 0.0
      %583 = vmatprep.subr.mxu0 0.0
      %584 = vmatpush1.msra.mxu0 0.0
      %585 = vmatprep.subr.mxu0 0.0
      %586 = vmatpush1.msra.mxu0 0.0
      %587 = vmatprep.subr.mxu0 0.0
      %588 = vmatpush1.msra.mxu0 0.0
      %589 = vmatprep.subr.mxu0 0.0
      %590 = vmatpush1.msra.mxu0 0.0
      %591 = vmatprep.subr.mxu0 0.0
      %592 = vmatpush1.msra.mxu0 0.0
      %593 = vmatprep.subr.mxu0 0.0
      %594 = vmatpush1.msra.mxu0 0.0
      %595 = vmatprep.subr.mxu0 0.0
      %596 = vmatpush1.msra.mxu0 0.0
      %597 = vmatprep.subr.mxu0 0.0
      %598 = vmatpush1.msra.mxu0 0.0
      %599 = vmatprep.subr.mxu0 0.0
      %600 = vmatpush1.msra.mxu0 0.0
      %601 = vmatprep.subr.mxu0 0.0
      %602 = vmatpush1.msra.mxu0 0.0
      %603 = vmatprep.subr.mxu0 0.0
      %604 = vmatpush1.msra.mxu0 0.0
      %605 = vmatprep.subr.mxu0 0.0
      %606 = vmatpush1.msra.mxu0 0.0
      %607 = vmatprep.subr.mxu0 0.0
      %608 = vmatpush1.msra.mxu0 0.0
      %609 = vmatprep.subr.mxu0 0.0
      %610 = vmatpush1.msra.mxu0 0.0
      %611 = vmatprep.subr.mxu0 0.0
      %612 = vmatpush1.msra.mxu0 0.0
      %613 = vmatprep.subr.mxu0 0.0
      %614 = vmatpush1.msra.mxu0 0.0
      %615 = vmatprep.subr.mxu0 0.0
      %616 = vmatpush1.msra.mxu0 0.0
      %617 = vmatprep.subr.mxu0 0.0
      %618 = vmatpush1.msra.mxu0 0.0
      %619 = vmatprep.subr.mxu0 0.0
      %620 = vmatpush1.msra.mxu0 0.0
      %621 = vmatprep.subr.mxu0 0.0
      %622 = vmatpush1.msra.mxu0 0.0
      %623 = vmatprep.subr.mxu0 0.0
      %624 = vmatpush1.msra.mxu0 0.0
      %625 = vmatprep.subr.mxu0 0.0
      %626 = vmatpush1.msra.mxu0 0.0
      %627 = vmatprep.subr.mxu0 0.0
      %628 = vmatpush1.msra.mxu0 0.0
      %629 = vmatprep.subr.mxu0 0.0
      %630 = vmatpush1.msra.mxu0 0.0
      %631 = vmatprep.subr.mxu0 0.0
      %632 = vmatpush1.msra.mxu0 0.0
      %633 = vmatprep.subr.mxu0 0.0
      %634 = vmatpush1.msra.mxu0 0.0
      %635 = vmatprep.subr.mxu0 0.0
      %636 = vmatpush1.msra.mxu0 0.0
      %637 = vmatprep.subr.mxu0 0.0
      %638 = vmatpush1.msra.mxu0 0.0
      %639 = vmatprep.mubr.f32.mxu0 0.0
      %640 = vmatmul.mubr.f32.gmra.mrb[0].mxu0 %v495
      %v641 = vpop.f32.mrb[0].mxu0
      %v642 = vadd.f32 0.0, %v641
      %v643 = vpop.f32.mrb[0].mxu0
      %644 = vmatprep.mubr.f32.mxu0 0.0
      %645 = vmatmul.mubr.f32.gmra.mrb[0].mxu0 %v498
      %v646 = vpop.f32.mrb[0].mxu0
      %v647 = vadd.f32 0.0, %v646
      %v648 = vpop.f32.mrb[0].mxu0
      %649 = vdwg.mxu0
      %650 = vmatprep.subr.mxu0 0.0
      %651 = vmatpush1.msra.mxu0 %v464
      %652 = vmatprep.subr.mxu0 0.0
      %653 = vmatpush1.msra.mxu0 0.0
      %654 = vmatprep.subr.mxu0 0.0
      %655 = vmatpush1.msra.mxu0 0.0
      %656 = vmatprep.subr.mxu0 0.0
      %657 = vmatpush1.msra.mxu0 0.0
      %658 = vmatprep.subr.mxu0 0.0
      %659 = vmatpush1.msra.mxu0 0.0
      %660 = vmatprep.subr.mxu0 0.0
      %661 = vmatpush1.msra.mxu0 0.0
      %662 = vmatprep.subr.mxu0 0.0
      %663 = vmatpush1.msra.mxu0 0.0
      %664 = vmatprep.subr.mxu0 0.0
      %665 = vmatpush1.msra.mxu0 0.0
      %666 = vmatprep.subr.mxu0 0.0
      %667 = vmatpush1.msra.mxu0 0.0
      %668 = vmatprep.subr.mxu0 0.0
      %669 = vmatpush1.msra.mxu0 0.0
      %670 = vmatprep.subr.mxu0 0.0
      %671 = vmatpush1.msra.mxu0 0.0
      %672 = vmatprep.subr.mxu0 0.0
      %673 = vmatpush1.msra.mxu0 0.0
      %674 = vmatprep.subr.mxu0 0.0
      %675 = vmatpush1.msra.mxu0 0.0
      %676 = vmatprep.subr.mxu0 0.0
      %677 = vmatpush1.msra.mxu0 0.0
      %678 = vmatprep.subr.mxu0 0.0
      %679 = vmatpush1.msra.mxu0 0.0
      %680 = vmatprep.subr.mxu0 0.0
      %681 = vmatpush1.msra.mxu0 0.0
      %682 = vmatprep.subr.mxu0 0.0
      %683 = vmatpush1.msra.mxu0 0.0
      %684 = vmatprep.subr.mxu0 0.0
      %685 = vmatpush1.msra.mxu0 0.0
      %686 = vmatprep.subr.mxu0 0.0
      %687 = vmatpush1.msra.mxu0 0.0
      %688 = vmatprep.subr.mxu0 0.0
      %689 = vmatpush1.msra.mxu0 0.0
      %690 = vmatprep.subr.mxu0 0.0
      %691 = vmatpush1.msra.mxu0 0.0
      %692 = vmatprep.subr.mxu0 0.0
      %693 = vmatpush1.msra.mxu0 0.0
      %694 = vmatprep.subr.mxu0 0.0
      %695 = vmatpush1.msra.mxu0 0.0
      %696 = vmatprep.subr.mxu0 0.0
      %697 = vmatpush1.msra.mxu0 0.0
      %698 = vmatprep.subr.mxu0 0.0
      %699 = vmatpush1.msra.mxu0 0.0
      %700 = vmatprep.subr.mxu0 0.0
      %701 = vmatpush1.msra.mxu0 0.0
      %702 = vmatprep.subr.mxu0 0.0
      %703 = vmatpush1.msra.mxu0 0.0
      %704 = vmatprep.subr.mxu0 0.0
      %705 = vmatpush1.msra.mxu0 0.0
      %706 = vmatprep.subr.mxu0 0.0
      %707 = vmatpush1.msra.mxu0 0.0
      %708 = vmatprep.subr.mxu0 0.0
      %709 = vmatpush1.msra.mxu0 0.0
      %710 = vmatprep.subr.mxu0 0.0
      %711 = vmatpush1.msra.mxu0 0.0
      %712 = vmatprep.subr.mxu0 0.0
      %713 = vmatpush1.msra.mxu0 0.0
      %714 = vmatprep.mubr.f32.mxu0 0.0
      %715 = vmatmul.mubr.f32.gmra.mrb[0].mxu0 %v495
      %v716 = vpop.f32.mrb[0].mxu0
      %v717 = vadd.f32 0.0, %v716
      %v718 = vpop.f32.mrb[0].mxu0
      %719 = vmatprep.mubr.f32.mxu0 0.0
      %720 = vmatmul.mubr.f32.gmra.mrb[0].mxu0 %v498
      %v721 = vpop.f32.mrb[0].mxu0
      %v722 = vadd.f32 0.0, %v721
      %v723 = vpop.f32.mrb[0].mxu0
      %724 = vdwg.mxu0
      %725 = vmatprep.subr.mxu0 0.0
      %726 = vmatpush1.msra.mxu0 %v469
      %727 = vmatprep.subr.mxu0 0.0
      %728 = vmatpush1.msra.mxu0 0.0
      %729 = vmatprep.subr.mxu0 0.0
      %730 = vmatpush1.msra.mxu0 0.0
      %731 = vmatprep.subr.mxu0 0.0
      %732 = vmatpush1.msra.mxu0 0.0
      %733 = vmatprep.subr.mxu0 0.0
      %734 = vmatpush1.msra.mxu0 0.0
      %735 = vmatprep.subr.mxu0 0.0
      %736 = vmatpush1.msra.mxu0 0.0
      %737 = vmatprep.subr.mxu0 0.0
      %738 = vmatpush1.msra.mxu0 0.0
      %739 = vmatprep.subr.mxu0 0.0
      %740 = vmatpush1.msra.mxu0 0.0
      %741 = vmatprep.subr.mxu0 0.0
      %742 = vmatpush1.msra.mxu0 0.0
      %743 = vmatprep.subr.mxu0 0.0
      %744 = vmatpush1.msra.mxu0 0.0
      %745 = vmatprep.subr.mxu0 0.0
      %746 = vmatpush1.msra.mxu0 0.0
      %747 = vmatprep.subr.mxu0 0.0
      %748 = vmatpush1.msra.mxu0 0.0
      %749 = vmatprep.subr.mxu0 0.0
      %750 = vmatpush1.msra.mxu0 0.0
      %751 = vmatprep.subr.mxu0 0.0
      %752 = vmatpush1.msra.mxu0 0.0
      %753 = vmatprep.subr.mxu0 0.0
      %754 = vmatpush1.msra.mxu0 0.0
      %755 = vmatprep.subr.mxu0 0.0
      %756 = vmatpush1.msra.mxu0 0.0
      %757 = vmatprep.subr.mxu0 0.0
      %758 = vmatpush1.msra.mxu0 0.0
      %759 = vmatprep.subr.mxu0 0.0
      %760 = vmatpush1.msra.mxu0 0.0
      %761 = vmatprep.subr.mxu0 0.0
      %762 = vmatpush1.msra.mxu0 0.0
      %763 = vmatprep.subr.mxu0 0.0
      %764 = vmatpush1.msra.mxu0 0.0
      %765 = vmatprep.subr.mxu0 0.0
      %766 = vmatpush1.msra.mxu0 0.0
      %767 = vmatprep.subr.mxu0 0.0
      %768 = vmatpush1.msra.mxu0 0.0
      %769 = vmatprep.subr.mxu0 0.0
      %770 = vmatpush1.msra.mxu0 0.0
      %771 = vmatprep.subr.mxu0 0.0
      %772 = vmatpush1.msra.mxu0 0.0
      %773 = vmatprep.subr.mxu0 0.0
      %774 = vmatpush1.msra.mxu0 0.0
      %775 = vmatprep.subr.mxu0 0.0
      %776 = vmatpush1.msra.mxu0 0.0
      %777 = vmatprep.subr.mxu0 0.0
      %778 = vmatpush1.msra.mxu0 0.0
      %779 = vmatprep.subr.mxu0 0.0
      %780 = vmatpush1.msra.mxu0 0.0
      %781 = vmatprep.subr.mxu0 0.0
      %782 = vmatpush1.msra.mxu0 0.0
      %783 = vmatprep.subr.mxu0 0.0
      %784 = vmatpush1.msra.mxu0 0.0
      %785 = vmatprep.subr.mxu0 0.0
      %786 = vmatpush1.msra.mxu0 0.0
      %787 = vmatprep.subr.mxu0 0.0
      %788 = vmatpush1.msra.mxu0 0.0
      %789 = vmatprep.mubr.f32.mxu0 0.0
      %790 = vmatmul.mubr.f32.gmra.mrb[0].mxu0 %v495
      %v791 = vpop.f32.mrb[0].mxu0
      %v792 = vadd.f32 0.0, %v791
      %v793 = vpop.f32.mrb[0].mxu0
      %794 = vmatprep.mubr.f32.mxu0 0.0
      %795 = vmatmul.mubr.f32.gmra.mrb[0].mxu0 %v498
      %v796 = vpop.f32.mrb[0].mxu0
      %v797 = vadd.f32 0.0, %v796
      %v798 = vpop.f32.mrb[0].mxu0
      %799 = vdwg.mxu0
      %800 = vmatprep.subr.mxu0 0.0
      %801 = vmatpush1.msra.mxu0 %v474
      %802 = vmatprep.subr.mxu0 0.0
      %803 = vmatpush1.msra.mxu0 0.0
      %804 = vmatprep.subr.mxu0 0.0
      %805 = vmatpush1.msra.mxu0 0.0
      %806 = vmatprep.subr.mxu0 0.0
      %807 = vmatpush1.msra.mxu0 0.0
      %808 = vmatprep.subr.mxu0 0.0
      %809 = vmatpush1.msra.mxu0 0.0
      %810 = vmatprep.subr.mxu0 0.0
      %811 = vmatpush1.msra.mxu0 0.0
      %812 = vmatprep.subr.mxu0 0.0
      %813 = vmatpush1.msra.mxu0 0.0
      %814 = vmatprep.subr.mxu0 0.0
      %815 = vmatpush1.msra.mxu0 0.0
      %816 = vmatprep.subr.mxu0 0.0
      %817 = vmatpush1.msra.mxu0 0.0
      %818 = vmatprep.subr.mxu0 0.0
      %819 = vmatpush1.msra.mxu0 0.0
      %820 = vmatprep.subr.mxu0 0.0
      %821 = vmatpush1.msra.mxu0 0.0
      %822 = vmatprep.subr.mxu0 0.0
      %823 = vmatpush1.msra.mxu0 0.0
      %824 = vmatprep.subr.mxu0 0.0
      %825 = vmatpush1.msra.mxu0 0.0
      %826 = vmatprep.subr.mxu0 0.0
      %827 = vmatpush1.msra.mxu0 0.0
      %828 = vmatprep.subr.mxu0 0.0
      %829 = vmatpush1.msra.mxu0 0.0
      %830 = vmatprep.subr.mxu0 0.0
      %831 = vmatpush1.msra.mxu0 0.0
      %832 = vmatprep.subr.mxu0 0.0
      %833 = vmatpush1.msra.mxu0 0.0
      %834 = vmatprep.subr.mxu0 0.0
      %835 = vmatpush1.msra.mxu0 0.0
      %836 = vmatprep.subr.mxu0 0.0
      %837 = vmatpush1.msra.mxu0 0.0
      %838 = vmatprep.subr.mxu0 0.0
      %839 = vmatpush1.msra.mxu0 0.0
      %840 = vmatprep.subr.mxu0 0.0
      %841 = vmatpush1.msra.mxu0 0.0
      %842 = vmatprep.subr.mxu0 0.0
      %843 = vmatpush1.msra.mxu0 0.0
      %844 = vmatprep.subr.mxu0 0.0
      %845 = vmatpush1.msra.mxu0 0.0
      %846 = vmatprep.subr.mxu0 0.0
      %847 = vmatpush1.msra.mxu0 0.0
      %848 = vmatprep.subr.mxu0 0.0
      %849 = vmatpush1.msra.mxu0 0.0
      %850 = vmatprep.subr.mxu0 0.0
      %851 = vmatpush1.msra.mxu0 0.0
      %852 = vmatprep.subr.mxu0 0.0
      %853 = vmatpush1.msra.mxu0 0.0
      %854 = vmatprep.subr.mxu0 0.0
      %855 = vmatpush1.msra.mxu0 0.0
      %856 = vmatprep.subr.mxu0 0.0
      %857 = vmatpush1.msra.mxu0 0.0
      %858 = vmatprep.subr.mxu0 0.0
      %859 = vmatpush1.msra.mxu0 0.0
      %860 = vmatprep.subr.mxu0 0.0
      %861 = vmatpush1.msra.mxu0 0.0
      %862 = vmatprep.subr.mxu0 0.0
      %863 = vmatpush1.msra.mxu0 0.0
      %864 = vmatprep.mubr.f32.mxu0 0.0
      %865 = vmatmul.mubr.f32.gmra.mrb[0].mxu0 %v495
      %v866 = vpop.f32.mrb[0].mxu0
      %v867 = vadd.f32 0.0, %v866
      %v868 = vpop.f32.mrb[0].mxu0
      %869 = vmatprep.mubr.f32.mxu0 0.0
      %870 = vmatmul.mubr.f32.gmra.mrb[0].mxu0 %v498
      %v871 = vpop.f32.mrb[0].mxu0
      %v872 = vadd.f32 0.0, %v871
      %v873 = vpop.f32.mrb[0].mxu0
      %874 = vdwg.mxu0
      %875 = vmatprep.subr.mxu0 0.0
      %876 = vmatpush1.msra.mxu0 %v479
      %877 = vmatprep.subr.mxu0 0.0
      %878 = vmatpush1.msra.mxu0 0.0
      %879 = vmatprep.subr.mxu0 0.0
      %880 = vmatpush1.msra.mxu0 0.0
      %881 = vmatprep.subr.mxu0 0.0
      %882 = vmatpush1.msra.mxu0 0.0
      %883 = vmatprep.subr.mxu0 0.0
      %884 = vmatpush1.msra.mxu0 0.0
      %885 = vmatprep.subr.mxu0 0.0
      %886 = vmatpush1.msra.mxu0 0.0
      %887 = vmatprep.subr.mxu0 0.0
      %888 = vmatpush1.msra.mxu0 0.0
      %889 = vmatprep.subr.mxu0 0.0
      %890 = vmatpush1.msra.mxu0 0.0
      %891 = vmatprep.subr.mxu0 0.0
      %892 = vmatpush1.msra.mxu0 0.0
      %893 = vmatprep.subr.mxu0 0.0
      %894 = vmatpush1.msra.mxu0 0.0
      %895 = vmatprep.subr.mxu0 0.0
      %896 = vmatpush1.msra.mxu0 0.0
      %897 = vmatprep.subr.mxu0 0.0
      %898 = vmatpush1.msra.mxu0 0.0
      %899 = vmatprep.subr.mxu0 0.0
      %900 = vmatpush1.msra.mxu0 0.0
      %901 = vmatprep.subr.mxu0 0.0
      %902 = vmatpush1.msra.mxu0 0.0
      %903 = vmatprep.subr.mxu0 0.0
      %904 = vmatpush1.msra.mxu0 0.0
      %905 = vmatprep.subr.mxu0 0.0
      %906 = vmatpush1.msra.mxu0 0.0
      %907 = vmatprep.subr.mxu0 0.0
      %908 = vmatpush1.msra.mxu0 0.0
      %909 = vmatprep.subr.mxu0 0.0
      %910 = vmatpush1.msra.mxu0 0.0
      %911 = vmatprep.subr.mxu0 0.0
      %912 = vmatpush1.msra.mxu0 0.0
      %913 = vmatprep.subr.mxu0 0.0
      %914 = vmatpush1.msra.mxu0 0.0
      %915 = vmatprep.subr.mxu0 0.0
      %916 = vmatpush1.msra.mxu0 0.0
      %917 = vmatprep.subr.mxu0 0.0
      %918 = vmatpush1.msra.mxu0 0.0
      %919 = vmatprep.subr.mxu0 0.0
      %920 = vmatpush1.msra.mxu0 0.0
      %921 = vmatprep.subr.mxu0 0.0
      %922 = vmatpush1.msra.mxu0 0.0
      %923 = vmatprep.subr.mxu0 0.0
      %924 = vmatpush1.msra.mxu0 0.0
      %925 = vmatprep.subr.mxu0 0.0
      %926 = vmatpush1.msra.mxu0 0.0
      %927 = vmatprep.subr.mxu0 0.0
      %928 = vmatpush1.msra.mxu0 0.0
      %929 = vmatprep.subr.mxu0 0.0
      %930 = vmatpush1.msra.mxu0 0.0
      %931 = vmatprep.subr.mxu0 0.0
      %932 = vmatpush1.msra.mxu0 0.0
      %933 = vmatprep.subr.mxu0 0.0
      %934 = vmatpush1.msra.mxu0 0.0
      %935 = vmatprep.subr.mxu0 0.0
      %936 = vmatpush1.msra.mxu0 0.0
      %937 = vmatprep.subr.mxu0 0.0
      %938 = vmatpush1.msra.mxu0 0.0
      %939 = vmatprep.mubr.f32.mxu0 0.0
      %940 = vmatmul.mubr.f32.gmra.mrb[0].mxu0 %v495
      %v941 = vpop.f32.mrb[0].mxu0
      %v942 = vadd.f32 0.0, %v941
      %v943 = vpop.f32.mrb[0].mxu0
      %944 = vmatprep.mubr.f32.mxu0 0.0
      %945 = vmatmul.mubr.f32.gmra.mrb[0].mxu0 %v498
      %v946 = vpop.f32.mrb[0].mxu0
      %v947 = vadd.f32 0.0, %v946
      %v948 = vpop.f32.mrb[0].mxu0
      %949 = vdwg.mxu0
      %950 = vmatprep.subr.mxu0 0.0
      %951 = vmatpush1.msra.mxu0 %v484
      %952 = vmatprep.subr.mxu0 0.0
      %953 = vmatpush1.msra.mxu0 0.0
      %954 = vmatprep.subr.mxu0 0.0
      %955 = vmatpush1.msra.mxu0 0.0
      %956 = vmatprep.subr.mxu0 0.0
      %957 = vmatpush1.msra.mxu0 0.0
      %958 = vmatprep.subr.mxu0 0.0
      %959 = vmatpush1.msra.mxu0 0.0
      %960 = vmatprep.subr.mxu0 0.0
      %961 = vmatpush1.msra.mxu0 0.0
      %962 = vmatprep.subr.mxu0 0.0
      %963 = vmatpush1.msra.mxu0 0.0
      %964 = vmatprep.subr.mxu0 0.0
      %965 = vmatpush1.msra.mxu0 0.0
      %966 = vmatprep.subr.mxu0 0.0
      %967 = vmatpush1.msra.mxu0 0.0
      %968 = vmatprep.subr.mxu0 0.0
      %969 = vmatpush1.msra.mxu0 0.0
      %970 = vmatprep.subr.mxu0 0.0
      %971 = vmatpush1.msra.mxu0 0.0
      %972 = vmatprep.subr.mxu0 0.0
      %973 = vmatpush1.msra.mxu0 0.0
      %974 = vmatprep.subr.mxu0 0.0
      %975 = vmatpush1.msra.mxu0 0.0
      %976 = vmatprep.subr.mxu0 0.0
      %977 = vmatpush1.msra.mxu0 0.0
      %978 = vmatprep.subr.mxu0 0.0
      %979 = vmatpush1.msra.mxu0 0.0
      %980 = vmatprep.subr.mxu0 0.0
      %981 = vmatpush1.msra.mxu0 0.0
      %982 = vmatprep.subr.mxu0 0.0
      %983 = vmatpush1.msra.mxu0 0.0
      %984 = vmatprep.subr.mxu0 0.0
      %985 = vmatpush1.msra.mxu0 0.0
      %986 = vmatprep.subr.mxu0 0.0
      %987 = vmatpush1.msra.mxu0 0.0
      %988 = vmatprep.subr.mxu0 0.0
      %989 = vmatpush1.msra.mxu0 0.0
      %990 = vmatprep.subr.mxu0 0.0
      %991 = vmatpush1.msra.mxu0 0.0
      %992 = vmatprep.subr.mxu0 0.0
      %993 = vmatpush1.msra.mxu0 0.0
      %994 = vmatprep.subr.mxu0 0.0
      %995 = vmatpush1.msra.mxu0 0.0
      %996 = vmatprep.subr.mxu0 0.0
      %997 = vmatpush1.msra.mxu0 0.0
      %998 = vmatprep.subr.mxu0 0.0
      %999 = vmatpush1.msra.mxu0 0.0
      %1000 = vmatprep.subr.mxu0 0.0
      %1001 = vmatpush1.msra.mxu0 0.0
      %1002 = vmatprep.subr.mxu0 0.0
      %1003 = vmatpush1.msra.mxu0 0.0
      %1004 = vmatprep.subr.mxu0 0.0
      %1005 = vmatpush1.msra.mxu0 0.0
      %1006 = vmatprep.subr.mxu0 0.0
      %1007 = vmatpush1.msra.mxu0 0.0
      %1008 = vmatprep.subr.mxu0 0.0
      %1009 = vmatpush1.msra.mxu0 0.0
      %1010 = vmatprep.subr.mxu0 0.0
      %1011 = vmatpush1.msra.mxu0 0.0
      %1012 = vmatprep.subr.mxu0 0.0
      %1013 = vmatpush1.msra.mxu0 0.0
      %1014 = vmatprep.mubr.f32.mxu0 0.0
      %1015 = vmatmul.mubr.f32.gmra.mrb[0].mxu0 %v495
      %v1016 = vpop.f32.mrb[0].mxu0
      %v1017 = vadd.f32 0.0, %v1016
      %v1018 = vpop.f32.mrb[0].mxu0
      %1019 = vmatprep.mubr.f32.mxu0 0.0
      %1020 = vmatmul.mubr.f32.gmra.mrb[0].mxu0 %v498
      %v1021 = vpop.f32.mrb[0].mxu0
      %v1022 = vadd.f32 0.0, %v1021
      %v1023 = vpop.f32.mrb[0].mxu0
      %1024 = vdwg.mxu0
      %1025 = vmatprep.subr.mxu0 0.0
      %1026 = vmatpush1.msra.mxu0 %v489
      %1027 = vmatprep.subr.mxu0 0.0
      %1028 = vmatpush1.msra.mxu0 0.0
      %1029 = vmatprep.subr.mxu0 0.0
      %1030 = vmatpush1.msra.mxu0 0.0
      %1031 = vmatprep.subr.mxu0 0.0
      %1032 = vmatpush1.msra.mxu0 0.0
      %1033 = vmatprep.subr.mxu0 0.0
      %1034 = vmatpush1.msra.mxu0 0.0
      %1035 = vmatprep.subr.mxu0 0.0
      %1036 = vmatpush1.msra.mxu0 0.0
      %1037 = vmatprep.subr.mxu0 0.0
      %1038 = vmatpush1.msra.mxu0 0.0
      %1039 = vmatprep.subr.mxu0 0.0
      %1040 = vmatpush1.msra.mxu0 0.0
      %1041 = vmatprep.subr.mxu0 0.0
      %1042 = vmatpush1.msra.mxu0 0.0
      %1043 = vmatprep.subr.mxu0 0.0
      %1044 = vmatpush1.msra.mxu0 0.0
      %1045 = vmatprep.subr.mxu0 0.0
      %1046 = vmatpush1.msra.mxu0 0.0
      %1047 = vmatprep.subr.mxu0 0.0
      %1048 = vmatpush1.msra.mxu0 0.0
      %1049 = vmatprep.subr.mxu0 0.0
      %1050 = vmatpush1.msra.mxu0 0.0
      %1051 = vmatprep.subr.mxu0 0.0
      %1052 = vmatpush1.msra.mxu0 0.0
      %1053 = vmatprep.subr.mxu0 0.0
      %1054 = vmatpush1.msra.mxu0 0.0
      %1055 = vmatprep.subr.mxu0 0.0
      %1056 = vmatpush1.msra.mxu0 0.0
      %1057 = vmatprep.subr.mxu0 0.0
      %1058 = vmatpush1.msra.mxu0 0.0
      %1059 = vmatprep.subr.mxu0 0.0
      %1060 = vmatpush1.msra.mxu0 0.0
      %1061 = vmatprep.subr.mxu0 0.0
      %1062 = vmatpush1.msra.mxu0 0.0
      %1063 = vmatprep.subr.mxu0 0.0
      %1064 = vmatpush1.msra.mxu0 0.0
      %1065 = vmatprep.subr.mxu0 0.0
      %1066 = vmatpush1.msra.mxu0 0.0
      %1067 = vmatprep.subr.mxu0 0.0
      %1068 = vmatpush1.msra.mxu0 0.0
      %1069 = vmatprep.subr.mxu0 0.0
      %1070 = vmatpush1.msra.mxu0 0.0
      %1071 = vmatprep.subr.mxu0 0.0
      %1072 = vmatpush1.msra.mxu0 0.0
      %1073 = vmatprep.subr.mxu0 0.0
      %1074 = vmatpush1.msra.mxu0 0.0
      %1075 = vmatprep.subr.mxu0 0.0
      %1076 = vmatpush1.msra.mxu0 0.0
      %1077 = vmatprep.subr.mxu0 0.0
      %1078 = vmatpush1.msra.mxu0 0.0
      %1079 = vmatprep.subr.mxu0 0.0
      %1080 = vmatpush1.msra.mxu0 0.0
      %1081 = vmatprep.subr.mxu0 0.0
      %1082 = vmatpush1.msra.mxu0 0.0
      %1083 = vmatprep.subr.mxu0 0.0
      %1084 = vmatpush1.msra.mxu0 0.0
      %1085 = vmatprep.subr.mxu0 0.0
      %1086 = vmatpush1.msra.mxu0 0.0
      %1087 = vmatprep.subr.mxu0 0.0
      %1088 = vmatpush1.msra.mxu0 0.0
      %1089 = vmatprep.mubr.f32.mxu0 0.0
      %1090 = vmatmul.mubr.f32.gmra.mrb[0].mxu0 %v495
      %v1091 = vpop.f32.mrb[0].mxu0
      %v1092 = vadd.f32 0.0, %v1091
      %v1093 = vpop.f32.mrb[0].mxu0
      %1094 = vmatprep.mubr.f32.mxu0 0.0
      %1095 = vmatmul.mubr.f32.gmra.mrb[0].mxu0 %v498
      %v1096 = vpop.f32.mrb[0].mxu0
      %v1097 = vadd.f32 0.0, %v1096
      %v1098 = vpop.f32.mrb[0].mxu0
      %1099 = vdwg.mxu0
      %1100 = vst [vmem:[#allocation2] sm:$0xff] 0.0
      %1101 = vst [vmem:[#allocation2 + $0x8] sm:$0xff] 0.0
      %vm1102 = vcmask 277504
      %1103 = vst.msk [vmem:[#allocation2 + $0x10] sm:$0xff] %vm1102, 0.0
      %1104 = vst [vmem:[#allocation2 + $0x18] sm:$0xff] 0.0
      %1105 = vst [vmem:[#allocation2 + $0x20] sm:$0xff] 0.0
      %1106 = vst.msk [vmem:[#allocation2 + $0x28] sm:$0xff] %vm1102, 0.0
      %v1107 = vld [vmem:[%s342] sm:$0xff]
      %v1108 = vld [vmem:[%s342 + $0x8] sm:$0xff]
      %1111 = vrot.lane.b32.xlu0 %v1107, 17
      %v1112 = vpop.permute.xlu0 %1111
      %1113 = vrot.lane.b32.xlu0 %v1108, 17
      %v1114 = vpop.permute.xlu0 %1113
      %vm1115 = vcmask 138240
      %v1116 = vsel %vm1115, %v1112, %v1114
      %vm1120 = vcmask 1047688
      %1121 = vst.msk [vmem:[#allocation2] sm:$0xff] %vm1120, %v1112
      %1122 = vst [vmem:[#allocation2 + $0x8] sm:$0xff] %v1116
      %1123 = vst.msk [vmem:[#allocation2 + $0x10] sm:$0xff] %vm1115, %v1114
      %v1132 = vrot.slane %v642, 7
      %vm1133 = vcmask 1041409
      %v1134 = vsel %vm1133, %v1132, %v567
      %v1135 = vrot.slane %v717, 6
      %vm1136 = vcmask 1042434
      %v1137 = vsel %vm1136, %v1135, %v1134
      %v1138 = vrot.slane %v792, 5
      %vm1139 = vcmask 1043459
      %v1140 = vsel %vm1139, %v1138, %v1137
      %v1141 = vrot.slane %v867, 4
      %vm1142 = vcmask 1044484
      %v1143 = vsel %vm1142, %v1141, %v1140
      %v1144 = vrot.slane %v942, 3
      %vm1145 = vcmask 1045509
      %v1146 = vsel %vm1145, %v1144, %v1143
      %v1147 = vrot.slane %v1017, 2
      %vm1148 = vcmask 1046534
      %v1149 = vsel %vm1148, %v1147, %v1146
      %v1150 = vrot.slane %v1092, 1
      %vm1151 = vcmask 1047559
      %v1152 = vsel %vm1151, %v1150, %v1149
      %1153 = vrot.lane.b32.xlu0 %v1152, 17
      %v1154 = vpop.permute.xlu0 %1153
      %vm1156 = vcmask 269448
      %1157 = vst.msk [vmem:[#allocation2 + $0x18] sm:$0xff] %vm1156, %v1154
      %v1158 = vrot.slane %v567, 1
      %v1159 = vsel %vm1133, %v642, %v1158
      %v1160 = vrot.slane %v717, 7
      %v1161 = vsel %vm1136, %v1160, %v1159
      %v1162 = vrot.slane %v792, 6
      %v1163 = vsel %vm1139, %v1162, %v1161
      %v1164 = vrot.slane %v867, 5
      %v1165 = vsel %vm1142, %v1164, %v1163
      %v1166 = vrot.slane %v942, 4
      %v1167 = vsel %vm1145, %v1166, %v1165
      %v1168 = vrot.slane %v1017, 3
      %v1169 = vsel %vm1148, %v1168, %v1167
      %v1170 = vrot.slane %v1092, 2
      %v1171 = vsel %vm1151, %v1170, %v1169
      %1172 = vrot.lane.b32.xlu0 %v1171, 33
      %v1173 = vpop.permute.xlu0 %1172
      %vm1175 = vcmask 400648
      %1176 = vst.msk [vmem:[#allocation2 + $0x18] sm:$0xff] %vm1175, %v1173
      %v1177 = vrot.slane %v567, 2
      %v1178 = vrot.slane %v642, 1
      %v1179 = vsel %vm1133, %v1178, %v1177
      %v1180 = vsel %vm1136, %v717, %v1179
      %v1181 = vrot.slane %v792, 7
      %v1182 = vsel %vm1139, %v1181, %v1180
      %v1183 = vrot.slane %v867, 6
      %v1184 = vsel %vm1142, %v1183, %v1182
      %v1185 = vrot.slane %v942, 5
      %v1186 = vsel %vm1145, %v1185, %v1184
      %v1187 = vrot.slane %v1017, 4
      %v1188 = vsel %vm1148, %v1187, %v1186
      %v1189 = vrot.slane %v1092, 3
      %v1190 = vsel %vm1151, %v1189, %v1188
      %1191 = vrot.lane.b32.xlu0 %v1190, 49
      %v1192 = vpop.permute.xlu0 %1191
      %vm1194 = vcmask 531848
      %1195 = vst.msk [vmem:[#allocation2 + $0x18] sm:$0xff] %vm1194, %v1192
      %v1196 = vrot.slane %v567, 3
      %v1197 = vrot.slane %v642, 2
      %v1198 = vsel %vm1133, %v1197, %v1196
      %v1199 = vrot.slane %v717, 1
      %v1200 = vsel %vm1136, %v1199, %v1198
      %v1201 = vsel %vm1139, %v792, %v1200
      %v1202 = vrot.slane %v867, 7
      %v1203 = vsel %vm1142, %v1202, %v1201
      %v1204 = vrot.slane %v942, 6
      %v1205 = vsel %vm1145, %v1204, %v1203
      %v1206 = vrot.slane %v1017, 5
      %v1207 = vsel %vm1148, %v1206, %v1205
      %v1208 = vrot.slane %v1092, 4
      %v1209 = vsel %vm1151, %v1208, %v1207
      %1210 = vrot.lane.b32.xlu0 %v1209, 65
      %v1211 = vpop.permute.xlu0 %1210
      %vm1213 = vcmask 663048
      %1214 = vst.msk [vmem:[#allocation2 + $0x18] sm:$0xff] %vm1213, %v1211
      %v1215 = vrot.slane %v567, 4
      %v1216 = vrot.slane %v642, 3
      %v1217 = vsel %vm1133, %v1216, %v1215
      %v1218 = vrot.slane %v717, 2
      %v1219 = vsel %vm1136, %v1218, %v1217
      %v1220 = vrot.slane %v792, 1
      %v1221 = vsel %vm1139, %v1220, %v1219
      %v1222 = vsel %vm1142, %v867, %v1221
      %v1223 = vrot.slane %v942, 7
      %v1224 = vsel %vm1145, %v1223, %v1222
      %v1225 = vrot.slane %v1017, 6
      %v1226 = vsel %vm1148, %v1225, %v1224
      %v1227 = vrot.slane %v1092, 5
      %v1228 = vsel %vm1151, %v1227, %v1226
      %1229 = vrot.lane.b32.xlu0 %v1228, 81
      %v1230 = vpop.permute.xlu0 %1229
      %vm1232 = vcmask 794248
      %1233 = vst.msk [vmem:[#allocation2 + $0x18] sm:$0xff] %vm1232, %v1230
      %v1234 = vrot.slane %v567, 5
      %v1235 = vrot.slane %v642, 4
      %v1236 = vsel %vm1133, %v1235, %v1234
      %v1237 = vrot.slane %v717, 3
      %v1238 = vsel %vm1136, %v1237, %v1236
      %v1239 = vrot.slane %v792, 2
      %v1240 = vsel %vm1139, %v1239, %v1238
      %v1241 = vrot.slane %v867, 1
      %v1242 = vsel %vm1142, %v1241, %v1240
      %v1243 = vsel %vm1145, %v942, %v1242
      %v1244 = vrot.slane %v1017, 7
      %v1245 = vsel %vm1148, %v1244, %v1243
      %v1246 = vrot.slane %v1092, 6
      %v1247 = vsel %vm1151, %v1246, %v1245
      %1248 = vrot.lane.b32.xlu0 %v1247, 97
      %v1249 = vpop.permute.xlu0 %1248
      %vm1251 = vcmask 925448
      %1252 = vst.msk [vmem:[#allocation2 + $0x18] sm:$0xff] %vm1251, %v1249
      %v1253 = vrot.slane %v567, 6
      %v1254 = vrot.slane %v642, 5
      %v1255 = vsel %vm1133, %v1254, %v1253
      %v1256 = vrot.slane %v717, 4
      %v1257 = vsel %vm1136, %v1256, %v1255
      %v1258 = vrot.slane %v792, 3
      %v1259 = vsel %vm1139, %v1258, %v1257
      %v1260 = vrot.slane %v867, 2
      %v1261 = vsel %vm1142, %v1260, %v1259
      %v1262 = vrot.slane %v942, 1
      %v1263 = vsel %vm1145, %v1262, %v1261
      %v1264 = vsel %vm1148, %v1017, %v1263
      %v1265 = vrot.slane %v1092, 7
      %v1266 = vsel %vm1151, %v1265, %v1264
      %1267 = vrot.lane.b32.xlu0 %v1266, 113
      %v1268 = vpop.permute.xlu0 %1267
      %vm1270 = vcmask 1048456
      %1271 = vst.msk [vmem:[#allocation2 + $0x18] sm:$0xff] %vm1270, %v1268
      %vm1272 = vcmask 7168
      %1273 = vst.msk [vmem:[#allocation2 + $0x20] sm:$0xff] %vm1272, %v1268
      %v1274 = vrot.slane %v567, 7
      %v1275 = vrot.slane %v642, 6
      %v1276 = vsel %vm1133, %v1275, %v1274
      %v1277 = vrot.slane %v717, 5
      %v1278 = vsel %vm1136, %v1277, %v1276
      %v1279 = vrot.slane %v792, 4
      %v1280 = vsel %vm1139, %v1279, %v1278
      %v1281 = vrot.slane %v867, 3
      %v1282 = vsel %vm1142, %v1281, %v1280
      %v1283 = vrot.slane %v942, 2
      %v1284 = vsel %vm1145, %v1283, %v1282
      %v1285 = vrot.slane %v1017, 1
      %v1286 = vsel %vm1148, %v1285, %v1284
      %v1287 = vsel %vm1151, %v1092, %v1286
      %1288 = vrot.lane.b32.xlu0 %v1287, 1
      %v1289 = vpop.permute.xlu0 %1288
      %vm1291 = vcmask 138248
      %1292 = vst.msk [vmem:[#allocation2 + $0x20] sm:$0xff] %vm1291, %v1289
      %v1301 = vrot.slane %v647, 7
      %v1302 = vsel %vm1133, %v1301, %v572
      %v1303 = vrot.slane %v722, 6
      %v1304 = vsel %vm1136, %v1303, %v1302
      %v1305 = vrot.slane %v797, 5
      %v1306 = vsel %vm1139, %v1305, %v1304
      %v1307 = vrot.slane %v872, 4
      %v1308 = vsel %vm1142, %v1307, %v1306
      %v1309 = vrot.slane %v947, 3
      %v1310 = vsel %vm1145, %v1309, %v1308
      %v1311 = vrot.slane %v1022, 2
      %v1312 = vsel %vm1148, %v1311, %v1310
      %v1313 = vrot.slane %v1097, 1
      %v1314 = vsel %vm1151, %v1313, %v1312
      %1315 = vrot.lane.b32.xlu0 %v1314, 17
      %v1316 = vpop.permute.xlu0 %1315
      %1318 = vst.msk [vmem:[#allocation2 + $0x20] sm:$0xff] %vm1156, %v1316
      %v1319 = vrot.slane %v572, 1
      %v1320 = vsel %vm1133, %v647, %v1319
      %v1321 = vrot.slane %v722, 7
      %v1322 = vsel %vm1136, %v1321, %v1320
      %v1323 = vrot.slane %v797, 6
      %v1324 = vsel %vm1139, %v1323, %v1322
      %v1325 = vrot.slane %v872, 5
      %v1326 = vsel %vm1142, %v1325, %v1324
      %v1327 = vrot.slane %v947, 4
      %v1328 = vsel %vm1145, %v1327, %v1326
      %v1329 = vrot.slane %v1022, 3
      %v1330 = vsel %vm1148, %v1329, %v1328
      %v1331 = vrot.slane %v1097, 2
      %v1332 = vsel %vm1151, %v1331, %v1330
      %1333 = vrot.lane.b32.xlu0 %v1332, 33
      %v1334 = vpop.permute.xlu0 %1333
      %1336 = vst.msk [vmem:[#allocation2 + $0x20] sm:$0xff] %vm1175, %v1334
      %v1337 = vrot.slane %v572, 2
      %v1338 = vrot.slane %v647, 1
      %v1339 = vsel %vm1133, %v1338, %v1337
      %v1340 = vsel %vm1136, %v722, %v1339
      %v1341 = vrot.slane %v797, 7
      %v1342 = vsel %vm1139, %v1341, %v1340
      %v1343 = vrot.slane %v872, 6
      %v1344 = vsel %vm1142, %v1343, %v1342
      %v1345 = vrot.slane %v947, 5
      %v1346 = vsel %vm1145, %v1345, %v1344
      %v1347 = vrot.slane %v1022, 4
      %v1348 = vsel %vm1148, %v1347, %v1346
      %v1349 = vrot.slane %v1097, 3
      %v1350 = vsel %vm1151, %v1349, %v1348
      %1351 = vrot.lane.b32.xlu0 %v1350, 49
      %v1352 = vpop.permute.xlu0 %1351
      %1354 = vst.msk [vmem:[#allocation2 + $0x20] sm:$0xff] %vm1194, %v1352
      %v1355 = vrot.slane %v572, 3
      %v1356 = vrot.slane %v647, 2
      %v1357 = vsel %vm1133, %v1356, %v1355
      %v1358 = vrot.slane %v722, 1
      %v1359 = vsel %vm1136, %v1358, %v1357
      %v1360 = vsel %vm1139, %v797, %v1359
      %v1361 = vrot.slane %v872, 7
      %v1362 = vsel %vm1142, %v1361, %v1360
      %v1363 = vrot.slane %v947, 6
      %v1364 = vsel %vm1145, %v1363, %v1362
      %v1365 = vrot.slane %v1022, 5
      %v1366 = vsel %vm1148, %v1365, %v1364
      %v1367 = vrot.slane %v1097, 4
      %v1368 = vsel %vm1151, %v1367, %v1366
      %1369 = vrot.lane.b32.xlu0 %v1368, 65
      %v1370 = vpop.permute.xlu0 %1369
      %1372 = vst.msk [vmem:[#allocation2 + $0x20] sm:$0xff] %vm1213, %v1370
      %v1373 = vrot.slane %v572, 4
      %v1374 = vrot.slane %v647, 3
      %v1375 = vsel %vm1133, %v1374, %v1373
      %v1376 = vrot.slane %v722, 2
      %v1377 = vsel %vm1136, %v1376, %v1375
      %v1378 = vrot.slane %v797, 1
      %v1379 = vsel %vm1139, %v1378, %v1377
      %v1380 = vsel %vm1142, %v872, %v1379
      %v1381 = vrot.slane %v947, 7
      %v1382 = vsel %vm1145, %v1381, %v1380
      %v1383 = vrot.slane %v1022, 6
      %v1384 = vsel %vm1148, %v1383, %v1382
      %v1385 = vrot.slane %v1097, 5
      %v1386 = vsel %vm1151, %v1385, %v1384
      %1387 = vrot.lane.b32.xlu0 %v1386, 81
      %v1388 = vpop.permute.xlu0 %1387
      %1390 = vst.msk [vmem:[#allocation2 + $0x20] sm:$0xff] %vm1232, %v1388
      %v1391 = vrot.slane %v572, 5
      %v1392 = vrot.slane %v647, 4
      %v1393 = vsel %vm1133, %v1392, %v1391
      %v1394 = vrot.slane %v722, 3
      %v1395 = vsel %vm1136, %v1394, %v1393
      %v1396 = vrot.slane %v797, 2
      %v1397 = vsel %vm1139, %v1396, %v1395
      %v1398 = vrot.slane %v872, 1
      %v1399 = vsel %vm1142, %v1398, %v1397
      %v1400 = vsel %vm1145, %v947, %v1399
      %v1401 = vrot.slane %v1022, 7
      %v1402 = vsel %vm1148, %v1401, %v1400
      %v1403 = vrot.slane %v1097, 6
      %v1404 = vsel %vm1151, %v1403, %v1402
      %1405 = vrot.lane.b32.xlu0 %v1404, 97
      %v1406 = vpop.permute.xlu0 %1405
      %1408 = vst.msk [vmem:[#allocation2 + $0x20] sm:$0xff] %vm1251, %v1406
      %v1409 = vrot.slane %v572, 6
      %v1410 = vrot.slane %v647, 5
      %v1411 = vsel %vm1133, %v1410, %v1409
      %v1412 = vrot.slane %v722, 4
      %v1413 = vsel %vm1136, %v1412, %v1411
      %v1414 = vrot.slane %v797, 3
      %v1415 = vsel %vm1139, %v1414, %v1413
      %v1416 = vrot.slane %v872, 2
      %v1417 = vsel %vm1142, %v1416, %v1415
      %v1418 = vrot.slane %v947, 1
      %v1419 = vsel %vm1145, %v1418, %v1417
      %v1420 = vsel %vm1148, %v1022, %v1419
      %v1421 = vrot.slane %v1097, 7
      %v1422 = vsel %vm1151, %v1421, %v1420
      %1423 = vrot.lane.b32.xlu0 %v1422, 113
      %v1424 = vpop.permute.xlu0 %1423
      %1426 = vst.msk [vmem:[#allocation2 + $0x20] sm:$0xff] %vm1270, %v1424
      %1427 = vst.msk [vmem:[#allocation2 + $0x28] sm:$0xff] %vm1272, %v1424
      %v1428 = vrot.slane %v572, 7
      %v1429 = vrot.slane %v647, 6
      %v1430 = vsel %vm1133, %v1429, %v1428
      %v1431 = vrot.slane %v722, 5
      %v1432 = vsel %vm1136, %v1431, %v1430
      %v1433 = vrot.slane %v797, 4
      %v1434 = vsel %vm1139, %v1433, %v1432
      %v1435 = vrot.slane %v872, 3
      %v1436 = vsel %vm1142, %v1435, %v1434
      %v1437 = vrot.slane %v947, 2
      %v1438 = vsel %vm1145, %v1437, %v1436
      %v1439 = vrot.slane %v1022, 1
      %v1440 = vsel %vm1148, %v1439, %v1438
      %v1441 = vsel %vm1151, %v1097, %v1440
      %1442 = vrot.lane.b32.xlu0 %v1441, 1
      %v1443 = vpop.permute.xlu0 %1442
      %1445 = vst.msk [vmem:[#allocation2 + $0x28] sm:$0xff] %vm1291, %v1443
      %v1446 = vld [vmem:[%s4] sm:$0x77]
      %v1447 = vld [vmem:[#allocation2] sm:$0xff]
      %v1448 = vld [vmem:[#allocation2 + $0x8] sm:$0xff]
      %v1449 = vld [vmem:[#allocation2 + $0x18] sm:$0xff]
      %v1450 = vld [vmem:[#allocation2 + $0x20] sm:$0xff]
      %v1451 = vld [vmem:[%s5] sm:$0xff]
      %vm1452 = vcmask 130048
      %v1454 = vsel %vm1452, %v1451, 0
      %1456 = vmatprep.subr.mxu0 %v1448
      %1457 = vmatpush1.msra.mxu0 %v1447
      %1458 = vmatprep.subr.mxu0 %v1450
      %1459 = vmatpush1.msra.mxu0 %v1449
      %1460 = vmatprep.subr.mxu0 0.0
      %1461 = vmatpush1.msra.mxu0 0.0
      %1462 = vmatprep.subr.mxu0 0.0
      %1463 = vmatpush1.msra.mxu0 0.0
      %1464 = vmatprep.subr.mxu0 0.0
      %1465 = vmatpush1.msra.mxu0 0.0
      %1466 = vmatprep.subr.mxu0 0.0
      %1467 = vmatpush1.msra.mxu0 0.0
      %1468 = vmatprep.subr.mxu0 0.0
      %1469 = vmatpush1.msra.mxu0 0.0
      %1470 = vmatprep.subr.mxu0 0.0
      %1471 = vmatpush1.msra.mxu0 0.0
      %1472 = vmatprep.subr.mxu0 0.0
      %1473 = vmatpush1.msra.mxu0 0.0
      %1474 = vmatprep.subr.mxu0 0.0
      %1475 = vmatpush1.msra.mxu0 0.0
      %1476 = vmatprep.subr.mxu0 0.0
      %1477 = vmatpush1.msra.mxu0 0.0
      %1478 = vmatprep.subr.mxu0 0.0
      %1479 = vmatpush1.msra.mxu0 0.0
      %1480 = vmatprep.subr.mxu0 0.0
      %1481 = vmatpush1.msra.mxu0 0.0
      %1482 = vmatprep.subr.mxu0 0.0
      %1483 = vmatpush1.msra.mxu0 0.0
      %1484 = vmatprep.subr.mxu0 0.0
      %1485 = vmatpush1.msra.mxu0 0.0
      %1486 = vmatprep.subr.mxu0 0.0
      %1487 = vmatpush1.msra.mxu0 0.0
      %1488 = vmatprep.subr.mxu0 0.0
      %1489 = vmatpush1.msra.mxu0 0.0
      %1490 = vmatprep.subr.mxu0 0.0
      %1491 = vmatpush1.msra.mxu0 0.0
      %1492 = vmatprep.subr.mxu0 0.0
      %1493 = vmatpush1.msra.mxu0 0.0
      %1494 = vmatprep.subr.mxu0 0.0
      %1495 = vmatpush1.msra.mxu0 0.0
      %1496 = vmatprep.subr.mxu0 0.0
      %1497 = vmatpush1.msra.mxu0 0.0
      %1498 = vmatprep.subr.mxu0 0.0
      %1499 = vmatpush1.msra.mxu0 0.0
      %1500 = vmatprep.subr.mxu0 0.0
      %1501 = vmatpush1.msra.mxu0 0.0
      %1502 = vmatprep.subr.mxu0 0.0
      %1503 = vmatpush1.msra.mxu0 0.0
      %1504 = vmatprep.subr.mxu0 0.0
      %1505 = vmatpush1.msra.mxu0 0.0
      %1506 = vmatprep.subr.mxu0 0.0
      %1507 = vmatpush1.msra.mxu0 0.0
      %1508 = vmatprep.subr.mxu0 0.0
      %1509 = vmatpush1.msra.mxu0 0.0
      %1510 = vmatprep.subr.mxu0 0.0
      %1511 = vmatpush1.msra.mxu0 0.0
      %1512 = vmatprep.subr.mxu0 0.0
      %1513 = vmatpush1.msra.mxu0 0.0
      %1514 = vmatprep.subr.mxu0 0.0
      %1515 = vmatpush1.msra.mxu0 0.0
      %1516 = vmatprep.subr.mxu0 0.0
      %1517 = vmatpush1.msra.mxu0 0.0
      %1518 = vmatprep.subr.mxu0 0.0
      %1519 = vmatpush1.msra.mxu0 0.0
      %1520 = vmatprep.mubr.f32.mxu0 0.0
      %1521 = vmatmul.mubr.f32.gmra.mrb[0].mxu0 %v1454
      %v1522 = vpop.f32.mrb[0].mxu0
      %v1523 = vadd.f32 0.0, %v1522
      %v1524 = vpop.f32.mrb[0].mxu0
      %v1525 = vadd.f32 0.0, %v1524
      %1526 = vdwg.mxu0
      %v1528 = vlaneseq
      %v1529 = vshrl.u32 %v1528, 7
      %v1530 = vsub.s32 0, %v1529
      %v1531 = vrot.slane %v1446, %v1530
      %v1532 = vlaneseq
      %v1533 = vshrl.u32 %v1532, 7
      %v1534 = vsub.s32 4, %v1533
      %v1535 = vrot.slane %v1446, %v1534
      %v1538 = vlaneseq
      %v1539 = vshrl.u32 %v1538, 7
      %v1540 = vsub.s32 0, %v1539
      %v1541 = vrot.slane %v1531, %v1540
      %v1542 = vlaneseq
      %v1543 = vshrl.u32 %v1542, 7
      %v1544 = vsub.s32 0, %v1543
      %v1545 = vrot.slane %v1535, %v1544
      %v1546 = vmul.f32 %v1523, %v1541
      %v1547 = vmul.f32 %v1525, %v1545
      %v1548 = vadd.f32 %v1546, 0.0
      %v1549 = vadd.f32 %v1547, 0.0
      %v1550 = vld [vmem:[#allocation2] sm:$0xff]
      %v1551 = vld [vmem:[#allocation2 + $0x8] sm:$0xff]
      %v1552 = vld [vmem:[#allocation2 + $0x10] sm:$0xff]
      %v1553 = vld [vmem:[#allocation2 + $0x18] sm:$0xff]
      %v1554 = vld [vmem:[#allocation2 + $0x20] sm:$0xff]
      %v1555 = vld [vmem:[#allocation2 + $0x28] sm:$0xff]
      %s1556 = scalar_lea.vmem %s5, 8
      %v1557 = vld [vmem:[%s1556] sm:$0xff]
      %1564 = vrot.lane.b32.xlu0 %v1550, 127
      %v1565 = vpop.permute.xlu0 %1564
      %1566 = vrot.lane.b32.xlu0 %v1551, 127
      %v1567 = vpop.permute.xlu0 %1566
      %1568 = vrot.lane.b32.xlu0 %v1552, 127
      %v1569 = vpop.permute.xlu0 %1568
      %1570 = vrot.lane.b32.xlu0 %v1553, 127
      %v1571 = vpop.permute.xlu0 %1570
      %1572 = vrot.lane.b32.xlu0 %v1554, 127
      %v1573 = vpop.permute.xlu0 %1572
      %1574 = vrot.lane.b32.xlu0 %v1555, 127
      %v1575 = vpop.permute.xlu0 %1574
      %vm1576 = vcmask 1039360
      %v1577 = vsel %vm1576, %v1565, %v1567
      %v1578 = vsel %vm1576, %v1567, %v1569
      %v1579 = vsel %vm1576, %v1571, %v1573
      %v1580 = vsel %vm1576, %v1573, %v1575
      %v1586 = vsel %vm1452, %v1557, 0
      %1588 = vmatprep.subr.mxu0 %v1578
      %1589 = vmatpush1.msra.mxu0 %v1577
      %1590 = vmatprep.subr.mxu0 %v1580
      %1591 = vmatpush1.msra.mxu0 %v1579
      %1592 = vmatprep.subr.mxu0 0.0
      %1593 = vmatpush1.msra.mxu0 0.0
      %1594 = vmatprep.subr.mxu0 0.0
      %1595 = vmatpush1.msra.mxu0 0.0
      %1596 = vmatprep.subr.mxu0 0.0
      %1597 = vmatpush1.msra.mxu0 0.0
      %1598 = vmatprep.subr.mxu0 0.0
      %1599 = vmatpush1.msra.mxu0 0.0
      %1600 = vmatprep.subr.mxu0 0.0
      %1601 = vmatpush1.msra.mxu0 0.0
      %1602 = vmatprep.subr.mxu0 0.0
      %1603 = vmatpush1.msra.mxu0 0.0
      %1604 = vmatprep.subr.mxu0 0.0
      %1605 = vmatpush1.msra.mxu0 0.0
      %1606 = vmatprep.subr.mxu0 0.0
      %1607 = vmatpush1.msra.mxu0 0.0
      %1608 = vmatprep.subr.mxu0 0.0
      %1609 = vmatpush1.msra.mxu0 0.0
      %1610 = vmatprep.subr.mxu0 0.0
      %1611 = vmatpush1.msra.mxu0 0.0
      %1612 = vmatprep.subr.mxu0 0.0
      %1613 = vmatpush1.msra.mxu0 0.0
      %1614 = vmatprep.subr.mxu0 0.0
      %1615 = vmatpush1.msra.mxu0 0.0
      %1616 = vmatprep.subr.mxu0 0.0
      %1617 = vmatpush1.msra.mxu0 0.0
      %1618 = vmatprep.subr.mxu0 0.0
      %1619 = vmatpush1.msra.mxu0 0.0
      %1620 = vmatprep.subr.mxu0 0.0
      %1621 = vmatpush1.msra.mxu0 0.0
      %1622 = vmatprep.subr.mxu0 0.0
      %1623 = vmatpush1.msra.mxu0 0.0
      %1624 = vmatprep.subr.mxu0 0.0
      %1625 = vmatpush1.msra.mxu0 0.0
      %1626 = vmatprep.subr.mxu0 0.0
      %1627 = vmatpush1.msra.mxu0 0.0
      %1628 = vmatprep.subr.mxu0 0.0
      %1629 = vmatpush1.msra.mxu0 0.0
      %1630 = vmatprep.subr.mxu0 0.0
      %1631 = vmatpush1.msra.mxu0 0.0
      %1632 = vmatprep.subr.mxu0 0.0
      %1633 = vmatpush1.msra.mxu0 0.0
      %1634 = vmatprep.subr.mxu0 0.0
      %1635 = vmatpush1.msra.mxu0 0.0
      %1636 = vmatprep.subr.mxu0 0.0
      %1637 = vmatpush1.msra.mxu0 0.0
      %1638 = vmatprep.subr.mxu0 0.0
      %1639 = vmatpush1.msra.mxu0 0.0
      %1640 = vmatprep.subr.mxu0 0.0
      %1641 = vmatpush1.msra.mxu0 0.0
      %1642 = vmatprep.subr.mxu0 0.0
      %1643 = vmatpush1.msra.mxu0 0.0
      %1644 = vmatprep.subr.mxu0 0.0
      %1645 = vmatpush1.msra.mxu0 0.0
      %1646 = vmatprep.subr.mxu0 0.0
      %1647 = vmatpush1.msra.mxu0 0.0
      %1648 = vmatprep.subr.mxu0 0.0
      %1649 = vmatpush1.msra.mxu0 0.0
      %1650 = vmatprep.subr.mxu0 0.0
      %1651 = vmatpush1.msra.mxu0 0.0
      %1652 = vmatprep.mubr.f32.mxu0 0.0
      %1653 = vmatmul.mubr.f32.gmra.mrb[0].mxu0 %v1586
      %v1654 = vpop.f32.mrb[0].mxu0
      %v1655 = vadd.f32 0.0, %v1654
      %v1656 = vpop.f32.mrb[0].mxu0
      %v1657 = vadd.f32 0.0, %v1656
      %1658 = vdwg.mxu0
      %v1659 = vadd.f32 %v1548, %v1655
      %v1660 = vadd.f32 %v1549, %v1657
      %s1661 = scalar_lea.vmem %s5, 16
      %v1662 = vld [vmem:[%s1661] sm:$0xff]
      %1663 = vrot.lane.b32.xlu0 %v1550, 126
      %v1664 = vpop.permute.xlu0 %1663
      %1665 = vrot.lane.b32.xlu0 %v1551, 126
      %v1666 = vpop.permute.xlu0 %1665
      %1667 = vrot.lane.b32.xlu0 %v1552, 126
      %v1668 = vpop.permute.xlu0 %1667
      %1669 = vrot.lane.b32.xlu0 %v1553, 126
      %v1670 = vpop.permute.xlu0 %1669
      %1671 = vrot.lane.b32.xlu0 %v1554, 126
      %v1672 = vpop.permute.xlu0 %1671
      %1673 = vrot.lane.b32.xlu0 %v1555, 126
      %v1674 = vpop.permute.xlu0 %1673
      %vm1675 = vcmask 1031168
      %v1676 = vsel %vm1675, %v1664, %v1666
      %v1677 = vsel %vm1675, %v1666, %v1668
      %v1678 = vsel %vm1675, %v1670, %v1672
      %v1679 = vsel %vm1675, %v1672, %v1674
      %v1685 = vsel %vm1452, %v1662, 0
      %1687 = vmatprep.subr.mxu0 %v1677
      %1688 = vmatpush1.msra.mxu0 %v1676
      %1689 = vmatprep.subr.mxu0 %v1679
      %1690 = vmatpush1.msra.mxu0 %v1678
      %1691 = vmatprep.subr.mxu0 0.0
      %1692 = vmatpush1.msra.mxu0 0.0
      %1693 = vmatprep.subr.mxu0 0.0
      %1694 = vmatpush1.msra.mxu0 0.0
      %1695 = vmatprep.subr.mxu0 0.0
      %1696 = vmatpush1.msra.mxu0 0.0
      %1697 = vmatprep.subr.mxu0 0.0
      %1698 = vmatpush1.msra.mxu0 0.0
      %1699 = vmatprep.subr.mxu0 0.0
      %1700 = vmatpush1.msra.mxu0 0.0
      %1701 = vmatprep.subr.mxu0 0.0
      %1702 = vmatpush1.msra.mxu0 0.0
      %1703 = vmatprep.subr.mxu0 0.0
      %1704 = vmatpush1.msra.mxu0 0.0
      %1705 = vmatprep.subr.mxu0 0.0
      %1706 = vmatpush1.msra.mxu0 0.0
      %1707 = vmatprep.subr.mxu0 0.0
      %1708 = vmatpush1.msra.mxu0 0.0
      %1709 = vmatprep.subr.mxu0 0.0
      %1710 = vmatpush1.msra.mxu0 0.0
      %1711 = vmatprep.subr.mxu0 0.0
      %1712 = vmatpush1.msra.mxu0 0.0
      %1713 = vmatprep.subr.mxu0 0.0
      %1714 = vmatpush1.msra.mxu0 0.0
      %1715 = vmatprep.subr.mxu0 0.0
      %1716 = vmatpush1.msra.mxu0 0.0
      %1717 = vmatprep.subr.mxu0 0.0
      %1718 = vmatpush1.msra.mxu0 0.0
      %1719 = vmatprep.subr.mxu0 0.0
      %1720 = vmatpush1.msra.mxu0 0.0
      %1721 = vmatprep.subr.mxu0 0.0
      %1722 = vmatpush1.msra.mxu0 0.0
      %1723 = vmatprep.subr.mxu0 0.0
      %1724 = vmatpush1.msra.mxu0 0.0
      %1725 = vmatprep.subr.mxu0 0.0
      %1726 = vmatpush1.msra.mxu0 0.0
      %1727 = vmatprep.subr.mxu0 0.0
      %1728 = vmatpush1.msra.mxu0 0.0
      %1729 = vmatprep.subr.mxu0 0.0
      %1730 = vmatpush1.msra.mxu0 0.0
      %1731 = vmatprep.subr.mxu0 0.0
      %1732 = vmatpush1.msra.mxu0 0.0
      %1733 = vmatprep.subr.mxu0 0.0
      %1734 = vmatpush1.msra.mxu0 0.0
      %1735 = vmatprep.subr.mxu0 0.0
      %1736 = vmatpush1.msra.mxu0 0.0
      %1737 = vmatprep.subr.mxu0 0.0
      %1738 = vmatpush1.msra.mxu0 0.0
      %1739 = vmatprep.subr.mxu0 0.0
      %1740 = vmatpush1.msra.mxu0 0.0
      %1741 = vmatprep.subr.mxu0 0.0
      %1742 = vmatpush1.msra.mxu0 0.0
      %1743 = vmatprep.subr.mxu0 0.0
      %1744 = vmatpush1.msra.mxu0 0.0
      %1745 = vmatprep.subr.mxu0 0.0
      %1746 = vmatpush1.msra.mxu0 0.0
      %1747 = vmatprep.subr.mxu0 0.0
      %1748 = vmatpush1.msra.mxu0 0.0
      %1749 = vmatprep.subr.mxu0 0.0
      %1750 = vmatpush1.msra.mxu0 0.0
      %1751 = vmatprep.mubr.f32.mxu0 0.0
      %1752 = vmatmul.mubr.f32.gmra.mrb[0].mxu0 %v1685
      %v1753 = vpop.f32.mrb[0].mxu0
      %v1754 = vadd.f32 0.0, %v1753
      %v1755 = vpop.f32.mrb[0].mxu0
      %v1756 = vadd.f32 0.0, %v1755
      %1757 = vdwg.mxu0
      %v1758 = vlaneseq
      %v1759 = vshrl.u32 %v1758, 7
      %v1760 = vsub.s32 2, %v1759
      %v1761 = vrot.slane %v1446, %v1760
      %v1762 = vlaneseq
      %v1763 = vshrl.u32 %v1762, 7
      %v1764 = vsub.s32 6, %v1763
      %v1765 = vrot.slane %v1446, %v1764
      %v1768 = vlaneseq
      %v1769 = vshrl.u32 %v1768, 7
      %v1770 = vsub.s32 2, %v1769
      %v1771 = vrot.slane %v1761, %v1770
      %v1772 = vlaneseq
      %v1773 = vshrl.u32 %v1772, 7
      %v1774 = vsub.s32 2, %v1773
      %v1775 = vrot.slane %v1765, %v1774
      %v1776 = vmul.f32 %v1754, %v1771
      %v1777 = vmul.f32 %v1756, %v1775
      %v1778 = vadd.f32 %v1659, %v1776
      %v1779 = vadd.f32 %v1660, %v1777
      %s1780 = scalar_lea.vmem %s5, 24
      %v1781 = vld [vmem:[%s1780] sm:$0xff]
      %1782 = vrot.lane.b32.xlu0 %v1550, 112
      %v1783 = vpop.permute.xlu0 %1782
      %1784 = vrot.lane.b32.xlu0 %v1551, 112
      %v1785 = vpop.permute.xlu0 %1784
      %1786 = vrot.lane.b32.xlu0 %v1552, 112
      %v1787 = vpop.permute.xlu0 %1786
      %1788 = vrot.lane.b32.xlu0 %v1553, 112
      %v1789 = vpop.permute.xlu0 %1788
      %1790 = vrot.lane.b32.xlu0 %v1554, 112
      %v1791 = vpop.permute.xlu0 %1790
      %1792 = vrot.lane.b32.xlu0 %v1555, 112
      %v1793 = vpop.permute.xlu0 %1792
      %vm1794 = vcmask 916480
      %v1795 = vsel %vm1794, %v1783, %v1785
      %v1796 = vsel %vm1794, %v1785, %v1787
      %v1797 = vsel %vm1794, %v1789, %v1791
      %v1798 = vsel %vm1794, %v1791, %v1793
      %v1804 = vsel %vm1452, %v1781, 0
      %1806 = vmatprep.subr.mxu0 %v1796
      %1807 = vmatpush1.msra.mxu0 %v1795
      %1808 = vmatprep.subr.mxu0 %v1798
      %1809 = vmatpush1.msra.mxu0 %v1797
      %1810 = vmatprep.subr.mxu0 0.0
      %1811 = vmatpush1.msra.mxu0 0.0
      %1812 = vmatprep.subr.mxu0 0.0
      %1813 = vmatpush1.msra.mxu0 0.0
      %1814 = vmatprep.subr.mxu0 0.0
      %1815 = vmatpush1.msra.mxu0 0.0
      %1816 = vmatprep.subr.mxu0 0.0
      %1817 = vmatpush1.msra.mxu0 0.0
      %1818 = vmatprep.subr.mxu0 0.0
      %1819 = vmatpush1.msra.mxu0 0.0
      %1820 = vmatprep.subr.mxu0 0.0
      %1821 = vmatpush1.msra.mxu0 0.0
      %1822 = vmatprep.subr.mxu0 0.0
      %1823 = vmatpush1.msra.mxu0 0.0
      %1824 = vmatprep.subr.mxu0 0.0
      %1825 = vmatpush1.msra.mxu0 0.0
      %1826 = vmatprep.subr.mxu0 0.0
      %1827 = vmatpush1.msra.mxu0 0.0
      %1828 = vmatprep.subr.mxu0 0.0
      %1829 = vmatpush1.msra.mxu0 0.0
      %1830 = vmatprep.subr.mxu0 0.0
      %1831 = vmatpush1.msra.mxu0 0.0
      %1832 = vmatprep.subr.mxu0 0.0
      %1833 = vmatpush1.msra.mxu0 0.0
      %1834 = vmatprep.subr.mxu0 0.0
      %1835 = vmatpush1.msra.mxu0 0.0
      %1836 = vmatprep.subr.mxu0 0.0
      %1837 = vmatpush1.msra.mxu0 0.0
      %1838 = vmatprep.subr.mxu0 0.0
      %1839 = vmatpush1.msra.mxu0 0.0
      %1840 = vmatprep.subr.mxu0 0.0
      %1841 = vmatpush1.msra.mxu0 0.0
      %1842 = vmatprep.subr.mxu0 0.0
      %1843 = vmatpush1.msra.mxu0 0.0
      %1844 = vmatprep.subr.mxu0 0.0
      %1845 = vmatpush1.msra.mxu0 0.0
      %1846 = vmatprep.subr.mxu0 0.0
      %1847 = vmatpush1.msra.mxu0 0.0
      %1848 = vmatprep.subr.mxu0 0.0
      %1849 = vmatpush1.msra.mxu0 0.0
      %1850 = vmatprep.subr.mxu0 0.0
      %1851 = vmatpush1.msra.mxu0 0.0
      %1852 = vmatprep.subr.mxu0 0.0
      %1853 = vmatpush1.msra.mxu0 0.0
      %1854 = vmatprep.subr.mxu0 0.0
      %1855 = vmatpush1.msra.mxu0 0.0
      %1856 = vmatprep.subr.mxu0 0.0
      %1857 = vmatpush1.msra.mxu0 0.0
      %1858 = vmatprep.subr.mxu0 0.0
      %1859 = vmatpush1.msra.mxu0 0.0
      %1860 = vmatprep.subr.mxu0 0.0
      %1861 = vmatpush1.msra.mxu0 0.0
      %1862 = vmatprep.subr.mxu0 0.0
      %1863 = vmatpush1.msra.mxu0 0.0
      %1864 = vmatprep.subr.mxu0 0.0
      %1865 = vmatpush1.msra.mxu0 0.0
      %1866 = vmatprep.subr.mxu0 0.0
      %1867 = vmatpush1.msra.mxu0 0.0
      %1868 = vmatprep.subr.mxu0 0.0
      %1869 = vmatpush1.msra.mxu0 0.0
      %1870 = vmatprep.mubr.f32.mxu0 0.0
      %1871 = vmatmul.mubr.f32.gmra.mrb[0].mxu0 %v1804
      %v1872 = vpop.f32.mrb[0].mxu0
      %v1873 = vadd.f32 0.0, %v1872
      %v1874 = vpop.f32.mrb[0].mxu0
      %v1875 = vadd.f32 0.0, %v1874
      %1876 = vdwg.mxu0
      %v1877 = vmul.f32 %v1873, %v1541
      %v1878 = vmul.f32 %v1875, %v1545
      %v1879 = vadd.f32 %v1778, %v1877
      %v1880 = vadd.f32 %v1779, %v1878
      %s1881 = scalar_lea.vmem %s5, 32
      %v1882 = vld [vmem:[%s1881] sm:$0xff]
      %1883 = vrot.lane.b32.xlu0 %v1550, 111
      %v1884 = vpop.permute.xlu0 %1883
      %1885 = vrot.lane.b32.xlu0 %v1551, 111
      %v1886 = vpop.permute.xlu0 %1885
      %1887 = vrot.lane.b32.xlu0 %v1552, 111
      %v1888 = vpop.permute.xlu0 %1887
      %1889 = vrot.lane.b32.xlu0 %v1553, 111
      %v1890 = vpop.permute.xlu0 %1889
      %1891 = vrot.lane.b32.xlu0 %v1554, 111
      %v1892 = vpop.permute.xlu0 %1891
      %1893 = vrot.lane.b32.xlu0 %v1555, 111
      %v1894 = vpop.permute.xlu0 %1893
      %vm1895 = vcmask 908288
      %v1896 = vsel %vm1895, %v1884, %v1886
      %v1897 = vsel %vm1895, %v1886, %v1888
      %v1898 = vsel %vm1895, %v1890, %v1892
      %v1899 = vsel %vm1895, %v1892, %v1894
      %v1905 = vsel %vm1452, %v1882, 0
      %1907 = vmatprep.subr.mxu0 %v1897
      %1908 = vmatpush1.msra.mxu0 %v1896
      %1909 = vmatprep.subr.mxu0 %v1899
      %1910 = vmatpush1.msra.mxu0 %v1898
      %1911 = vmatprep.subr.mxu0 0.0
      %1912 = vmatpush1.msra.mxu0 0.0
      %1913 = vmatprep.subr.mxu0 0.0
      %1914 = vmatpush1.msra.mxu0 0.0
      %1915 = vmatprep.subr.mxu0 0.0
      %1916 = vmatpush1.msra.mxu0 0.0
      %1917 = vmatprep.subr.mxu0 0.0
      %1918 = vmatpush1.msra.mxu0 0.0
      %1919 = vmatprep.subr.mxu0 0.0
      %1920 = vmatpush1.msra.mxu0 0.0
      %1921 = vmatprep.subr.mxu0 0.0
      %1922 = vmatpush1.msra.mxu0 0.0
      %1923 = vmatprep.subr.mxu0 0.0
      %1924 = vmatpush1.msra.mxu0 0.0
      %1925 = vmatprep.subr.mxu0 0.0
      %1926 = vmatpush1.msra.mxu0 0.0
      %1927 = vmatprep.subr.mxu0 0.0
      %1928 = vmatpush1.msra.mxu0 0.0
      %1929 = vmatprep.subr.mxu0 0.0
      %1930 = vmatpush1.msra.mxu0 0.0
      %1931 = vmatprep.subr.mxu0 0.0
      %1932 = vmatpush1.msra.mxu0 0.0
      %1933 = vmatprep.subr.mxu0 0.0
      %1934 = vmatpush1.msra.mxu0 0.0
      %1935 = vmatprep.subr.mxu0 0.0
      %1936 = vmatpush1.msra.mxu0 0.0
      %1937 = vmatprep.subr.mxu0 0.0
      %1938 = vmatpush1.msra.mxu0 0.0
      %1939 = vmatprep.subr.mxu0 0.0
      %1940 = vmatpush1.msra.mxu0 0.0
      %1941 = vmatprep.subr.mxu0 0.0
      %1942 = vmatpush1.msra.mxu0 0.0
      %1943 = vmatprep.subr.mxu0 0.0
      %1944 = vmatpush1.msra.mxu0 0.0
      %1945 = vmatprep.subr.mxu0 0.0
      %1946 = vmatpush1.msra.mxu0 0.0
      %1947 = vmatprep.subr.mxu0 0.0
      %1948 = vmatpush1.msra.mxu0 0.0
      %1949 = vmatprep.subr.mxu0 0.0
      %1950 = vmatpush1.msra.mxu0 0.0
      %1951 = vmatprep.subr.mxu0 0.0
      %1952 = vmatpush1.msra.mxu0 0.0
      %1953 = vmatprep.subr.mxu0 0.0
      %1954 = vmatpush1.msra.mxu0 0.0
      %1955 = vmatprep.subr.mxu0 0.0
      %1956 = vmatpush1.msra.mxu0 0.0
      %1957 = vmatprep.subr.mxu0 0.0
      %1958 = vmatpush1.msra.mxu0 0.0
      %1959 = vmatprep.subr.mxu0 0.0
      %1960 = vmatpush1.msra.mxu0 0.0
      %1961 = vmatprep.subr.mxu0 0.0
      %1962 = vmatpush1.msra.mxu0 0.0
      %1963 = vmatprep.subr.mxu0 0.0
      %1964 = vmatpush1.msra.mxu0 0.0
      %1965 = vmatprep.subr.mxu0 0.0
      %1966 = vmatpush1.msra.mxu0 0.0
      %1967 = vmatprep.subr.mxu0 0.0
      %1968 = vmatpush1.msra.mxu0 0.0
      %1969 = vmatprep.subr.mxu0 0.0
      %1970 = vmatpush1.msra.mxu0 0.0
      %1971 = vmatprep.mubr.f32.mxu0 0.0
      %1972 = vmatmul.mubr.f32.gmra.mrb[0].mxu0 %v1905
      %v1973 = vpop.f32.mrb[0].mxu0
      %v1974 = vadd.f32 0.0, %v1973
      %v1975 = vpop.f32.mrb[0].mxu0
      %v1976 = vadd.f32 0.0, %v1975
      %1977 = vdwg.mxu0
      %v1978 = vadd.f32 %v1879, %v1974
      %v1979 = vadd.f32 %v1880, %v1976
      %s1980 = scalar_lea.vmem %s5, 40
      %v1981 = vld [vmem:[%s1980] sm:$0xff]
      %1982 = vrot.lane.b32.xlu0 %v1550, 110
      %v1983 = vpop.permute.xlu0 %1982
      %1984 = vrot.lane.b32.xlu0 %v1551, 110
      %v1985 = vpop.permute.xlu0 %1984
      %1986 = vrot.lane.b32.xlu0 %v1552, 110
      %v1987 = vpop.permute.xlu0 %1986
      %1988 = vrot.lane.b32.xlu0 %v1553, 110
      %v1989 = vpop.permute.xlu0 %1988
      %1990 = vrot.lane.b32.xlu0 %v1554, 110
      %v1991 = vpop.permute.xlu0 %1990
      %1992 = vrot.lane.b32.xlu0 %v1555, 110
      %v1993 = vpop.permute.xlu0 %1992
      %vm1994 = vcmask 900096
      %v1995 = vsel %vm1994, %v1983, %v1985
      %v1996 = vsel %vm1994, %v1985, %v1987
      %v1997 = vsel %vm1994, %v1989, %v1991
      %v1998 = vsel %vm1994, %v1991, %v1993
      %v2004 = vsel %vm1452, %v1981, 0
      %2006 = vmatprep.subr.mxu0 %v1996
      %2007 = vmatpush1.msra.mxu0 %v1995
      %2008 = vmatprep.subr.mxu0 %v1998
      %2009 = vmatpush1.msra.mxu0 %v1997
      %2010 = vmatprep.subr.mxu0 0.0
      %2011 = vmatpush1.msra.mxu0 0.0
      %2012 = vmatprep.subr.mxu0 0.0
      %2013 = vmatpush1.msra.mxu0 0.0
      %2014 = vmatprep.subr.mxu0 0.0
      %2015 = vmatpush1.msra.mxu0 0.0
      %2016 = vmatprep.subr.mxu0 0.0
      %2017 = vmatpush1.msra.mxu0 0.0
      %2018 = vmatprep.subr.mxu0 0.0
      %2019 = vmatpush1.msra.mxu0 0.0
      %2020 = vmatprep.subr.mxu0 0.0
      %2021 = vmatpush1.msra.mxu0 0.0
      %2022 = vmatprep.subr.mxu0 0.0
      %2023 = vmatpush1.msra.mxu0 0.0
      %2024 = vmatprep.subr.mxu0 0.0
      %2025 = vmatpush1.msra.mxu0 0.0
      %2026 = vmatprep.subr.mxu0 0.0
      %2027 = vmatpush1.msra.mxu0 0.0
      %2028 = vmatprep.subr.mxu0 0.0
      %2029 = vmatpush1.msra.mxu0 0.0
      %2030 = vmatprep.subr.mxu0 0.0
      %2031 = vmatpush1.msra.mxu0 0.0
      %2032 = vmatprep.subr.mxu0 0.0
      %2033 = vmatpush1.msra.mxu0 0.0
      %2034 = vmatprep.subr.mxu0 0.0
      %2035 = vmatpush1.msra.mxu0 0.0
      %2036 = vmatprep.subr.mxu0 0.0
      %2037 = vmatpush1.msra.mxu0 0.0
      %2038 = vmatprep.subr.mxu0 0.0
      %2039 = vmatpush1.msra.mxu0 0.0
      %2040 = vmatprep.subr.mxu0 0.0
      %2041 = vmatpush1.msra.mxu0 0.0
      %2042 = vmatprep.subr.mxu0 0.0
      %2043 = vmatpush1.msra.mxu0 0.0
      %2044 = vmatprep.subr.mxu0 0.0
      %2045 = vmatpush1.msra.mxu0 0.0
      %2046 = vmatprep.subr.mxu0 0.0
      %2047 = vmatpush1.msra.mxu0 0.0
      %2048 = vmatprep.subr.mxu0 0.0
      %2049 = vmatpush1.msra.mxu0 0.0
      %2050 = vmatprep.subr.mxu0 0.0
      %2051 = vmatpush1.msra.mxu0 0.0
      %2052 = vmatprep.subr.mxu0 0.0
      %2053 = vmatpush1.msra.mxu0 0.0
      %2054 = vmatprep.subr.mxu0 0.0
      %2055 = vmatpush1.msra.mxu0 0.0
      %2056 = vmatprep.subr.mxu0 0.0
      %2057 = vmatpush1.msra.mxu0 0.0
      %2058 = vmatprep.subr.mxu0 0.0
      %2059 = vmatpush1.msra.mxu0 0.0
      %2060 = vmatprep.subr.mxu0 0.0
      %2061 = vmatpush1.msra.mxu0 0.0
      %2062 = vmatprep.subr.mxu0 0.0
      %2063 = vmatpush1.msra.mxu0 0.0
      %2064 = vmatprep.subr.mxu0 0.0
      %2065 = vmatpush1.msra.mxu0 0.0
      %2066 = vmatprep.subr.mxu0 0.0
      %2067 = vmatpush1.msra.mxu0 0.0
      %2068 = vmatprep.subr.mxu0 0.0
      %2069 = vmatpush1.msra.mxu0 0.0
      %2070 = vmatprep.mubr.f32.mxu0 0.0
      %2071 = vmatmul.mubr.f32.gmra.mrb[0].mxu0 %v2004
      %v2072 = vpop.f32.mrb[0].mxu0
      %v2073 = vadd.f32 0.0, %v2072
      %v2074 = vpop.f32.mrb[0].mxu0
      %v2075 = vadd.f32 0.0, %v2074
      %2076 = vdwg.mxu0
      %v2077 = vmul.f32 %v2073, %v1771
      %v2078 = vmul.f32 %v2075, %v1775
      %v2079 = vadd.f32 %v1978, %v2077
      %v2080 = vadd.f32 %v1979, %v2078
      %s2081 = scalar_lea.vmem %s5, 48
      %v2082 = vld [vmem:[%s2081] sm:$0xff]
      %2083 = vrot.lane.b32.xlu0 %v1550, 96
      %v2084 = vpop.permute.xlu0 %2083
      %2085 = vrot.lane.b32.xlu0 %v1551, 96
      %v2086 = vpop.permute.xlu0 %2085
      %2087 = vrot.lane.b32.xlu0 %v1552, 96
      %v2088 = vpop.permute.xlu0 %2087
      %2089 = vrot.lane.b32.xlu0 %v1553, 96
      %v2090 = vpop.permute.xlu0 %2089
      %2091 = vrot.lane.b32.xlu0 %v1554, 96
      %v2092 = vpop.permute.xlu0 %2091
      %2093 = vrot.lane.b32.xlu0 %v1555, 96
      %v2094 = vpop.permute.xlu0 %2093
      %vm2095 = vcmask 785408
      %v2096 = vsel %vm2095, %v2084, %v2086
      %v2097 = vsel %vm2095, %v2086, %v2088
      %v2098 = vsel %vm2095, %v2090, %v2092
      %v2099 = vsel %vm2095, %v2092, %v2094
      %v2105 = vsel %vm1452, %v2082, 0
      %2107 = vmatprep.subr.mxu0 %v2097
      %2108 = vmatpush1.msra.mxu0 %v2096
      %2109 = vmatprep.subr.mxu0 %v2099
      %2110 = vmatpush1.msra.mxu0 %v2098
      %2111 = vmatprep.subr.mxu0 0.0
      %2112 = vmatpush1.msra.mxu0 0.0
      %2113 = vmatprep.subr.mxu0 0.0
      %2114 = vmatpush1.msra.mxu0 0.0
      %2115 = vmatprep.subr.mxu0 0.0
      %2116 = vmatpush1.msra.mxu0 0.0
      %2117 = vmatprep.subr.mxu0 0.0
      %2118 = vmatpush1.msra.mxu0 0.0
      %2119 = vmatprep.subr.mxu0 0.0
      %2120 = vmatpush1.msra.mxu0 0.0
      %2121 = vmatprep.subr.mxu0 0.0
      %2122 = vmatpush1.msra.mxu0 0.0
      %2123 = vmatprep.subr.mxu0 0.0
      %2124 = vmatpush1.msra.mxu0 0.0
      %2125 = vmatprep.subr.mxu0 0.0
      %2126 = vmatpush1.msra.mxu0 0.0
      %2127 = vmatprep.subr.mxu0 0.0
      %2128 = vmatpush1.msra.mxu0 0.0
      %2129 = vmatprep.subr.mxu0 0.0
      %2130 = vmatpush1.msra.mxu0 0.0
      %2131 = vmatprep.subr.mxu0 0.0
      %2132 = vmatpush1.msra.mxu0 0.0
      %2133 = vmatprep.subr.mxu0 0.0
      %2134 = vmatpush1.msra.mxu0 0.0
      %2135 = vmatprep.subr.mxu0 0.0
      %2136 = vmatpush1.msra.mxu0 0.0
      %2137 = vmatprep.subr.mxu0 0.0
      %2138 = vmatpush1.msra.mxu0 0.0
      %2139 = vmatprep.subr.mxu0 0.0
      %2140 = vmatpush1.msra.mxu0 0.0
      %2141 = vmatprep.subr.mxu0 0.0
      %2142 = vmatpush1.msra.mxu0 0.0
      %2143 = vmatprep.subr.mxu0 0.0
      %2144 = vmatpush1.msra.mxu0 0.0
      %2145 = vmatprep.subr.mxu0 0.0
      %2146 = vmatpush1.msra.mxu0 0.0
      %2147 = vmatprep.subr.mxu0 0.0
      %2148 = vmatpush1.msra.mxu0 0.0
      %2149 = vmatprep.subr.mxu0 0.0
      %2150 = vmatpush1.msra.mxu0 0.0
      %2151 = vmatprep.subr.mxu0 0.0
      %2152 = vmatpush1.msra.mxu0 0.0
      %2153 = vmatprep.subr.mxu0 0.0
      %2154 = vmatpush1.msra.mxu0 0.0
      %2155 = vmatprep.subr.mxu0 0.0
      %2156 = vmatpush1.msra.mxu0 0.0
      %2157 = vmatprep.subr.mxu0 0.0
      %2158 = vmatpush1.msra.mxu0 0.0
      %2159 = vmatprep.subr.mxu0 0.0
      %2160 = vmatpush1.msra.mxu0 0.0
      %2161 = vmatprep.subr.mxu0 0.0
      %2162 = vmatpush1.msra.mxu0 0.0
      %2163 = vmatprep.subr.mxu0 0.0
      %2164 = vmatpush1.msra.mxu0 0.0
      %2165 = vmatprep.subr.mxu0 0.0
      %2166 = vmatpush1.msra.mxu0 0.0
      %2167 = vmatprep.subr.mxu0 0.0
      %2168 = vmatpush1.msra.mxu0 0.0
      %2169 = vmatprep.subr.mxu0 0.0
      %2170 = vmatpush1.msra.mxu0 0.0
      %2171 = vmatprep.mubr.f32.mxu0 0.0
      %2172 = vmatmul.mubr.f32.gmra.mrb[0].mxu0 %v2105
      %v2173 = vpop.f32.mrb[0].mxu0
      %v2174 = vadd.f32 0.0, %v2173
      %v2175 = vpop.f32.mrb[0].mxu0
      %v2176 = vadd.f32 0.0, %v2175
      %2177 = vdwg.mxu0
      %v2178 = vmul.f32 %v2174, %v1541
      %v2179 = vmul.f32 %v2176, %v1545
      %v2180 = vadd.f32 %v2079, %v2178
      %v2181 = vadd.f32 %v2080, %v2179
      %s2182 = scalar_lea.vmem %s5, 56
      %v2183 = vld [vmem:[%s2182] sm:$0xff]
      %2184 = vrot.lane.b32.xlu0 %v1550, 95
      %v2185 = vpop.permute.xlu0 %2184
      %2186 = vrot.lane.b32.xlu0 %v1551, 95
      %v2187 = vpop.permute.xlu0 %2186
      %2188 = vrot.lane.b32.xlu0 %v1552, 95
      %v2189 = vpop.permute.xlu0 %2188
      %2190 = vrot.lane.b32.xlu0 %v1553, 95
      %v2191 = vpop.permute.xlu0 %2190
      %2192 = vrot.lane.b32.xlu0 %v1554, 95
      %v2193 = vpop.permute.xlu0 %2192
      %2194 = vrot.lane.b32.xlu0 %v1555, 95
      %v2195 = vpop.permute.xlu0 %2194
      %vm2196 = vcmask 777216
      %v2197 = vsel %vm2196, %v2185, %v2187
      %v2198 = vsel %vm2196, %v2187, %v2189
      %v2199 = vsel %vm2196, %v2191, %v2193
      %v2200 = vsel %vm2196, %v2193, %v2195
      %v2206 = vsel %vm1452, %v2183, 0
      %2208 = vmatprep.subr.mxu0 %v2198
      %2209 = vmatpush1.msra.mxu0 %v2197
      %2210 = vmatprep.subr.mxu0 %v2200
      %2211 = vmatpush1.msra.mxu0 %v2199
      %2212 = vmatprep.subr.mxu0 0.0
      %2213 = vmatpush1.msra.mxu0 0.0
      %2214 = vmatprep.subr.mxu0 0.0
      %2215 = vmatpush1.msra.mxu0 0.0
      %2216 = vmatprep.subr.mxu0 0.0
      %2217 = vmatpush1.msra.mxu0 0.0
      %2218 = vmatprep.subr.mxu0 0.0
      %2219 = vmatpush1.msra.mxu0 0.0
      %2220 = vmatprep.subr.mxu0 0.0
      %2221 = vmatpush1.msra.mxu0 0.0
      %2222 = vmatprep.subr.mxu0 0.0
      %2223 = vmatpush1.msra.mxu0 0.0
      %2224 = vmatprep.subr.mxu0 0.0
      %2225 = vmatpush1.msra.mxu0 0.0
      %2226 = vmatprep.subr.mxu0 0.0
      %2227 = vmatpush1.msra.mxu0 0.0
      %2228 = vmatprep.subr.mxu0 0.0
      %2229 = vmatpush1.msra.mxu0 0.0
      %2230 = vmatprep.subr.mxu0 0.0
      %2231 = vmatpush1.msra.mxu0 0.0
      %2232 = vmatprep.subr.mxu0 0.0
      %2233 = vmatpush1.msra.mxu0 0.0
      %2234 = vmatprep.subr.mxu0 0.0
      %2235 = vmatpush1.msra.mxu0 0.0
      %2236 = vmatprep.subr.mxu0 0.0
      %2237 = vmatpush1.msra.mxu0 0.0
      %2238 = vmatprep.subr.mxu0 0.0
      %2239 = vmatpush1.msra.mxu0 0.0
      %2240 = vmatprep.subr.mxu0 0.0
      %2241 = vmatpush1.msra.mxu0 0.0
      %2242 = vmatprep.subr.mxu0 0.0
      %2243 = vmatpush1.msra.mxu0 0.0
      %2244 = vmatprep.subr.mxu0 0.0
      %2245 = vmatpush1.msra.mxu0 0.0
      %2246 = vmatprep.subr.mxu0 0.0
      %2247 = vmatpush1.msra.mxu0 0.0
      %2248 = vmatprep.subr.mxu0 0.0
      %2249 = vmatpush1.msra.mxu0 0.0
      %2250 = vmatprep.subr.mxu0 0.0
      %2251 = vmatpush1.msra.mxu0 0.0
      %2252 = vmatprep.subr.mxu0 0.0
      %2253 = vmatpush1.msra.mxu0 0.0
      %2254 = vmatprep.subr.mxu0 0.0
      %2255 = vmatpush1.msra.mxu0 0.0
      %2256 = vmatprep.subr.mxu0 0.0
      %2257 = vmatpush1.msra.mxu0 0.0
      %2258 = vmatprep.subr.mxu0 0.0
      %2259 = vmatpush1.msra.mxu0 0.0
      %2260 = vmatprep.subr.mxu0 0.0
      %2261 = vmatpush1.msra.mxu0 0.0
      %2262 = vmatprep.subr.mxu0 0.0
      %2263 = vmatpush1.msra.mxu0 0.0
      %2264 = vmatprep.subr.mxu0 0.0
      %2265 = vmatpush1.msra.mxu0 0.0
      %2266 = vmatprep.subr.mxu0 0.0
      %2267 = vmatpush1.msra.mxu0 0.0
      %2268 = vmatprep.subr.mxu0 0.0
      %2269 = vmatpush1.msra.mxu0 0.0
      %2270 = vmatprep.subr.mxu0 0.0
      %2271 = vmatpush1.msra.mxu0 0.0
      %2272 = vmatprep.mubr.f32.mxu0 0.0
      %2273 = vmatmul.mubr.f32.gmra.mrb[0].mxu0 %v2206
      %v2274 = vpop.f32.mrb[0].mxu0
      %v2275 = vadd.f32 0.0, %v2274
      %v2276 = vpop.f32.mrb[0].mxu0
      %v2277 = vadd.f32 0.0, %v2276
      %2278 = vdwg.mxu0
      %v2279 = vadd.f32 %v2180, %v2275
      %v2280 = vadd.f32 %v2181, %v2277
      %s2281 = scalar_lea.vmem %s5, 64
      %v2282 = vld [vmem:[%s2281] sm:$0xff]
      %2283 = vrot.lane.b32.xlu0 %v1550, 94
      %v2284 = vpop.permute.xlu0 %2283
      %2285 = vrot.lane.b32.xlu0 %v1551, 94
      %v2286 = vpop.permute.xlu0 %2285
      %2287 = vrot.lane.b32.xlu0 %v1552, 94
      %v2288 = vpop.permute.xlu0 %2287
      %2289 = vrot.lane.b32.xlu0 %v1553, 94
      %v2290 = vpop.permute.xlu0 %2289
      %2291 = vrot.lane.b32.xlu0 %v1554, 94
      %v2292 = vpop.permute.xlu0 %2291
      %2293 = vrot.lane.b32.xlu0 %v1555, 94
      %v2294 = vpop.permute.xlu0 %2293
      %vm2295 = vcmask 769024
      %v2296 = vsel %vm2295, %v2284, %v2286
      %v2297 = vsel %vm2295, %v2286, %v2288
      %v2298 = vsel %vm2295, %v2290, %v2292
      %v2299 = vsel %vm2295, %v2292, %v2294
      %v2305 = vsel %vm1452, %v2282, 0
      %2307 = vmatprep.subr.mxu0 %v2297
      %2308 = vmatpush1.msra.mxu0 %v2296
      %2309 = vmatprep.subr.mxu0 %v2299
      %2310 = vmatpush1.msra.mxu0 %v2298
      %2311 = vmatprep.subr.mxu0 0.0
      %2312 = vmatpush1.msra.mxu0 0.0
      %2313 = vmatprep.subr.mxu0 0.0
      %2314 = vmatpush1.msra.mxu0 0.0
      %2315 = vmatprep.subr.mxu0 0.0
      %2316 = vmatpush1.msra.mxu0 0.0
      %2317 = vmatprep.subr.mxu0 0.0
      %2318 = vmatpush1.msra.mxu0 0.0
      %2319 = vmatprep.subr.mxu0 0.0
      %2320 = vmatpush1.msra.mxu0 0.0
      %2321 = vmatprep.subr.mxu0 0.0
      %2322 = vmatpush1.msra.mxu0 0.0
      %2323 = vmatprep.subr.mxu0 0.0
      %2324 = vmatpush1.msra.mxu0 0.0
      %2325 = vmatprep.subr.mxu0 0.0
      %2326 = vmatpush1.msra.mxu0 0.0
      %2327 = vmatprep.subr.mxu0 0.0
      %2328 = vmatpush1.msra.mxu0 0.0
      %2329 = vmatprep.subr.mxu0 0.0
      %2330 = vmatpush1.msra.mxu0 0.0
      %2331 = vmatprep.subr.mxu0 0.0
      %2332 = vmatpush1.msra.mxu0 0.0
      %2333 = vmatprep.subr.mxu0 0.0
      %2334 = vmatpush1.msra.mxu0 0.0
      %2335 = vmatprep.subr.mxu0 0.0
      %2336 = vmatpush1.msra.mxu0 0.0
      %2337 = vmatprep.subr.mxu0 0.0
      %2338 = vmatpush1.msra.mxu0 0.0
      %2339 = vmatprep.subr.mxu0 0.0
      %2340 = vmatpush1.msra.mxu0 0.0
      %2341 = vmatprep.subr.mxu0 0.0
      %2342 = vmatpush1.msra.mxu0 0.0
      %2343 = vmatprep.subr.mxu0 0.0
      %2344 = vmatpush1.msra.mxu0 0.0
      %2345 = vmatprep.subr.mxu0 0.0
      %2346 = vmatpush1.msra.mxu0 0.0
      %2347 = vmatprep.subr.mxu0 0.0
      %2348 = vmatpush1.msra.mxu0 0.0
      %2349 = vmatprep.subr.mxu0 0.0
      %2350 = vmatpush1.msra.mxu0 0.0
      %2351 = vmatprep.subr.mxu0 0.0
      %2352 = vmatpush1.msra.mxu0 0.0
      %2353 = vmatprep.subr.mxu0 0.0
      %2354 = vmatpush1.msra.mxu0 0.0
      %2355 = vmatprep.subr.mxu0 0.0
      %2356 = vmatpush1.msra.mxu0 0.0
      %2357 = vmatprep.subr.mxu0 0.0
      %2358 = vmatpush1.msra.mxu0 0.0
      %2359 = vmatprep.subr.mxu0 0.0
      %2360 = vmatpush1.msra.mxu0 0.0
      %2361 = vmatprep.subr.mxu0 0.0
      %2362 = vmatpush1.msra.mxu0 0.0
      %2363 = vmatprep.subr.mxu0 0.0
      %2364 = vmatpush1.msra.mxu0 0.0
      %2365 = vmatprep.subr.mxu0 0.0
      %2366 = vmatpush1.msra.mxu0 0.0
      %2367 = vmatprep.subr.mxu0 0.0
      %2368 = vmatpush1.msra.mxu0 0.0
      %2369 = vmatprep.subr.mxu0 0.0
      %2370 = vmatpush1.msra.mxu0 0.0
      %2371 = vmatprep.mubr.f32.mxu0 0.0
      %2372 = vmatmul.mubr.f32.gmra.mrb[0].mxu0 %v2305
      %v2373 = vpop.f32.mrb[0].mxu0
      %v2374 = vadd.f32 0.0, %v2373
      %v2375 = vpop.f32.mrb[0].mxu0
      %v2376 = vadd.f32 0.0, %v2375
      %2377 = vdwg.mxu0
      %v2378 = vmul.f32 %v2374, %v1771
      %v2379 = vmul.f32 %v2376, %v1775
      %v2380 = vadd.f32 %v2279, %v2378
      %v2381 = vadd.f32 %v2280, %v2379
      %v2382 = vld [vmem:[%s6] sm:$0xff]
      %2384 = vset.pattern.permute.xlu0 0
      %2385 = vperm.xlu0 %2384, %v2382
      %v2386 = vpop.permute.xlu0 %2385
      %v2388 = vadd.f32 %v2380, %v2386
      %v2389 = vadd.f32 %v2381, %v2386
      %v2390 = vmax.f32 %v2388, 0.0
      %v2391 = vmax.f32 %v2389, 0.0
      %2392 = vst [vmem:[#allocation3] sm:$0xff] 0.0
      %2393 = vst [vmem:[#allocation3 + $0x8] sm:$0xff] 0.0
      %2394 = vst.msk [vmem:[#allocation3 + $0x10] sm:$0xff] %vm1102, 0.0
      %2397 = vrot.lane.b32.xlu0 %v2390, 17
      %v2398 = vpop.permute.xlu0 %2397
      %2399 = vrot.lane.b32.xlu0 %v2391, 17
      %v2400 = vpop.permute.xlu0 %2399
      %v2401 = vsel %vm1115, %v2398, %v2400
      %2405 = vst.msk [vmem:[#allocation3] sm:$0xff] %vm1120, %v2398
      %2406 = vst [vmem:[#allocation3 + $0x8] sm:$0xff] %v2401
      %2407 = vst.msk [vmem:[#allocation3 + $0x10] sm:$0xff] %vm1115, %v2400
      %v2408 = vld [vmem:[#allocation3] sm:$0xff]
      %v2409 = vld [vmem:[#allocation3 + $0x8] sm:$0xff]
      %v2410 = vld [vmem:[%s7] sm:$0xff]
      %v2412 = vsel %vm362, %v2410, 0
      %2414 = vmatprep.subr.mxu0 %v2409
      %2415 = vmatpush1.msra.mxu0 %v2408
      %2416 = vmatprep.subr.mxu0 0.0
      %2417 = vmatpush1.msra.mxu0 0.0
      %2418 = vmatprep.subr.mxu0 0.0
      %2419 = vmatpush1.msra.mxu0 0.0
      %2420 = vmatprep.subr.mxu0 0.0
      %2421 = vmatpush1.msra.mxu0 0.0
      %2422 = vmatprep.subr.mxu0 0.0
      %2423 = vmatpush1.msra.mxu0 0.0
      %2424 = vmatprep.subr.mxu0 0.0
      %2425 = vmatpush1.msra.mxu0 0.0
      %2426 = vmatprep.subr.mxu0 0.0
      %2427 = vmatpush1.msra.mxu0 0.0
      %2428 = vmatprep.subr.mxu0 0.0
      %2429 = vmatpush1.msra.mxu0 0.0
      %2430 = vmatprep.subr.mxu0 0.0
      %2431 = vmatpush1.msra.mxu0 0.0
      %2432 = vmatprep.subr.mxu0 0.0
      %2433 = vmatpush1.msra.mxu0 0.0
      %2434 = vmatprep.subr.mxu0 0.0
      %2435 = vmatpush1.msra.mxu0 0.0
      %2436 = vmatprep.subr.mxu0 0.0
      %2437 = vmatpush1.msra.mxu0 0.0
      %2438 = vmatprep.subr.mxu0 0.0
      %2439 = vmatpush1.msra.mxu0 0.0
      %2440 = vmatprep.subr.mxu0 0.0
      %2441 = vmatpush1.msra.mxu0 0.0
      %2442 = vmatprep.subr.mxu0 0.0
      %2443 = vmatpush1.msra.mxu0 0.0
      %2444 = vmatprep.subr.mxu0 0.0
      %2445 = vmatpush1.msra.mxu0 0.0
      %2446 = vmatprep.subr.mxu0 0.0
      %2447 = vmatpush1.msra.mxu0 0.0
      %2448 = vmatprep.subr.mxu0 0.0
      %2449 = vmatpush1.msra.mxu0 0.0
      %2450 = vmatprep.subr.mxu0 0.0
      %2451 = vmatpush1.msra.mxu0 0.0
      %2452 = vmatprep.subr.mxu0 0.0
      %2453 = vmatpush1.msra.mxu0 0.0
      %2454 = vmatprep.subr.mxu0 0.0
      %2455 = vmatpush1.msra.mxu0 0.0
      %2456 = vmatprep.subr.mxu0 0.0
      %2457 = vmatpush1.msra.mxu0 0.0
      %2458 = vmatprep.subr.mxu0 0.0
      %2459 = vmatpush1.msra.mxu0 0.0
      %2460 = vmatprep.subr.mxu0 0.0
      %2461 = vmatpush1.msra.mxu0 0.0
      %2462 = vmatprep.subr.mxu0 0.0
      %2463 = vmatpush1.msra.mxu0 0.0
      %2464 = vmatprep.subr.mxu0 0.0
      %2465 = vmatpush1.msra.mxu0 0.0
      %2466 = vmatprep.subr.mxu0 0.0
      %2467 = vmatpush1.msra.mxu0 0.0
      %2468 = vmatprep.subr.mxu0 0.0
      %2469 = vmatpush1.msra.mxu0 0.0
      %2470 = vmatprep.subr.mxu0 0.0
      %2471 = vmatpush1.msra.mxu0 0.0
      %2472 = vmatprep.subr.mxu0 0.0
      %2473 = vmatpush1.msra.mxu0 0.0
      %2474 = vmatprep.subr.mxu0 0.0
      %2475 = vmatpush1.msra.mxu0 0.0
      %2476 = vmatprep.subr.mxu0 0.0
      %2477 = vmatpush1.msra.mxu0 0.0
      %2478 = vmatprep.mubr.f32.mxu0 0.0
      %2479 = vmatmul.mubr.f32.gmra.mrb[0].mxu0 %v2412
      %v2480 = vpop.f32.mrb[0].mxu0
      %v2481 = vadd.f32 0.0, %v2480
      %v2482 = vpop.f32.mrb[0].mxu0
      %v2483 = vadd.f32 0.0, %v2482
      %2484 = vdwg.mxu0
      %v2485 = vmul.f32 %v2481, %v1541
      %v2486 = vmul.f32 %v2483, %v1545
      %v2487 = vadd.f32 %v2485, 0.0
      %v2488 = vadd.f32 %v2486, 0.0
      %v2489 = vld [vmem:[#allocation3] sm:$0xff]
      %v2490 = vld [vmem:[#allocation3 + $0x8] sm:$0xff]
      %v2491 = vld [vmem:[#allocation3 + $0x10] sm:$0xff]
      %s2492 = scalar_lea.vmem %s7, 8
      %v2493 = vld [vmem:[%s2492] sm:$0xff]
      %2497 = vrot.lane.b32.xlu0 %v2489, 127
      %v2498 = vpop.permute.xlu0 %2497
      %2499 = vrot.lane.b32.xlu0 %v2490, 127
      %v2500 = vpop.permute.xlu0 %2499
      %2501 = vrot.lane.b32.xlu0 %v2491, 127
      %v2502 = vpop.permute.xlu0 %2501
      %v2503 = vsel %vm1576, %v2498, %v2500
      %v2504 = vsel %vm1576, %v2500, %v2502
      %v2508 = vsel %vm362, %v2493, 0
      %2510 = vmatprep.subr.mxu0 %v2504
      %2511 = vmatpush1.msra.mxu0 %v2503
      %2512 = vmatprep.subr.mxu0 0.0
      %2513 = vmatpush1.msra.mxu0 0.0
      %2514 = vmatprep.subr.mxu0 0.0
      %2515 = vmatpush1.msra.mxu0 0.0
      %2516 = vmatprep.subr.mxu0 0.0
      %2517 = vmatpush1.msra.mxu0 0.0
      %2518 = vmatprep.subr.mxu0 0.0
      %2519 = vmatpush1.msra.mxu0 0.0
      %2520 = vmatprep.subr.mxu0 0.0
      %2521 = vmatpush1.msra.mxu0 0.0
      %2522 = vmatprep.subr.mxu0 0.0
      %2523 = vmatpush1.msra.mxu0 0.0
      %2524 = vmatprep.subr.mxu0 0.0
      %2525 = vmatpush1.msra.mxu0 0.0
      %2526 = vmatprep.subr.mxu0 0.0
      %2527 = vmatpush1.msra.mxu0 0.0
      %2528 = vmatprep.subr.mxu0 0.0
      %2529 = vmatpush1.msra.mxu0 0.0
      %2530 = vmatprep.subr.mxu0 0.0
      %2531 = vmatpush1.msra.mxu0 0.0
      %2532 = vmatprep.subr.mxu0 0.0
      %2533 = vmatpush1.msra.mxu0 0.0
      %2534 = vmatprep.subr.mxu0 0.0
      %2535 = vmatpush1.msra.mxu0 0.0
      %2536 = vmatprep.subr.mxu0 0.0
      %2537 = vmatpush1.msra.mxu0 0.0
      %2538 = vmatprep.subr.mxu0 0.0
      %2539 = vmatpush1.msra.mxu0 0.0
      %2540 = vmatprep.subr.mxu0 0.0
      %2541 = vmatpush1.msra.mxu0 0.0
      %2542 = vmatprep.subr.mxu0 0.0
      %2543 = vmatpush1.msra.mxu0 0.0
      %2544 = vmatprep.subr.mxu0 0.0
      %2545 = vmatpush1.msra.mxu0 0.0
      %2546 = vmatprep.subr.mxu0 0.0
      %2547 = vmatpush1.msra.mxu0 0.0
      %2548 = vmatprep.subr.mxu0 0.0
      %2549 = vmatpush1.msra.mxu0 0.0
      %2550 = vmatprep.subr.mxu0 0.0
      %2551 = vmatpush1.msra.mxu0 0.0
      %2552 = vmatprep.subr.mxu0 0.0
      %2553 = vmatpush1.msra.mxu0 0.0
      %2554 = vmatprep.subr.mxu0 0.0
      %2555 = vmatpush1.msra.mxu0 0.0
      %2556 = vmatprep.subr.mxu0 0.0
      %2557 = vmatpush1.msra.mxu0 0.0
      %2558 = vmatprep.subr.mxu0 0.0
      %2559 = vmatpush1.msra.mxu0 0.0
      %2560 = vmatprep.subr.mxu0 0.0
      %2561 = vmatpush1.msra.mxu0 0.0
      %2562 = vmatprep.subr.mxu0 0.0
      %2563 = vmatpush1.msra.mxu0 0.0
      %2564 = vmatprep.subr.mxu0 0.0
      %2565 = vmatpush1.msra.mxu0 0.0
      %2566 = vmatprep.subr.mxu0 0.0
      %2567 = vmatpush1.msra.mxu0 0.0
      %2568 = vmatprep.subr.mxu0 0.0
      %2569 = vmatpush1.msra.mxu0 0.0
      %2570 = vmatprep.subr.mxu0 0.0
      %2571 = vmatpush1.msra.mxu0 0.0
      %2572 = vmatprep.subr.mxu0 0.0
      %2573 = vmatpush1.msra.mxu0 0.0
      %2574 = vmatprep.mubr.f32.mxu0 0.0
      %2575 = vmatmul.mubr.f32.gmra.mrb[0].mxu0 %v2508
      %v2576 = vpop.f32.mrb[0].mxu0
      %v2577 = vadd.f32 0.0, %v2576
      %v2578 = vpop.f32.mrb[0].mxu0
      %v2579 = vadd.f32 0.0, %v2578
      %2580 = vdwg.mxu0
      %v2581 = vadd.f32 %v2487, %v2577
      %v2582 = vadd.f32 %v2488, %v2579
      %s2583 = scalar_lea.vmem %s7, 16
      %v2584 = vld [vmem:[%s2583] sm:$0xff]
      %2585 = vrot.lane.b32.xlu0 %v2489, 126
      %v2586 = vpop.permute.xlu0 %2585
      %2587 = vrot.lane.b32.xlu0 %v2490, 126
      %v2588 = vpop.permute.xlu0 %2587
      %2589 = vrot.lane.b32.xlu0 %v2491, 126
      %v2590 = vpop.permute.xlu0 %2589
      %v2591 = vsel %vm1675, %v2586, %v2588
      %v2592 = vsel %vm1675, %v2588, %v2590
      %v2596 = vsel %vm362, %v2584, 0
      %2598 = vmatprep.subr.mxu0 %v2592
      %2599 = vmatpush1.msra.mxu0 %v2591
      %2600 = vmatprep.subr.mxu0 0.0
      %2601 = vmatpush1.msra.mxu0 0.0
      %2602 = vmatprep.subr.mxu0 0.0
      %2603 = vmatpush1.msra.mxu0 0.0
      %2604 = vmatprep.subr.mxu0 0.0
      %2605 = vmatpush1.msra.mxu0 0.0
      %2606 = vmatprep.subr.mxu0 0.0
      %2607 = vmatpush1.msra.mxu0 0.0
      %2608 = vmatprep.subr.mxu0 0.0
      %2609 = vmatpush1.msra.mxu0 0.0
      %2610 = vmatprep.subr.mxu0 0.0
      %2611 = vmatpush1.msra.mxu0 0.0
      %2612 = vmatprep.subr.mxu0 0.0
      %2613 = vmatpush1.msra.mxu0 0.0
      %2614 = vmatprep.subr.mxu0 0.0
      %2615 = vmatpush1.msra.mxu0 0.0
      %2616 = vmatprep.subr.mxu0 0.0
      %2617 = vmatpush1.msra.mxu0 0.0
      %2618 = vmatprep.subr.mxu0 0.0
      %2619 = vmatpush1.msra.mxu0 0.0
      %2620 = vmatprep.subr.mxu0 0.0
      %2621 = vmatpush1.msra.mxu0 0.0
      %2622 = vmatprep.subr.mxu0 0.0
      %2623 = vmatpush1.msra.mxu0 0.0
      %2624 = vmatprep.subr.mxu0 0.0
      %2625 = vmatpush1.msra.mxu0 0.0
      %2626 = vmatprep.subr.mxu0 0.0
      %2627 = vmatpush1.msra.mxu0 0.0
      %2628 = vmatprep.subr.mxu0 0.0
      %2629 = vmatpush1.msra.mxu0 0.0
      %2630 = vmatprep.subr.mxu0 0.0
      %2631 = vmatpush1.msra.mxu0 0.0
      %2632 = vmatprep.subr.mxu0 0.0
      %2633 = vmatpush1.msra.mxu0 0.0
      %2634 = vmatprep.subr.mxu0 0.0
      %2635 = vmatpush1.msra.mxu0 0.0
      %2636 = vmatprep.subr.mxu0 0.0
      %2637 = vmatpush1.msra.mxu0 0.0
      %2638 = vmatprep.subr.mxu0 0.0
      %2639 = vmatpush1.msra.mxu0 0.0
      %2640 = vmatprep.subr.mxu0 0.0
      %2641 = vmatpush1.msra.mxu0 0.0
      %2642 = vmatprep.subr.mxu0 0.0
      %2643 = vmatpush1.msra.mxu0 0.0
      %2644 = vmatprep.subr.mxu0 0.0
      %2645 = vmatpush1.msra.mxu0 0.0
      %2646 = vmatprep.subr.mxu0 0.0
      %2647 = vmatpush1.msra.mxu0 0.0
      %2648 = vmatprep.subr.mxu0 0.0
      %2649 = vmatpush1.msra.mxu0 0.0
      %2650 = vmatprep.subr.mxu0 0.0
      %2651 = vmatpush1.msra.mxu0 0.0
      %2652 = vmatprep.subr.mxu0 0.0
      %2653 = vmatpush1.msra.mxu0 0.0
      %2654 = vmatprep.subr.mxu0 0.0
      %2655 = vmatpush1.msra.mxu0 0.0
      %2656 = vmatprep.subr.mxu0 0.0
      %2657 = vmatpush1.msra.mxu0 0.0
      %2658 = vmatprep.subr.mxu0 0.0
      %2659 = vmatpush1.msra.mxu0 0.0
      %2660 = vmatprep.subr.mxu0 0.0
      %2661 = vmatpush1.msra.mxu0 0.0
      %2662 = vmatprep.mubr.f32.mxu0 0.0
      %2663 = vmatmul.mubr.f32.gmra.mrb[0].mxu0 %v2596
      %v2664 = vpop.f32.mrb[0].mxu0
      %v2665 = vadd.f32 0.0, %v2664
      %v2666 = vpop.f32.mrb[0].mxu0
      %v2667 = vadd.f32 0.0, %v2666
      %2668 = vdwg.mxu0
      %v2669 = vmul.f32 %v2665, %v1771
      %v2670 = vmul.f32 %v2667, %v1775
      %v2671 = vadd.f32 %v2581, %v2669
      %v2672 = vadd.f32 %v2582, %v2670
      %s2673 = scalar_lea.vmem %s7, 24
      %v2674 = vld [vmem:[%s2673] sm:$0xff]
      %2675 = vrot.lane.b32.xlu0 %v2489, 112
      %v2676 = vpop.permute.xlu0 %2675
      %2677 = vrot.lane.b32.xlu0 %v2490, 112
      %v2678 = vpop.permute.xlu0 %2677
      %2679 = vrot.lane.b32.xlu0 %v2491, 112
      %v2680 = vpop.permute.xlu0 %2679
      %v2681 = vsel %vm1794, %v2676, %v2678
      %v2682 = vsel %vm1794, %v2678, %v2680
      %v2686 = vsel %vm362, %v2674, 0
      %2688 = vmatprep.subr.mxu0 %v2682
      %2689 = vmatpush1.msra.mxu0 %v2681
      %2690 = vmatprep.subr.mxu0 0.0
      %2691 = vmatpush1.msra.mxu0 0.0
      %2692 = vmatprep.subr.mxu0 0.0
      %2693 = vmatpush1.msra.mxu0 0.0
      %2694 = vmatprep.subr.mxu0 0.0
      %2695 = vmatpush1.msra.mxu0 0.0
      %2696 = vmatprep.subr.mxu0 0.0
      %2697 = vmatpush1.msra.mxu0 0.0
      %2698 = vmatprep.subr.mxu0 0.0
      %2699 = vmatpush1.msra.mxu0 0.0
      %2700 = vmatprep.subr.mxu0 0.0
      %2701 = vmatpush1.msra.mxu0 0.0
      %2702 = vmatprep.subr.mxu0 0.0
      %2703 = vmatpush1.msra.mxu0 0.0
      %2704 = vmatprep.subr.mxu0 0.0
      %2705 = vmatpush1.msra.mxu0 0.0
      %2706 = vmatprep.subr.mxu0 0.0
      %2707 = vmatpush1.msra.mxu0 0.0
      %2708 = vmatprep.subr.mxu0 0.0
      %2709 = vmatpush1.msra.mxu0 0.0
      %2710 = vmatprep.subr.mxu0 0.0
      %2711 = vmatpush1.msra.mxu0 0.0
      %2712 = vmatprep.subr.mxu0 0.0
      %2713 = vmatpush1.msra.mxu0 0.0
      %2714 = vmatprep.subr.mxu0 0.0
      %2715 = vmatpush1.msra.mxu0 0.0
      %2716 = vmatprep.subr.mxu0 0.0
      %2717 = vmatpush1.msra.mxu0 0.0
      %2718 = vmatprep.subr.mxu0 0.0
      %2719 = vmatpush1.msra.mxu0 0.0
      %2720 = vmatprep.subr.mxu0 0.0
      %2721 = vmatpush1.msra.mxu0 0.0
      %2722 = vmatprep.subr.mxu0 0.0
      %2723 = vmatpush1.msra.mxu0 0.0
      %2724 = vmatprep.subr.mxu0 0.0
      %2725 = vmatpush1.msra.mxu0 0.0
      %2726 = vmatprep.subr.mxu0 0.0
      %2727 = vmatpush1.msra.mxu0 0.0
      %2728 = vmatprep.subr.mxu0 0.0
      %2729 = vmatpush1.msra.mxu0 0.0
      %2730 = vmatprep.subr.mxu0 0.0
      %2731 = vmatpush1.msra.mxu0 0.0
      %2732 = vmatprep.subr.mxu0 0.0
      %2733 = vmatpush1.msra.mxu0 0.0
      %2734 = vmatprep.subr.mxu0 0.0
      %2735 = vmatpush1.msra.mxu0 0.0
      %2736 = vmatprep.subr.mxu0 0.0
      %2737 = vmatpush1.msra.mxu0 0.0
      %2738 = vmatprep.subr.mxu0 0.0
      %2739 = vmatpush1.msra.mxu0 0.0
      %2740 = vmatprep.subr.mxu0 0.0
      %2741 = vmatpush1.msra.mxu0 0.0
      %2742 = vmatprep.subr.mxu0 0.0
      %2743 = vmatpush1.msra.mxu0 0.0
      %2744 = vmatprep.subr.mxu0 0.0
      %2745 = vmatpush1.msra.mxu0 0.0
      %2746 = vmatprep.subr.mxu0 0.0
      %2747 = vmatpush1.msra.mxu0 0.0
      %2748 = vmatprep.subr.mxu0 0.0
      %2749 = vmatpush1.msra.mxu0 0.0
      %2750 = vmatprep.subr.mxu0 0.0
      %2751 = vmatpush1.msra.mxu0 0.0
      %2752 = vmatprep.mubr.f32.mxu0 0.0
      %2753 = vmatmul.mubr.f32.gmra.mrb[0].mxu0 %v2686
      %v2754 = vpop.f32.mrb[0].mxu0
      %v2755 = vadd.f32 0.0, %v2754
      %v2756 = vpop.f32.mrb[0].mxu0
      %v2757 = vadd.f32 0.0, %v2756
      %2758 = vdwg.mxu0
      %v2759 = vmul.f32 %v2755, %v1541
      %v2760 = vmul.f32 %v2757, %v1545
      %v2761 = vadd.f32 %v2671, %v2759
      %v2762 = vadd.f32 %v2672, %v2760
      %s2763 = scalar_lea.vmem %s7, 32
      %v2764 = vld [vmem:[%s2763] sm:$0xff]
      %2765 = vrot.lane.b32.xlu0 %v2489, 111
      %v2766 = vpop.permute.xlu0 %2765
      %2767 = vrot.lane.b32.xlu0 %v2490, 111
      %v2768 = vpop.permute.xlu0 %2767
      %2769 = vrot.lane.b32.xlu0 %v2491, 111
      %v2770 = vpop.permute.xlu0 %2769
      %v2771 = vsel %vm1895, %v2766, %v2768
      %v2772 = vsel %vm1895, %v2768, %v2770
      %v2776 = vsel %vm362, %v2764, 0
      %2778 = vmatprep.subr.mxu0 %v2772
      %2779 = vmatpush1.msra.mxu0 %v2771
      %2780 = vmatprep.subr.mxu0 0.0
      %2781 = vmatpush1.msra.mxu0 0.0
      %2782 = vmatprep.subr.mxu0 0.0
      %2783 = vmatpush1.msra.mxu0 0.0
      %2784 = vmatprep.subr.mxu0 0.0
      %2785 = vmatpush1.msra.mxu0 0.0
      %2786 = vmatprep.subr.mxu0 0.0
      %2787 = vmatpush1.msra.mxu0 0.0
      %2788 = vmatprep.subr.mxu0 0.0
      %2789 = vmatpush1.msra.mxu0 0.0
      %2790 = vmatprep.subr.mxu0 0.0
      %2791 = vmatpush1.msra.mxu0 0.0
      %2792 = vmatprep.subr.mxu0 0.0
      %2793 = vmatpush1.msra.mxu0 0.0
      %2794 = vmatprep.subr.mxu0 0.0
      %2795 = vmatpush1.msra.mxu0 0.0
      %2796 = vmatprep.subr.mxu0 0.0
      %2797 = vmatpush1.msra.mxu0 0.0
      %2798 = vmatprep.subr.mxu0 0.0
      %2799 = vmatpush1.msra.mxu0 0.0
      %2800 = vmatprep.subr.mxu0 0.0
      %2801 = vmatpush1.msra.mxu0 0.0
      %2802 = vmatprep.subr.mxu0 0.0
      %2803 = vmatpush1.msra.mxu0 0.0
      %2804 = vmatprep.subr.mxu0 0.0
      %2805 = vmatpush1.msra.mxu0 0.0
      %2806 = vmatprep.subr.mxu0 0.0
      %2807 = vmatpush1.msra.mxu0 0.0
      %2808 = vmatprep.subr.mxu0 0.0
      %2809 = vmatpush1.msra.mxu0 0.0
      %2810 = vmatprep.subr.mxu0 0.0
      %2811 = vmatpush1.msra.mxu0 0.0
      %2812 = vmatprep.subr.mxu0 0.0
      %2813 = vmatpush1.msra.mxu0 0.0
      %2814 = vmatprep.subr.mxu0 0.0
      %2815 = vmatpush1.msra.mxu0 0.0
      %2816 = vmatprep.subr.mxu0 0.0
      %2817 = vmatpush1.msra.mxu0 0.0
      %2818 = vmatprep.subr.mxu0 0.0
      %2819 = vmatpush1.msra.mxu0 0.0
      %2820 = vmatprep.subr.mxu0 0.0
      %2821 = vmatpush1.msra.mxu0 0.0
      %2822 = vmatprep.subr.mxu0 0.0
      %2823 = vmatpush1.msra.mxu0 0.0
      %2824 = vmatprep.subr.mxu0 0.0
      %2825 = vmatpush1.msra.mxu0 0.0
      %2826 = vmatprep.subr.mxu0 0.0
      %2827 = vmatpush1.msra.mxu0 0.0
      %2828 = vmatprep.subr.mxu0 0.0
      %2829 = vmatpush1.msra.mxu0 0.0
      %2830 = vmatprep.subr.mxu0 0.0
      %2831 = vmatpush1.msra.mxu0 0.0
      %2832 = vmatprep.subr.mxu0 0.0
      %2833 = vmatpush1.msra.mxu0 0.0
      %2834 = vmatprep.subr.mxu0 0.0
      %2835 = vmatpush1.msra.mxu0 0.0
      %2836 = vmatprep.subr.mxu0 0.0
      %2837 = vmatpush1.msra.mxu0 0.0
      %2838 = vmatprep.subr.mxu0 0.0
      %2839 = vmatpush1.msra.mxu0 0.0
      %2840 = vmatprep.subr.mxu0 0.0
      %2841 = vmatpush1.msra.mxu0 0.0
      %2842 = vmatprep.mubr.f32.mxu0 0.0
      %2843 = vmatmul.mubr.f32.gmra.mrb[0].mxu0 %v2776
      %v2844 = vpop.f32.mrb[0].mxu0
      %v2845 = vadd.f32 0.0, %v2844
      %v2846 = vpop.f32.mrb[0].mxu0
      %v2847 = vadd.f32 0.0, %v2846
      %2848 = vdwg.mxu0
      %v2849 = vadd.f32 %v2761, %v2845
      %v2850 = vadd.f32 %v2762, %v2847
      %s2851 = scalar_lea.vmem %s7, 40
      %v2852 = vld [vmem:[%s2851] sm:$0xff]
      %2853 = vrot.lane.b32.xlu0 %v2489, 110
      %v2854 = vpop.permute.xlu0 %2853
      %2855 = vrot.lane.b32.xlu0 %v2490, 110
      %v2856 = vpop.permute.xlu0 %2855
      %2857 = vrot.lane.b32.xlu0 %v2491, 110
      %v2858 = vpop.permute.xlu0 %2857
      %v2859 = vsel %vm1994, %v2854, %v2856
      %v2860 = vsel %vm1994, %v2856, %v2858
      %v2864 = vsel %vm362, %v2852, 0
      %2866 = vmatprep.subr.mxu0 %v2860
      %2867 = vmatpush1.msra.mxu0 %v2859
      %2868 = vmatprep.subr.mxu0 0.0
      %2869 = vmatpush1.msra.mxu0 0.0
      %2870 = vmatprep.subr.mxu0 0.0
      %2871 = vmatpush1.msra.mxu0 0.0
      %2872 = vmatprep.subr.mxu0 0.0
      %2873 = vmatpush1.msra.mxu0 0.0
      %2874 = vmatprep.subr.mxu0 0.0
      %2875 = vmatpush1.msra.mxu0 0.0
      %2876 = vmatprep.subr.mxu0 0.0
      %2877 = vmatpush1.msra.mxu0 0.0
      %2878 = vmatprep.subr.mxu0 0.0
      %2879 = vmatpush1.msra.mxu0 0.0
      %2880 = vmatprep.subr.mxu0 0.0
      %2881 = vmatpush1.msra.mxu0 0.0
      %2882 = vmatprep.subr.mxu0 0.0
      %2883 = vmatpush1.msra.mxu0 0.0
      %2884 = vmatprep.subr.mxu0 0.0
      %2885 = vmatpush1.msra.mxu0 0.0
      %2886 = vmatprep.subr.mxu0 0.0
      %2887 = vmatpush1.msra.mxu0 0.0
      %2888 = vmatprep.subr.mxu0 0.0
      %2889 = vmatpush1.msra.mxu0 0.0
      %2890 = vmatprep.subr.mxu0 0.0
      %2891 = vmatpush1.msra.mxu0 0.0
      %2892 = vmatprep.subr.mxu0 0.0
      %2893 = vmatpush1.msra.mxu0 0.0
      %2894 = vmatprep.subr.mxu0 0.0
      %2895 = vmatpush1.msra.mxu0 0.0
      %2896 = vmatprep.subr.mxu0 0.0
      %2897 = vmatpush1.msra.mxu0 0.0
      %2898 = vmatprep.subr.mxu0 0.0
      %2899 = vmatpush1.msra.mxu0 0.0
      %2900 = vmatprep.subr.mxu0 0.0
      %2901 = vmatpush1.msra.mxu0 0.0
      %2902 = vmatprep.subr.mxu0 0.0
      %2903 = vmatpush1.msra.mxu0 0.0
      %2904 = vmatprep.subr.mxu0 0.0
      %2905 = vmatpush1.msra.mxu0 0.0
      %2906 = vmatprep.subr.mxu0 0.0
      %2907 = vmatpush1.msra.mxu0 0.0
      %2908 = vmatprep.subr.mxu0 0.0
      %2909 = vmatpush1.msra.mxu0 0.0
      %2910 = vmatprep.subr.mxu0 0.0
      %2911 = vmatpush1.msra.mxu0 0.0
      %2912 = vmatprep.subr.mxu0 0.0
      %2913 = vmatpush1.msra.mxu0 0.0
      %2914 = vmatprep.subr.mxu0 0.0
      %2915 = vmatpush1.msra.mxu0 0.0
      %2916 = vmatprep.subr.mxu0 0.0
      %2917 = vmatpush1.msra.mxu0 0.0
      %2918 = vmatprep.subr.mxu0 0.0
      %2919 = vmatpush1.msra.mxu0 0.0
      %2920 = vmatprep.subr.mxu0 0.0
      %2921 = vmatpush1.msra.mxu0 0.0
      %2922 = vmatprep.subr.mxu0 0.0
      %2923 = vmatpush1.msra.mxu0 0.0
      %2924 = vmatprep.subr.mxu0 0.0
      %2925 = vmatpush1.msra.mxu0 0.0
      %2926 = vmatprep.subr.mxu0 0.0
      %2927 = vmatpush1.msra.mxu0 0.0
      %2928 = vmatprep.subr.mxu0 0.0
      %2929 = vmatpush1.msra.mxu0 0.0
      %2930 = vmatprep.mubr.f32.mxu0 0.0
      %2931 = vmatmul.mubr.f32.gmra.mrb[0].mxu0 %v2864
      %v2932 = vpop.f32.mrb[0].mxu0
      %v2933 = vadd.f32 0.0, %v2932
      %v2934 = vpop.f32.mrb[0].mxu0
      %v2935 = vadd.f32 0.0, %v2934
      %2936 = vdwg.mxu0
      %v2937 = vmul.f32 %v2933, %v1771
      %v2938 = vmul.f32 %v2935, %v1775
      %v2939 = vadd.f32 %v2849, %v2937
      %v2940 = vadd.f32 %v2850, %v2938
      %s2941 = scalar_lea.vmem %s7, 48
      %v2942 = vld [vmem:[%s2941] sm:$0xff]
      %2943 = vrot.lane.b32.xlu0 %v2489, 96
      %v2944 = vpop.permute.xlu0 %2943
      %2945 = vrot.lane.b32.xlu0 %v2490, 96
      %v2946 = vpop.permute.xlu0 %2945
      %2947 = vrot.lane.b32.xlu0 %v2491, 96
      %v2948 = vpop.permute.xlu0 %2947
      %v2949 = vsel %vm2095, %v2944, %v2946
      %v2950 = vsel %vm2095, %v2946, %v2948
      %v2954 = vsel %vm362, %v2942, 0
      %2956 = vmatprep.subr.mxu0 %v2950
      %2957 = vmatpush1.msra.mxu0 %v2949
      %2958 = vmatprep.subr.mxu0 0.0
      %2959 = vmatpush1.msra.mxu0 0.0
      %2960 = vmatprep.subr.mxu0 0.0
      %2961 = vmatpush1.msra.mxu0 0.0
      %2962 = vmatprep.subr.mxu0 0.0
      %2963 = vmatpush1.msra.mxu0 0.0
      %2964 = vmatprep.subr.mxu0 0.0
      %2965 = vmatpush1.msra.mxu0 0.0
      %2966 = vmatprep.subr.mxu0 0.0
      %2967 = vmatpush1.msra.mxu0 0.0
      %2968 = vmatprep.subr.mxu0 0.0
      %2969 = vmatpush1.msra.mxu0 0.0
      %2970 = vmatprep.subr.mxu0 0.0
      %2971 = vmatpush1.msra.mxu0 0.0
      %2972 = vmatprep.subr.mxu0 0.0
      %2973 = vmatpush1.msra.mxu0 0.0
      %2974 = vmatprep.subr.mxu0 0.0
      %2975 = vmatpush1.msra.mxu0 0.0
      %2976 = vmatprep.subr.mxu0 0.0
      %2977 = vmatpush1.msra.mxu0 0.0
      %2978 = vmatprep.subr.mxu0 0.0
      %2979 = vmatpush1.msra.mxu0 0.0
      %2980 = vmatprep.subr.mxu0 0.0
      %2981 = vmatpush1.msra.mxu0 0.0
      %2982 = vmatprep.subr.mxu0 0.0
      %2983 = vmatpush1.msra.mxu0 0.0
      %2984 = vmatprep.subr.mxu0 0.0
      %2985 = vmatpush1.msra.mxu0 0.0
      %2986 = vmatprep.subr.mxu0 0.0
      %2987 = vmatpush1.msra.mxu0 0.0
      %2988 = vmatprep.subr.mxu0 0.0
      %2989 = vmatpush1.msra.mxu0 0.0
      %2990 = vmatprep.subr.mxu0 0.0
      %2991 = vmatpush1.msra.mxu0 0.0
      %2992 = vmatprep.subr.mxu0 0.0
      %2993 = vmatpush1.msra.mxu0 0.0
      %2994 = vmatprep.subr.mxu0 0.0
      %2995 = vmatpush1.msra.mxu0 0.0
      %2996 = vmatprep.subr.mxu0 0.0
      %2997 = vmatpush1.msra.mxu0 0.0
      %2998 = vmatprep.subr.mxu0 0.0
      %2999 = vmatpush1.msra.mxu0 0.0
      %3000 = vmatprep.subr.mxu0 0.0
      %3001 = vmatpush1.msra.mxu0 0.0
      %3002 = vmatprep.subr.mxu0 0.0
      %3003 = vmatpush1.msra.mxu0 0.0
      %3004 = vmatprep.subr.mxu0 0.0
      %3005 = vmatpush1.msra.mxu0 0.0
      %3006 = vmatprep.subr.mxu0 0.0
      %3007 = vmatpush1.msra.mxu0 0.0
      %3008 = vmatprep.subr.mxu0 0.0
      %3009 = vmatpush1.msra.mxu0 0.0
      %3010 = vmatprep.subr.mxu0 0.0
      %3011 = vmatpush1.msra.mxu0 0.0
      %3012 = vmatprep.subr.mxu0 0.0
      %3013 = vmatpush1.msra.mxu0 0.0
      %3014 = vmatprep.subr.mxu0 0.0
      %3015 = vmatpush1.msra.mxu0 0.0
      %3016 = vmatprep.subr.mxu0 0.0
      %3017 = vmatpush1.msra.mxu0 0.0
      %3018 = vmatprep.subr.mxu0 0.0
      %3019 = vmatpush1.msra.mxu0 0.0
      %3020 = vmatprep.mubr.f32.mxu0 0.0
      %3021 = vmatmul.mubr.f32.gmra.mrb[0].mxu0 %v2954
      %v3022 = vpop.f32.mrb[0].mxu0
      %v3023 = vadd.f32 0.0, %v3022
      %v3024 = vpop.f32.mrb[0].mxu0
      %v3025 = vadd.f32 0.0, %v3024
      %3026 = vdwg.mxu0
      %v3027 = vmul.f32 %v3023, %v1541
      %v3028 = vmul.f32 %v3025, %v1545
      %v3029 = vadd.f32 %v2939, %v3027
      %v3030 = vadd.f32 %v2940, %v3028
      %s3031 = scalar_lea.vmem %s7, 56
      %v3032 = vld [vmem:[%s3031] sm:$0xff]
      %3033 = vrot.lane.b32.xlu0 %v2489, 95
      %v3034 = vpop.permute.xlu0 %3033
      %3035 = vrot.lane.b32.xlu0 %v2490, 95
      %v3036 = vpop.permute.xlu0 %3035
      %3037 = vrot.lane.b32.xlu0 %v2491, 95
      %v3038 = vpop.permute.xlu0 %3037
      %v3039 = vsel %vm2196, %v3034, %v3036
      %v3040 = vsel %vm2196, %v3036, %v3038
      %v3044 = vsel %vm362, %v3032, 0
      %3046 = vmatprep.subr.mxu0 %v3040
      %3047 = vmatpush1.msra.mxu0 %v3039
      %3048 = vmatprep.subr.mxu0 0.0
      %3049 = vmatpush1.msra.mxu0 0.0
      %3050 = vmatprep.subr.mxu0 0.0
      %3051 = vmatpush1.msra.mxu0 0.0
      %3052 = vmatprep.subr.mxu0 0.0
      %3053 = vmatpush1.msra.mxu0 0.0
      %3054 = vmatprep.subr.mxu0 0.0
      %3055 = vmatpush1.msra.mxu0 0.0
      %3056 = vmatprep.subr.mxu0 0.0
      %3057 = vmatpush1.msra.mxu0 0.0
      %3058 = vmatprep.subr.mxu0 0.0
      %3059 = vmatpush1.msra.mxu0 0.0
      %3060 = vmatprep.subr.mxu0 0.0
      %3061 = vmatpush1.msra.mxu0 0.0
      %3062 = vmatprep.subr.mxu0 0.0
      %3063 = vmatpush1.msra.mxu0 0.0
      %3064 = vmatprep.subr.mxu0 0.0
      %3065 = vmatpush1.msra.mxu0 0.0
      %3066 = vmatprep.subr.mxu0 0.0
      %3067 = vmatpush1.msra.mxu0 0.0
      %3068 = vmatprep.subr.mxu0 0.0
      %3069 = vmatpush1.msra.mxu0 0.0
      %3070 = vmatprep.subr.mxu0 0.0
      %3071 = vmatpush1.msra.mxu0 0.0
      %3072 = vmatprep.subr.mxu0 0.0
      %3073 = vmatpush1.msra.mxu0 0.0
      %3074 = vmatprep.subr.mxu0 0.0
      %3075 = vmatpush1.msra.mxu0 0.0
      %3076 = vmatprep.subr.mxu0 0.0
      %3077 = vmatpush1.msra.mxu0 0.0
      %3078 = vmatprep.subr.mxu0 0.0
      %3079 = vmatpush1.msra.mxu0 0.0
      %3080 = vmatprep.subr.mxu0 0.0
      %3081 = vmatpush1.msra.mxu0 0.0
      %3082 = vmatprep.subr.mxu0 0.0
      %3083 = vmatpush1.msra.mxu0 0.0
      %3084 = vmatprep.subr.mxu0 0.0
      %3085 = vmatpush1.msra.mxu0 0.0
      %3086 = vmatprep.subr.mxu0 0.0
      %3087 = vmatpush1.msra.mxu0 0.0
      %3088 = vmatprep.subr.mxu0 0.0
      %3089 = vmatpush1.msra.mxu0 0.0
      %3090 = vmatprep.subr.mxu0 0.0
      %3091 = vmatpush1.msra.mxu0 0.0
      %3092 = vmatprep.subr.mxu0 0.0
      %3093 = vmatpush1.msra.mxu0 0.0
      %3094 = vmatprep.subr.mxu0 0.0
      %3095 = vmatpush1.msra.mxu0 0.0
      %3096 = vmatprep.subr.mxu0 0.0
      %3097 = vmatpush1.msra.mxu0 0.0
      %3098 = vmatprep.subr.mxu0 0.0
      %3099 = vmatpush1.msra.mxu0 0.0
      %3100 = vmatprep.subr.mxu0 0.0
      %3101 = vmatpush1.msra.mxu0 0.0
      %3102 = vmatprep.subr.mxu0 0.0
      %3103 = vmatpush1.msra.mxu0 0.0
      %3104 = vmatprep.subr.mxu0 0.0
      %3105 = vmatpush1.msra.mxu0 0.0
      %3106 = vmatprep.subr.mxu0 0.0
      %3107 = vmatpush1.msra.mxu0 0.0
      %3108 = vmatprep.subr.mxu0 0.0
      %3109 = vmatpush1.msra.mxu0 0.0
      %3110 = vmatprep.mubr.f32.mxu0 0.0
      %3111 = vmatmul.mubr.f32.gmra.mrb[0].mxu0 %v3044
      %v3112 = vpop.f32.mrb[0].mxu0
      %v3113 = vadd.f32 0.0, %v3112
      %v3114 = vpop.f32.mrb[0].mxu0
      %v3115 = vadd.f32 0.0, %v3114
      %3116 = vdwg.mxu0
      %v3117 = vadd.f32 %v3029, %v3113
      %v3118 = vadd.f32 %v3030, %v3115
      %s3119 = scalar_lea.vmem %s7, 64
      %v3120 = vld [vmem:[%s3119] sm:$0xff]
      %3121 = vrot.lane.b32.xlu0 %v2489, 94
      %v3122 = vpop.permute.xlu0 %3121
      %3123 = vrot.lane.b32.xlu0 %v2490, 94
      %v3124 = vpop.permute.xlu0 %3123
      %3125 = vrot.lane.b32.xlu0 %v2491, 94
      %v3126 = vpop.permute.xlu0 %3125
      %v3127 = vsel %vm2295, %v3122, %v3124
      %v3128 = vsel %vm2295, %v3124, %v3126
      %v3132 = vsel %vm362, %v3120, 0
      %3134 = vmatprep.subr.mxu0 %v3128
      %3135 = vmatpush1.msra.mxu0 %v3127
      %3136 = vmatprep.subr.mxu0 0.0
      %3137 = vmatpush1.msra.mxu0 0.0
      %3138 = vmatprep.subr.mxu0 0.0
      %3139 = vmatpush1.msra.mxu0 0.0
      %3140 = vmatprep.subr.mxu0 0.0
      %3141 = vmatpush1.msra.mxu0 0.0
      %3142 = vmatprep.subr.mxu0 0.0
      %3143 = vmatpush1.msra.mxu0 0.0
      %3144 = vmatprep.subr.mxu0 0.0
      %3145 = vmatpush1.msra.mxu0 0.0
      %3146 = vmatprep.subr.mxu0 0.0
      %3147 = vmatpush1.msra.mxu0 0.0
      %3148 = vmatprep.subr.mxu0 0.0
      %3149 = vmatpush1.msra.mxu0 0.0
      %3150 = vmatprep.subr.mxu0 0.0
      %3151 = vmatpush1.msra.mxu0 0.0
      %3152 = vmatprep.subr.mxu0 0.0
      %3153 = vmatpush1.msra.mxu0 0.0
      %3154 = vmatprep.subr.mxu0 0.0
      %3155 = vmatpush1.msra.mxu0 0.0
      %3156 = vmatprep.subr.mxu0 0.0
      %3157 = vmatpush1.msra.mxu0 0.0
      %3158 = vmatprep.subr.mxu0 0.0
      %3159 = vmatpush1.msra.mxu0 0.0
      %3160 = vmatprep.subr.mxu0 0.0
      %3161 = vmatpush1.msra.mxu0 0.0
      %3162 = vmatprep.subr.mxu0 0.0
      %3163 = vmatpush1.msra.mxu0 0.0
      %3164 = vmatprep.subr.mxu0 0.0
      %3165 = vmatpush1.msra.mxu0 0.0
      %3166 = vmatprep.subr.mxu0 0.0
      %3167 = vmatpush1.msra.mxu0 0.0
      %3168 = vmatprep.subr.mxu0 0.0
      %3169 = vmatpush1.msra.mxu0 0.0
      %3170 = vmatprep.subr.mxu0 0.0
      %3171 = vmatpush1.msra.mxu0 0.0
      %3172 = vmatprep.subr.mxu0 0.0
      %3173 = vmatpush1.msra.mxu0 0.0
      %3174 = vmatprep.subr.mxu0 0.0
      %3175 = vmatpush1.msra.mxu0 0.0
      %3176 = vmatprep.subr.mxu0 0.0
      %3177 = vmatpush1.msra.mxu0 0.0
      %3178 = vmatprep.subr.mxu0 0.0
      %3179 = vmatpush1.msra.mxu0 0.0
      %3180 = vmatprep.subr.mxu0 0.0
      %3181 = vmatpush1.msra.mxu0 0.0
      %3182 = vmatprep.subr.mxu0 0.0
      %3183 = vmatpush1.msra.mxu0 0.0
      %3184 = vmatprep.subr.mxu0 0.0
      %3185 = vmatpush1.msra.mxu0 0.0
      %3186 = vmatprep.subr.mxu0 0.0
      %3187 = vmatpush1.msra.mxu0 0.0
      %3188 = vmatprep.subr.mxu0 0.0
      %3189 = vmatpush1.msra.mxu0 0.0
      %3190 = vmatprep.subr.mxu0 0.0
      %3191 = vmatpush1.msra.mxu0 0.0
      %3192 = vmatprep.subr.mxu0 0.0
      %3193 = vmatpush1.msra.mxu0 0.0
      %3194 = vmatprep.subr.mxu0 0.0
      %3195 = vmatpush1.msra.mxu0 0.0
      %3196 = vmatprep.subr.mxu0 0.0
      %3197 = vmatpush1.msra.mxu0 0.0
      %3198 = vmatprep.mubr.f32.mxu0 0.0
      %3199 = vmatmul.mubr.f32.gmra.mrb[0].mxu0 %v3132
      %v3200 = vpop.f32.mrb[0].mxu0
      %v3201 = vadd.f32 0.0, %v3200
      %v3202 = vpop.f32.mrb[0].mxu0
      %v3203 = vadd.f32 0.0, %v3202
      %3204 = vdwg.mxu0
      %v3205 = vmul.f32 %v3201, %v1771
      %v3206 = vmul.f32 %v3203, %v1775
      %v3207 = vadd.f32 %v3117, %v3205
      %v3208 = vadd.f32 %v3118, %v3206
      %v3209 = vld [vmem:[%s8] sm:$0xff]
      %3211 = vset.pattern.permute.xlu0 0
      %3212 = vperm.xlu0 %3211, %v3209
      %v3213 = vpop.permute.xlu0 %3212
      %v3215 = vadd.f32 %v3207, %v3213
      %v3216 = vadd.f32 %v3208, %v3213
      %v3217 = vmax.f32 %v3215, 0.0
      %v3218 = vmax.f32 %v3216, 0.0
      %3219 = vst [vmem:[%s352] sm:$0xff] %v3217
      %3220 = vst [vmem:[%s352 + $0x8] sm:$0xff] %v3218
      %p3221 = scmp.lt.s32.totalorder %s20, 1
      %s3222 = scalar_select %p3221, %s20, 1
      %s3223 = smul.addr %s3222, 2
      %s3224 = smul.addr %s3223, 8
      %s3225 = scalar_lea.vmem %s9, %s3224
      // Predicated region
      $region57: #{unet_up_forward.1} parent=55 // pred_check
        %p3226 = pneg %p237
      $region58: #{unet_up_forward.1} parent=55 // pred_check_branch
        %3228 = sbr.rel (%p3226) target = $region60
      $region59: #{unet_up_forward.1} parent=55 // pred_region
        _
      $region60: #{unet_up_forward.1} parent=55 // pred_fallthru
        _
    $region56: #{unet_up_forward.1} parent=5 // pred_fallthru
      _
    %p3229 = scmp.le.s32.totalorder 2, %s15
    // Predicated region
    $region61: #{unet_up_forward.1} parent=5 // pred_check
      %p3230 = pneg %p3229
    $region62: #{unet_up_forward.1} parent=5 // pred_check_branch
      %3232 = sbr.rel (%p3230) target = $region64
    $region63: #{unet_up_forward.1} parent=5 // pred_region
      %s3233 = ssub.s32 %s15, 2
      // Predicated region
      $region65: #{unet_up_forward.1} parent=63 // pred_check
        %p3234 = pneg %p243
      $region66: #{unet_up_forward.1} parent=63 // pred_check_branch
        %3236 = sbr.rel (%p3234) target = $region68
      $region67: #{unet_up_forward.1} parent=63 // pred_region
        %p3237 = scmp.lt.s32.totalorder %s21, 1
        %s3238 = scalar_select %p3237, %s21, 1
        %s3239 = smul.addr %s3238, 2
        %s3240 = smul.addr %s3239, 8
        %s3241 = scalar_lea.vmem %s9, %s3240
      $region68: #{unet_up_forward.1} parent=63 // pred_fallthru
        _
    $region64: #{unet_up_forward.1} parent=5 // pred_fallthru
      _
  $region6: #{unet_up_forward.1} parent=0 // loop_footer
    %s19 = sadd.s32 1, %s15
  $region7: #{unet_up_forward.1} parent=0 // loop_footer_branch
    %14 = sbr.rel target = $region3
  $region8: #{unet_up_forward.1} parent=0 // loop_exit
    _

</llo_original>
